<compile_context>
chip_gen: v6e
topology: v6e:2x2x1
jax: 0.10.0
libtpu: 0.0.40
codegen_flags: <defaults>
</compile_context>

<pallas_src>
import functools

import jax
import jax.numpy as jnp
import numpy as np
from jax import lax
from jax.experimental import pallas as pl
from jax.experimental.pallas import tpu as pltpu

INPUT_DIM = 768
LATENT_DIM = 32
NUM_CODEBOOKS = 3
CODEBOOK_SIZE = 256
BETA = 0.25
ENC_DIMS = [INPUT_DIM, 512, 256, 128, LATENT_DIM]
DEC_DIMS = [LATENT_DIM, 128, 256, 512, INPUT_DIM]


def _round_up(n, m):
    return ((n + m - 1) // m) * m


def _mlp(h, ws, bs):
    """Linear->ReLU chain; last layer has no ReLU.  bf16 matmul, f32 accumulate."""
    n = len(ws)
    for i in range(n):
        a = h.astype(jnp.bfloat16)
        h = lax.dot_general(a, ws[i][...], (((1,), (0,)), ((), ())),
                            preferred_element_type=jnp.float32) + bs[i][...]
        if i < n - 1:
            h = jnp.maximum(h, 0.0)
    return h


def rqvae_kernel(beta, total_b,
                 x_ref,
                 ew0, eb0, ew1, eb1, ew2, eb2, ew3, eb3,
                 dw0, db0, dw1, db1, dw2, db2, dw3, db3,
                 cb_hi_ref, cb_lo_ref, cb_dk_ref, csq_ref,
                 xhat_ref, loss_ref):
    x = x_ref[...]                                   # [TB, input_dim] f32
    tb = x.shape[0]

    # ---------- encoder ----------
    z = _mlp(x, (ew0, ew1, ew2, ew3), (eb0, eb1, eb2, eb3))          # [TB, D] f32

    # ---------- residual quantization ----------
    num_codebooks, K, D = cb_hi_ref.shape
    residual = z
    codewords = []
    for level in range(num_codebooks):
        C_hi = cb_hi_ref[level]                                      # [K, D] bf16
        C_lo = cb_lo_ref[level]                                      # [K, D] bf16
        C_dk = cb_dk_ref[level]                                      # [D, K] bf16
        c_sq = csq_ref[level]                                        # [1, K] f32
        # Single-pass bf16 distance matmul (argmin only needs approximate distances).
        dots = lax.dot_general(residual.astype(jnp.bfloat16), C_dk,
                               (((1,), (0,)), ((), ())),
                               preferred_element_type=jnp.float32)   # [TB, K]
        # Squared-L2 distance up to a per-row constant (argmin-equivalent).
        dist = c_sq - 2.0 * dots                                     # [TB, K]
        min_d = jnp.min(dist, axis=-1, keepdims=True)                # [TB, 1]
        col = lax.broadcasted_iota(jnp.int32, dist.shape, 1)         # [TB, K]
        idx = jnp.min(jnp.where(dist <= min_d, col, K),
                      axis=-1, keepdims=True)                        # first argmin
        one_hot = (col == idx).astype(jnp.bfloat16)                  # exact 0/1 in bf16
        # Exact codeword lookup: C == f32(C_hi) + f32(C_lo), one-hot rows select a
        # single term so the f32 accumulation is exact (2 MXU passes per level).
        cw = (lax.dot_general(one_hot, C_hi, (((1,), (0,)), ((), ())),
                              preferred_element_type=jnp.float32)
              + lax.dot_general(one_hot, C_lo, (((1,), (0,)), ((), ())),
                                preferred_element_type=jnp.float32))  # [TB, D] f32
        residual = residual - cw
        codewords.append(cw)

    z_hat = codewords[0]
    for cw in codewords[1:]:
        z_hat = z_hat + cw                                           # [TB, D]

    # ---------- decoder ----------
    x_hat = _mlp(z_hat, (dw0, dw1, dw2, dw3), (db0, db1, db2, db3))  # [TB, input_dim]
    xhat_ref[...] = x_hat

    # ---------- per-tile loss partial sum ----------
    diff = x_hat - x
    recon = jnp.sum(diff * diff, axis=-1, keepdims=True)             # [TB, 1]
    # All stored "residuals" alias the final residual (PyTorch in-place -=).
    rq = jnp.zeros((tb, 1), jnp.float32)
    for cw in codewords:
        d = cw - residual
        rq = rq + jnp.sum(d * d, axis=-1, keepdims=True)
    per_sample = recon + (1.0 + beta) * rq                           # [TB, 1]
    # Mask rows that are batch padding so they contribute zero.
    row = pl.program_id(0) * tb + lax.broadcasted_iota(jnp.int32, (tb, 1), 0)
    per_sample = jnp.where(row < total_b, per_sample, 0.0)
    tile_sum = jnp.sum(per_sample, axis=0, keepdims=True)            # [1, 1]
    loss_ref[...] = jnp.broadcast_to(tile_sum, (8, 128))             # one block per tile


def _const_spec(shape):
    nd = len(shape)
    return pl.BlockSpec(shape, lambda *_: (0,) * nd)


def rqvae_forward(x, params, beta=BETA, batch_tile=512):
    B, input_dim = x.shape

    tb = min(_round_up(batch_tile, 8), _round_up(B, 8))
    b_pad = _round_up(B, tb)
    num_tiles = b_pad // tb
    x_p = x if b_pad == B else jnp.pad(x, ((0, b_pad - B), (0, 0)))

    args = [x_p]
    for W, b in params["enc"]:
        args += [W, b]
    for W, b in params["dec"]:
        args += [W, b]
    args += [params["cb_hi"], params["cb_lo"], params["cb_dk"], params["c_sq"]]

    in_specs = [pl.BlockSpec((tb, input_dim), lambda i: (i, 0))]
    in_specs += [_const_spec(a.shape) for a in args[1:]]
    out_shape = (jax.ShapeDtypeStruct((b_pad, input_dim), jnp.float32),
                 jax.ShapeDtypeStruct((num_tiles * 8, 128), jnp.float32))
    out_specs = (pl.BlockSpec((tb, input_dim), lambda i: (i, 0)),
                 pl.BlockSpec((8, 128), lambda i: (i, 0)))

    x_hat_p, loss_p = pl.pallas_call(
        functools.partial(rqvae_kernel, beta, B),
        out_shape=out_shape,
        grid=(num_tiles,),
        in_specs=in_specs,
        out_specs=out_specs,
        compiler_params=pltpu.CompilerParams(
            dimension_semantics=("parallel",),
            vmem_limit_bytes=48 * 1024 * 1024),
    )(*args)

    # One partial sum per tile lives at row i*8, lane 0.
    loss = jnp.sum(loss_p[::8, 0]) / B
    return x_hat_p[:B], loss


def init_params(key):
    keys = jax.random.split(key, 9)

    def linear(k, din, dout):
        k1, k2 = jax.random.split(k)
        bound = 1.0 / (din ** 0.5)
        W = jax.random.uniform(k1, (dout, din), jnp.float32, -bound, bound)
        b = jax.random.uniform(k2, (dout,), jnp.float32, -bound, bound)
        # Pre-transpose/reshape once at init time: W -> [in, out] bf16, b -> [1, out] f32.
        return jnp.transpose(W).astype(jnp.bfloat16), b.reshape(1, -1)

    enc = [linear(keys[i], ENC_DIMS[i], ENC_DIMS[i + 1]) for i in range(4)]
    dec = [linear(keys[4 + i], DEC_DIMS[i], DEC_DIMS[i + 1]) for i in range(4)]

    cb_raw = jax.random.normal(keys[8], (NUM_CODEBOOKS, CODEBOOK_SIZE, LATENT_DIM),
                               jnp.float32)
    # hi/lo bf16 split; the f32 codebook parameters are defined as exactly hi + lo so the
    # kernel's 2-pass one-hot lookup reproduces the f32 codewords bit-exactly.
    cb_hi = cb_raw.astype(jnp.bfloat16)
    cb_lo = (cb_raw - cb_hi.astype(jnp.float32)).astype(jnp.bfloat16)
    cb = cb_hi.astype(jnp.float32) + cb_lo.astype(jnp.float32)
    return {
        "enc": enc,
        "dec": dec,
        "cb": cb,                                        # [L, K, D] f32 (reference lookup)
        "cb_hi": cb_hi,                                  # [L, K, D] bf16
        "cb_lo": cb_lo,                                  # [L, K, D] bf16
        "cb_dk": jnp.transpose(cb_hi, (0, 2, 1)),        # [L, D, K] bf16 (distance matmul)
        "c_sq": jnp.sum(cb * cb, axis=-1)[:, None, :],   # [L, 1, K] f32
    }


def ref_forward(x, params, beta=BETA):
    """Pure-JAX reference reproducing the PyTorch forward (incl. residual aliasing),
    using the same bf16-matmul / f32-accumulate mixed precision as the kernel
    (including the bf16 nearest-codeword distance computation)."""
    def mlp(h, layers):
        n = len(layers)
        for i, (W, b) in enumerate(layers):
            h = jnp.dot(h.astype(jnp.bfloat16), W,
                        preferred_element_type=jnp.float32) + b
            if i < n - 1:
                h = jnp.maximum(h, 0.0)
        return h

    residual = mlp(x, params["enc"])
    cb = params["cb"]
    codewords = []
    for level in range(cb.shape[0]):
        dots = jnp.dot(residual.astype(jnp.bfloat16), params["cb_dk"][level],
                       preferred_element_type=jnp.float32)
        dist = params["c_sq"][level] - 2.0 * dots        # argmin-equivalent to full L2
        ids = jnp.argmin(dist, axis=-1)
        cw = cb[level][ids]
        residual = residual - cw
        codewords.append(cw)
    z_hat = sum(codewords)
    x_hat = mlp(z_hat, params["dec"])
    recon = jnp.sum((x_hat - x) ** 2, axis=-1)
    rq = sum(jnp.sum((cw - residual) ** 2, axis=-1) for cw in codewords)
    loss = jnp.mean(recon + (1.0 + beta) * rq)
    return x_hat, loss


if __name__ == "__main__":
    key = jax.random.PRNGKey(0)
    kx, kp = jax.random.split(key)
    B = 20                       # deliberately not a multiple of the batch tile
    x = jax.random.normal(kx, (B, INPUT_DIM), jnp.float32)
    params = init_params(kp)

    # Small batch tile (8) so the test exercises multiple parallel grid steps
    # plus padded-row masking; production default is batch_tile=512.
    x_hat, loss = rqvae_forward(x, params, batch_tile=8)
    jax.block_until_ready((x_hat, loss))

    x_hat_ref, loss_ref_v = ref_forward(x, params)
    np.testing.assert_allclose(np.asarray(x_hat), np.asarray(x_hat_ref),
                               rtol=2e-3, atol=2e-3)
    np.testing.assert_allclose(float(loss), float(loss_ref_v),
                               rtol=2e-3, atol=2e-3)
    print("KERNEL_OK")
</pallas_src>

<mosaic_0001>
module attributes {stable_mosaic.version = 11 : i64} {
  func.func @rqvae_kernel(%arg0: i32, %arg1: memref<8x768xf32, #tpu.memory_space<vmem>>, %arg2: memref<768x512xbf16, #tpu.memory_space<vmem>>, %arg3: memref<1x512xf32, #tpu.memory_space<vmem>>, %arg4: memref<512x256xbf16, #tpu.memory_space<vmem>>, %arg5: memref<1x256xf32, #tpu.memory_space<vmem>>, %arg6: memref<256x128xbf16, #tpu.memory_space<vmem>>, %arg7: memref<1x128xf32, #tpu.memory_space<vmem>>, %arg8: memref<128x32xbf16, #tpu.memory_space<vmem>>, %arg9: memref<1x32xf32, #tpu.memory_space<vmem>>, %arg10: memref<32x128xbf16, #tpu.memory_space<vmem>>, %arg11: memref<1x128xf32, #tpu.memory_space<vmem>>, %arg12: memref<128x256xbf16, #tpu.memory_space<vmem>>, %arg13: memref<1x256xf32, #tpu.memory_space<vmem>>, %arg14: memref<256x512xbf16, #tpu.memory_space<vmem>>, %arg15: memref<1x512xf32, #tpu.memory_space<vmem>>, %arg16: memref<512x768xbf16, #tpu.memory_space<vmem>>, %arg17: memref<1x768xf32, #tpu.memory_space<vmem>>, %arg18: memref<3x256x32xbf16, #tpu.memory_space<vmem>>, %arg19: memref<3x256x32xbf16, #tpu.memory_space<vmem>>, %arg20: memref<3x32x256xbf16, #tpu.memory_space<vmem>>, %arg21: memref<3x1x256xf32, #tpu.memory_space<vmem>>, %arg22: memref<8x768xf32, #tpu.memory_space<vmem>>, %arg23: memref<8x128xf32, #tpu.memory_space<vmem>>) attributes {dimension_semantics = [#tpu.dimension_semantics<parallel>], iteration_bounds = array<i64: 3>, scalar_prefetch = 0 : i64, scratch_operands = 0 : i64, tpu.core_type = #tpu.core_type<tc>, window_params = [{transform_indices = @transform_0, window_bounds = array<i64: 8, 768>}, {pipeline_mode = #tpu.pipeline_mode<synchronous>, transform_indices = @transform_1, window_bounds = array<i64: 768, 512>}, {pipeline_mode = #tpu.pipeline_mode<synchronous>, transform_indices = @transform_2, window_bounds = array<i64: 1, 512>}, {pipeline_mode = #tpu.pipeline_mode<synchronous>, transform_indices = @transform_3, window_bounds = array<i64: 512, 256>}, {pipeline_mode = #tpu.pipeline_mode<synchronous>, transform_indices = @transform_4, window_bounds = array<i64: 1, 256>}, {pipeline_mode = #tpu.pipeline_mode<synchronous>, transform_indices = @transform_5, window_bounds = array<i64: 256, 128>}, {pipeline_mode = #tpu.pipeline_mode<synchronous>, transform_indices = @transform_6, window_bounds = array<i64: 1, 128>}, {pipeline_mode = #tpu.pipeline_mode<synchronous>, transform_indices = @transform_7, window_bounds = array<i64: 128, 32>}, {pipeline_mode = #tpu.pipeline_mode<synchronous>, transform_indices = @transform_8, window_bounds = array<i64: 1, 32>}, {pipeline_mode = #tpu.pipeline_mode<synchronous>, transform_indices = @transform_9, window_bounds = array<i64: 32, 128>}, {pipeline_mode = #tpu.pipeline_mode<synchronous>, transform_indices = @transform_10, window_bounds = array<i64: 1, 128>}, {pipeline_mode = #tpu.pipeline_mode<synchronous>, transform_indices = @transform_11, window_bounds = array<i64: 128, 256>}, {pipeline_mode = #tpu.pipeline_mode<synchronous>, transform_indices = @transform_12, window_bounds = array<i64: 1, 256>}, {pipeline_mode = #tpu.pipeline_mode<synchronous>, transform_indices = @transform_13, window_bounds = array<i64: 256, 512>}, {pipeline_mode = #tpu.pipeline_mode<synchronous>, transform_indices = @transform_14, window_bounds = array<i64: 1, 512>}, {pipeline_mode = #tpu.pipeline_mode<synchronous>, transform_indices = @transform_15, window_bounds = array<i64: 512, 768>}, {pipeline_mode = #tpu.pipeline_mode<synchronous>, transform_indices = @transform_16, window_bounds = array<i64: 1, 768>}, {pipeline_mode = #tpu.pipeline_mode<synchronous>, transform_indices = @transform_17, window_bounds = array<i64: 3, 256, 32>}, {pipeline_mode = #tpu.pipeline_mode<synchronous>, transform_indices = @transform_18, window_bounds = array<i64: 3, 256, 32>}, {pipeline_mode = #tpu.pipeline_mode<synchronous>, transform_indices = @transform_19, window_bounds = array<i64: 3, 32, 256>}, {pipeline_mode = #tpu.pipeline_mode<synchronous>, transform_indices = @transform_20, window_bounds = array<i64: 3, 1, 256>}, {transform_indices = @transform_21, window_bounds = array<i64: 8, 768>}, {transform_indices = @transform_22, window_bounds = array<i64: 8, 128>}]} {
    %c0 = arith.constant 0 : index
    %c0_0 = arith.constant 0 : index
    %0 = vector.load %arg1[%c0, %c0_0] : memref<8x768xf32, #tpu.memory_space<vmem>>, vector<8x768xf32>
    %1 = arith.truncf %0 : vector<8x768xf32> to vector<8x768xbf16>
    %c0_1 = arith.constant 0 : index
    %c0_2 = arith.constant 0 : index
    %2 = vector.load %arg2[%c0_1, %c0_2] : memref<768x512xbf16, #tpu.memory_space<vmem>>, vector<768x512xbf16>
    %cst = arith.constant dense<0.000000e+00> : vector<8x512xf32>
    %3 = tpu.matmul %1, %2, %cst {dimension_numbers = #tpu.dot_dimension_numbers<[1], [0], [0], [1], [0, 0, 1, 1], [], []>} : vector<8x768xbf16>, vector<768x512xbf16>, vector<8x512xf32> -> vector<8x512xf32>
    %c0_3 = arith.constant 0 : index
    %c0_4 = arith.constant 0 : index
    %4 = vector.load %arg3[%c0_3, %c0_4] : memref<1x512xf32, #tpu.memory_space<vmem>>, vector<1x512xf32>
    %5 = vector.broadcast %4 : vector<1x512xf32> to vector<8x512xf32>
    %6 = arith.addf %3, %5 : vector<8x512xf32>
    %cst_5 = arith.constant 0.000000e+00 : f32
    %7 = vector.broadcast %cst_5 : f32 to vector<8x512xf32>
    %8 = arith.maximumf %6, %7 : vector<8x512xf32>
    %9 = arith.truncf %8 : vector<8x512xf32> to vector<8x512xbf16>
    %c0_6 = arith.constant 0 : index
    %c0_7 = arith.constant 0 : index
    %10 = vector.load %arg4[%c0_6, %c0_7] : memref<512x256xbf16, #tpu.memory_space<vmem>>, vector<512x256xbf16>
    %cst_8 = arith.constant dense<0.000000e+00> : vector<8x256xf32>
    %11 = tpu.matmul %9, %10, %cst_8 {dimension_numbers = #tpu.dot_dimension_numbers<[1], [0], [0], [1], [0, 0, 1, 1], [], []>} : vector<8x512xbf16>, vector<512x256xbf16>, vector<8x256xf32> -> vector<8x256xf32>
    %c0_9 = arith.constant 0 : index
    %c0_10 = arith.constant 0 : index
    %12 = vector.load %arg5[%c0_9, %c0_10] : memref<1x256xf32, #tpu.memory_space<vmem>>, vector<1x256xf32>
    %13 = vector.broadcast %12 : vector<1x256xf32> to vector<8x256xf32>
    %14 = arith.addf %11, %13 : vector<8x256xf32>
    %cst_11 = arith.constant 0.000000e+00 : f32
    %15 = vector.broadcast %cst_11 : f32 to vector<8x256xf32>
    %16 = arith.maximumf %14, %15 : vector<8x256xf32>
    %17 = arith.truncf %16 : vector<8x256xf32> to vector<8x256xbf16>
    %c0_12 = arith.constant 0 : index
    %c0_13 = arith.constant 0 : index
    %18 = vector.load %arg6[%c0_12, %c0_13] : memref<256x128xbf16, #tpu.memory_space<vmem>>, vector<256x128xbf16>
    %cst_14 = arith.constant dense<0.000000e+00> : vector<8x128xf32>
    %19 = tpu.matmul %17, %18, %cst_14 {dimension_numbers = #tpu.dot_dimension_numbers<[1], [0], [0], [1], [0, 0, 1, 1], [], []>} : vector<8x256xbf16>, vector<256x128xbf16>, vector<8x128xf32> -> vector<8x128xf32>
    %c0_15 = arith.constant 0 : index
    %c0_16 = arith.constant 0 : index
    %20 = vector.load %arg7[%c0_15, %c0_16] : memref<1x128xf32, #tpu.memory_space<vmem>>, vector<1x128xf32>
    %21 = vector.broadcast %20 : vector<1x128xf32> to vector<8x128xf32>
    %22 = arith.addf %19, %21 : vector<8x128xf32>
    %cst_17 = arith.constant 0.000000e+00 : f32
    %23 = vector.broadcast %cst_17 : f32 to vector<8x128xf32>
    %24 = arith.maximumf %22, %23 : vector<8x128xf32>
    %25 = arith.truncf %24 : vector<8x128xf32> to vector<8x128xbf16>
    %c0_18 = arith.constant 0 : index
    %c0_19 = arith.constant 0 : index
    %26 = vector.load %arg8[%c0_18, %c0_19] : memref<128x32xbf16, #tpu.memory_space<vmem>>, vector<128x32xbf16>
    %cst_20 = arith.constant dense<0.000000e+00> : vector<8x32xf32>
    %27 = tpu.matmul %25, %26, %cst_20 {dimension_numbers = #tpu.dot_dimension_numbers<[1], [0], [0], [1], [0, 0, 1, 1], [], []>} : vector<8x128xbf16>, vector<128x32xbf16>, vector<8x32xf32> -> vector<8x32xf32>
    %c0_21 = arith.constant 0 : index
    %c0_22 = arith.constant 0 : index
    %28 = vector.load %arg9[%c0_21, %c0_22] : memref<1x32xf32, #tpu.memory_space<vmem>>, vector<1x32xf32>
    %29 = vector.broadcast %28 : vector<1x32xf32> to vector<8x32xf32>
    %30 = arith.addf %27, %29 : vector<8x32xf32>
    %c0_23 = arith.constant 0 : index
    %c0_24 = arith.constant 0 : index
    %c0_25 = arith.constant 0 : index
    %31 = vector.load %arg18[%c0_23, %c0_24, %c0_25] : memref<3x256x32xbf16, #tpu.memory_space<vmem>>, vector<1x256x32xbf16>
    %32 = vector.shape_cast %31 : vector<1x256x32xbf16> to vector<256x32xbf16>
    %c0_26 = arith.constant 0 : index
    %c0_27 = arith.constant 0 : index
    %c0_28 = arith.constant 0 : index
    %33 = vector.load %arg19[%c0_26, %c0_27, %c0_28] : memref<3x256x32xbf16, #tpu.memory_space<vmem>>, vector<1x256x32xbf16>
    %34 = vector.shape_cast %33 : vector<1x256x32xbf16> to vector<256x32xbf16>
    %c0_29 = arith.constant 0 : index
    %c0_30 = arith.constant 0 : index
    %c0_31 = arith.constant 0 : index
    %35 = vector.load %arg20[%c0_29, %c0_30, %c0_31] : memref<3x32x256xbf16, #tpu.memory_space<vmem>>, vector<1x32x256xbf16>
    %36 = vector.shape_cast %35 : vector<1x32x256xbf16> to vector<32x256xbf16>
    %c0_32 = arith.constant 0 : index
    %c0_33 = arith.constant 0 : index
    %c0_34 = arith.constant 0 : index
    %37 = vector.load %arg21[%c0_32, %c0_33, %c0_34] : memref<3x1x256xf32, #tpu.memory_space<vmem>>, vector<1x1x256xf32>
    %38 = vector.shape_cast %37 : vector<1x1x256xf32> to vector<1x256xf32>
    %39 = arith.truncf %30 : vector<8x32xf32> to vector<8x32xbf16>
    %cst_35 = arith.constant dense<0.000000e+00> : vector<8x256xf32>
    %40 = tpu.matmul %39, %36, %cst_35 {dimension_numbers = #tpu.dot_dimension_numbers<[1], [0], [0], [1], [0, 0, 1, 1], [], []>} : vector<8x32xbf16>, vector<32x256xbf16>, vector<8x256xf32> -> vector<8x256xf32>
    %cst_36 = arith.constant 2.000000e+00 : f32
    %41 = vector.broadcast %cst_36 : f32 to vector<8x256xf32>
    %42 = arith.mulf %41, %40 : vector<8x256xf32>
    %43 = vector.broadcast %38 : vector<1x256xf32> to vector<8x256xf32>
    %44 = arith.subf %43, %42 : vector<8x256xf32>
    %cst_37 = arith.constant dense<0x7F800000> : vector<8xf32>
    %45 = vector.multi_reduction <minimumf>, %44, %cst_37 [1] : vector<8x256xf32> to vector<8xf32>
    %46 = vector.shape_cast %45 : vector<8xf32> to vector<8x1xf32>
    %47 = tpu.iota {dimensions = array<i32: 1>} : vector<8x256xi32>
    %48 = vector.broadcast %46 : vector<8x1xf32> to vector<8x256xf32>
    %49 = arith.cmpf ole, %44, %48 : vector<8x256xf32>
    %c256_i32 = arith.constant 256 : i32
    %50 = vector.broadcast %c256_i32 : i32 to vector<8x256xi32>
    %51 = arith.select %49, %47, %50 : vector<8x256xi1>, vector<8x256xi32>
    %cst_38 = arith.constant dense<2147483647> : vector<8xi32>
    %52 = vector.multi_reduction <minsi>, %51, %cst_38 [1] : vector<8x256xi32> to vector<8xi32>
    %53 = vector.shape_cast %52 : vector<8xi32> to vector<8x1xi32>
    %54 = vector.broadcast %53 : vector<8x1xi32> to vector<8x256xi32>
    %55 = arith.cmpi eq, %47, %54 : vector<8x256xi32>
    %56 = arith.extui %55 : vector<8x256xi1> to vector<8x256xi32>
    %57 = arith.sitofp %56 : vector<8x256xi32> to vector<8x256xf32>
    %58 = arith.truncf %57 : vector<8x256xf32> to vector<8x256xbf16>
    %cst_39 = arith.constant dense<0.000000e+00> : vector<8x32xf32>
    %59 = tpu.matmul %58, %32, %cst_39 {dimension_numbers = #tpu.dot_dimension_numbers<[1], [0], [0], [1], [0, 0, 1, 1], [], []>} : vector<8x256xbf16>, vector<256x32xbf16>, vector<8x32xf32> -> vector<8x32xf32>
    %cst_40 = arith.constant dense<0.000000e+00> : vector<8x32xf32>
    %60 = tpu.matmul %58, %34, %cst_40 {dimension_numbers = #tpu.dot_dimension_numbers<[1], [0], [0], [1], [0, 0, 1, 1], [], []>} : vector<8x256xbf16>, vector<256x32xbf16>, vector<8x32xf32> -> vector<8x32xf32>
    %61 = arith.addf %59, %60 : vector<8x32xf32>
    %62 = arith.subf %30, %61 : vector<8x32xf32>
    %c1 = arith.constant 1 : index
    %c0_41 = arith.constant 0 : index
    %c0_42 = arith.constant 0 : index
    %63 = vector.load %arg18[%c1, %c0_41, %c0_42] : memref<3x256x32xbf16, #tpu.memory_space<vmem>>, vector<1x256x32xbf16>
    %64 = vector.shape_cast %63 : vector<1x256x32xbf16> to vector<256x32xbf16>
    %c1_43 = arith.constant 1 : index
    %c0_44 = arith.constant 0 : index
    %c0_45 = arith.constant 0 : index
    %65 = vector.load %arg19[%c1_43, %c0_44, %c0_45] : memref<3x256x32xbf16, #tpu.memory_space<vmem>>, vector<1x256x32xbf16>
    %66 = vector.shape_cast %65 : vector<1x256x32xbf16> to vector<256x32xbf16>
    %c1_46 = arith.constant 1 : index
    %c0_47 = arith.constant 0 : index
    %c0_48 = arith.constant 0 : index
    %67 = vector.load %arg20[%c1_46, %c0_47, %c0_48] : memref<3x32x256xbf16, #tpu.memory_space<vmem>>, vector<1x32x256xbf16>
    %68 = vector.shape_cast %67 : vector<1x32x256xbf16> to vector<32x256xbf16>
    %c1_49 = arith.constant 1 : index
    %c0_50 = arith.constant 0 : index
    %c0_51 = arith.constant 0 : index
    %69 = vector.load %arg21[%c1_49, %c0_50, %c0_51] : memref<3x1x256xf32, #tpu.memory_space<vmem>>, vector<1x1x256xf32>
    %70 = vector.shape_cast %69 : vector<1x1x256xf32> to vector<1x256xf32>
    %71 = arith.truncf %62 : vector<8x32xf32> to vector<8x32xbf16>
    %cst_52 = arith.constant dense<0.000000e+00> : vector<8x256xf32>
    %72 = tpu.matmul %71, %68, %cst_52 {dimension_numbers = #tpu.dot_dimension_numbers<[1], [0], [0], [1], [0, 0, 1, 1], [], []>} : vector<8x32xbf16>, vector<32x256xbf16>, vector<8x256xf32> -> vector<8x256xf32>
    %cst_53 = arith.constant 2.000000e+00 : f32
    %73 = vector.broadcast %cst_53 : f32 to vector<8x256xf32>
    %74 = arith.mulf %73, %72 : vector<8x256xf32>
    %75 = vector.broadcast %70 : vector<1x256xf32> to vector<8x256xf32>
    %76 = arith.subf %75, %74 : vector<8x256xf32>
    %cst_54 = arith.constant dense<0x7F800000> : vector<8xf32>
    %77 = vector.multi_reduction <minimumf>, %76, %cst_54 [1] : vector<8x256xf32> to vector<8xf32>
    %78 = vector.shape_cast %77 : vector<8xf32> to vector<8x1xf32>
    %79 = tpu.iota {dimensions = array<i32: 1>} : vector<8x256xi32>
    %80 = vector.broadcast %78 : vector<8x1xf32> to vector<8x256xf32>
    %81 = arith.cmpf ole, %76, %80 : vector<8x256xf32>
    %c256_i32_55 = arith.constant 256 : i32
    %82 = vector.broadcast %c256_i32_55 : i32 to vector<8x256xi32>
    %83 = arith.select %81, %79, %82 : vector<8x256xi1>, vector<8x256xi32>
    %cst_56 = arith.constant dense<2147483647> : vector<8xi32>
    %84 = vector.multi_reduction <minsi>, %83, %cst_56 [1] : vector<8x256xi32> to vector<8xi32>
    %85 = vector.shape_cast %84 : vector<8xi32> to vector<8x1xi32>
    %86 = vector.broadcast %85 : vector<8x1xi32> to vector<8x256xi32>
    %87 = arith.cmpi eq, %79, %86 : vector<8x256xi32>
    %88 = arith.extui %87 : vector<8x256xi1> to vector<8x256xi32>
    %89 = arith.sitofp %88 : vector<8x256xi32> to vector<8x256xf32>
    %90 = arith.truncf %89 : vector<8x256xf32> to vector<8x256xbf16>
    %cst_57 = arith.constant dense<0.000000e+00> : vector<8x32xf32>
    %91 = tpu.matmul %90, %64, %cst_57 {dimension_numbers = #tpu.dot_dimension_numbers<[1], [0], [0], [1], [0, 0, 1, 1], [], []>} : vector<8x256xbf16>, vector<256x32xbf16>, vector<8x32xf32> -> vector<8x32xf32>
    %cst_58 = arith.constant dense<0.000000e+00> : vector<8x32xf32>
    %92 = tpu.matmul %90, %66, %cst_58 {dimension_numbers = #tpu.dot_dimension_numbers<[1], [0], [0], [1], [0, 0, 1, 1], [], []>} : vector<8x256xbf16>, vector<256x32xbf16>, vector<8x32xf32> -> vector<8x32xf32>
    %93 = arith.addf %91, %92 : vector<8x32xf32>
    %94 = arith.subf %62, %93 : vector<8x32xf32>
    %c2 = arith.constant 2 : index
    %c0_59 = arith.constant 0 : index
    %c0_60 = arith.constant 0 : index
    %95 = vector.load %arg18[%c2, %c0_59, %c0_60] : memref<3x256x32xbf16, #tpu.memory_space<vmem>>, vector<1x256x32xbf16>
    %96 = vector.shape_cast %95 : vector<1x256x32xbf16> to vector<256x32xbf16>
    %c2_61 = arith.constant 2 : index
    %c0_62 = arith.constant 0 : index
    %c0_63 = arith.constant 0 : index
    %97 = vector.load %arg19[%c2_61, %c0_62, %c0_63] : memref<3x256x32xbf16, #tpu.memory_space<vmem>>, vector<1x256x32xbf16>
    %98 = vector.shape_cast %97 : vector<1x256x32xbf16> to vector<256x32xbf16>
    %c2_64 = arith.constant 2 : index
    %c0_65 = arith.constant 0 : index
    %c0_66 = arith.constant 0 : index
    %99 = vector.load %arg20[%c2_64, %c0_65, %c0_66] : memref<3x32x256xbf16, #tpu.memory_space<vmem>>, vector<1x32x256xbf16>
    %100 = vector.shape_cast %99 : vector<1x32x256xbf16> to vector<32x256xbf16>
    %c2_67 = arith.constant 2 : index
    %c0_68 = arith.constant 0 : index
    %c0_69 = arith.constant 0 : index
    %101 = vector.load %arg21[%c2_67, %c0_68, %c0_69] : memref<3x1x256xf32, #tpu.memory_space<vmem>>, vector<1x1x256xf32>
    %102 = vector.shape_cast %101 : vector<1x1x256xf32> to vector<1x256xf32>
    %103 = arith.truncf %94 : vector<8x32xf32> to vector<8x32xbf16>
    %cst_70 = arith.constant dense<0.000000e+00> : vector<8x256xf32>
    %104 = tpu.matmul %103, %100, %cst_70 {dimension_numbers = #tpu.dot_dimension_numbers<[1], [0], [0], [1], [0, 0, 1, 1], [], []>} : vector<8x32xbf16>, vector<32x256xbf16>, vector<8x256xf32> -> vector<8x256xf32>
    %cst_71 = arith.constant 2.000000e+00 : f32
    %105 = vector.broadcast %cst_71 : f32 to vector<8x256xf32>
    %106 = arith.mulf %105, %104 : vector<8x256xf32>
    %107 = vector.broadcast %102 : vector<1x256xf32> to vector<8x256xf32>
    %108 = arith.subf %107, %106 : vector<8x256xf32>
    %cst_72 = arith.constant dense<0x7F800000> : vector<8xf32>
    %109 = vector.multi_reduction <minimumf>, %108, %cst_72 [1] : vector<8x256xf32> to vector<8xf32>
    %110 = vector.shape_cast %109 : vector<8xf32> to vector<8x1xf32>
    %111 = tpu.iota {dimensions = array<i32: 1>} : vector<8x256xi32>
    %112 = vector.broadcast %110 : vector<8x1xf32> to vector<8x256xf32>
    %113 = arith.cmpf ole, %108, %112 : vector<8x256xf32>
    %c256_i32_73 = arith.constant 256 : i32
    %114 = vector.broadcast %c256_i32_73 : i32 to vector<8x256xi32>
    %115 = arith.select %113, %111, %114 : vector<8x256xi1>, vector<8x256xi32>
    %cst_74 = arith.constant dense<2147483647> : vector<8xi32>
    %116 = vector.multi_reduction <minsi>, %115, %cst_74 [1] : vector<8x256xi32> to vector<8xi32>
    %117 = vector.shape_cast %116 : vector<8xi32> to vector<8x1xi32>
    %118 = vector.broadcast %117 : vector<8x1xi32> to vector<8x256xi32>
    %119 = arith.cmpi eq, %111, %118 : vector<8x256xi32>
    %120 = arith.extui %119 : vector<8x256xi1> to vector<8x256xi32>
    %121 = arith.sitofp %120 : vector<8x256xi32> to vector<8x256xf32>
    %122 = arith.truncf %121 : vector<8x256xf32> to vector<8x256xbf16>
    %cst_75 = arith.constant dense<0.000000e+00> : vector<8x32xf32>
    %123 = tpu.matmul %122, %96, %cst_75 {dimension_numbers = #tpu.dot_dimension_numbers<[1], [0], [0], [1], [0, 0, 1, 1], [], []>} : vector<8x256xbf16>, vector<256x32xbf16>, vector<8x32xf32> -> vector<8x32xf32>
    %cst_76 = arith.constant dense<0.000000e+00> : vector<8x32xf32>
    %124 = tpu.matmul %122, %98, %cst_76 {dimension_numbers = #tpu.dot_dimension_numbers<[1], [0], [0], [1], [0, 0, 1, 1], [], []>} : vector<8x256xbf16>, vector<256x32xbf16>, vector<8x32xf32> -> vector<8x32xf32>
    %125 = arith.addf %123, %124 : vector<8x32xf32>
    %126 = arith.subf %94, %125 : vector<8x32xf32>
    %127 = arith.addf %61, %93 : vector<8x32xf32>
    %128 = arith.addf %127, %125 : vector<8x32xf32>
    %129 = arith.truncf %128 : vector<8x32xf32> to vector<8x32xbf16>
    %c0_77 = arith.constant 0 : index
    %c0_78 = arith.constant 0 : index
    %130 = vector.load %arg10[%c0_77, %c0_78] : memref<32x128xbf16, #tpu.memory_space<vmem>>, vector<32x128xbf16>
    %cst_79 = arith.constant dense<0.000000e+00> : vector<8x128xf32>
    %131 = tpu.matmul %129, %130, %cst_79 {dimension_numbers = #tpu.dot_dimension_numbers<[1], [0], [0], [1], [0, 0, 1, 1], [], []>} : vector<8x32xbf16>, vector<32x128xbf16>, vector<8x128xf32> -> vector<8x128xf32>
    %c0_80 = arith.constant 0 : index
    %c0_81 = arith.constant 0 : index
    %132 = vector.load %arg11[%c0_80, %c0_81] : memref<1x128xf32, #tpu.memory_space<vmem>>, vector<1x128xf32>
    %133 = vector.broadcast %132 : vector<1x128xf32> to vector<8x128xf32>
    %134 = arith.addf %131, %133 : vector<8x128xf32>
    %cst_82 = arith.constant 0.000000e+00 : f32
    %135 = vector.broadcast %cst_82 : f32 to vector<8x128xf32>
    %136 = arith.maximumf %134, %135 : vector<8x128xf32>
    %137 = arith.truncf %136 : vector<8x128xf32> to vector<8x128xbf16>
    %c0_83 = arith.constant 0 : index
    %c0_84 = arith.constant 0 : index
    %138 = vector.load %arg12[%c0_83, %c0_84] : memref<128x256xbf16, #tpu.memory_space<vmem>>, vector<128x256xbf16>
    %cst_85 = arith.constant dense<0.000000e+00> : vector<8x256xf32>
    %139 = tpu.matmul %137, %138, %cst_85 {dimension_numbers = #tpu.dot_dimension_numbers<[1], [0], [0], [1], [0, 0, 1, 1], [], []>} : vector<8x128xbf16>, vector<128x256xbf16>, vector<8x256xf32> -> vector<8x256xf32>
    %c0_86 = arith.constant 0 : index
    %c0_87 = arith.constant 0 : index
    %140 = vector.load %arg13[%c0_86, %c0_87] : memref<1x256xf32, #tpu.memory_space<vmem>>, vector<1x256xf32>
    %141 = vector.broadcast %140 : vector<1x256xf32> to vector<8x256xf32>
    %142 = arith.addf %139, %141 : vector<8x256xf32>
    %cst_88 = arith.constant 0.000000e+00 : f32
    %143 = vector.broadcast %cst_88 : f32 to vector<8x256xf32>
    %144 = arith.maximumf %142, %143 : vector<8x256xf32>
    %145 = arith.truncf %144 : vector<8x256xf32> to vector<8x256xbf16>
    %c0_89 = arith.constant 0 : index
    %c0_90 = arith.constant 0 : index
    %146 = vector.load %arg14[%c0_89, %c0_90] : memref<256x512xbf16, #tpu.memory_space<vmem>>, vector<256x512xbf16>
    %cst_91 = arith.constant dense<0.000000e+00> : vector<8x512xf32>
    %147 = tpu.matmul %145, %146, %cst_91 {dimension_numbers = #tpu.dot_dimension_numbers<[1], [0], [0], [1], [0, 0, 1, 1], [], []>} : vector<8x256xbf16>, vector<256x512xbf16>, vector<8x512xf32> -> vector<8x512xf32>
    %c0_92 = arith.constant 0 : index
    %c0_93 = arith.constant 0 : index
    %148 = vector.load %arg15[%c0_92, %c0_93] : memref<1x512xf32, #tpu.memory_space<vmem>>, vector<1x512xf32>
    %149 = vector.broadcast %148 : vector<1x512xf32> to vector<8x512xf32>
    %150 = arith.addf %147, %149 : vector<8x512xf32>
    %cst_94 = arith.constant 0.000000e+00 : f32
    %151 = vector.broadcast %cst_94 : f32 to vector<8x512xf32>
    %152 = arith.maximumf %150, %151 : vector<8x512xf32>
    %153 = arith.truncf %152 : vector<8x512xf32> to vector<8x512xbf16>
    %c0_95 = arith.constant 0 : index
    %c0_96 = arith.constant 0 : index
    %154 = vector.load %arg16[%c0_95, %c0_96] : memref<512x768xbf16, #tpu.memory_space<vmem>>, vector<512x768xbf16>
    %cst_97 = arith.constant dense<0.000000e+00> : vector<8x768xf32>
    %155 = tpu.matmul %153, %154, %cst_97 {dimension_numbers = #tpu.dot_dimension_numbers<[1], [0], [0], [1], [0, 0, 1, 1], [], []>} : vector<8x512xbf16>, vector<512x768xbf16>, vector<8x768xf32> -> vector<8x768xf32>
    %c0_98 = arith.constant 0 : index
    %c0_99 = arith.constant 0 : index
    %156 = vector.load %arg17[%c0_98, %c0_99] : memref<1x768xf32, #tpu.memory_space<vmem>>, vector<1x768xf32>
    %157 = vector.broadcast %156 : vector<1x768xf32> to vector<8x768xf32>
    %158 = arith.addf %155, %157 : vector<8x768xf32>
    %c0_100 = arith.constant 0 : index
    %c0_101 = arith.constant 0 : index
    %159 = vector.load %arg22[%c0_100, %c0_101] : memref<8x768xf32, #tpu.memory_space<vmem>>, vector<8x768xf32>
    tpu.vector_store %arg22[%c0_100, %c0_101], %158 {strides = array<i32>} : memref<8x768xf32, #tpu.memory_space<vmem>>, vector<8x768xf32>,
    %160 = arith.subf %158, %0 : vector<8x768xf32>
    %161 = arith.mulf %160, %160 : vector<8x768xf32>
    %cst_102 = arith.constant dense<0.000000e+00> : vector<8xf32>
    %162 = vector.multi_reduction <add>, %161, %cst_102 [1] : vector<8x768xf32> to vector<8xf32>
    %163 = vector.shape_cast %162 : vector<8xf32> to vector<8x1xf32>
    %cst_103 = arith.constant 0.000000e+00 : f32
    %164 = vector.broadcast %cst_103 : f32 to vector<8x1xf32>
    %165 = arith.subf %61, %126 : vector<8x32xf32>
    %166 = arith.mulf %165, %165 : vector<8x32xf32>
    %cst_104 = arith.constant dense<0.000000e+00> : vector<8xf32>
    %167 = vector.multi_reduction <add>, %166, %cst_104 [1] : vector<8x32xf32> to vector<8xf32>
    %168 = vector.shape_cast %167 : vector<8xf32> to vector<8x1xf32>
    %169 = arith.addf %164, %168 : vector<8x1xf32>
    %170 = arith.subf %93, %126 : vector<8x32xf32>
    %171 = arith.mulf %170, %170 : vector<8x32xf32>
    %cst_105 = arith.constant dense<0.000000e+00> : vector<8xf32>
    %172 = vector.multi_reduction <add>, %171, %cst_105 [1] : vector<8x32xf32> to vector<8xf32>
    %173 = vector.shape_cast %172 : vector<8xf32> to vector<8x1xf32>
    %174 = arith.addf %169, %173 : vector<8x1xf32>
    %175 = arith.subf %125, %126 : vector<8x32xf32>
    %176 = arith.mulf %175, %175 : vector<8x32xf32>
    %cst_106 = arith.constant dense<0.000000e+00> : vector<8xf32>
    %177 = vector.multi_reduction <add>, %176, %cst_106 [1] : vector<8x32xf32> to vector<8xf32>
    %178 = vector.shape_cast %177 : vector<8xf32> to vector<8x1xf32>
    %179 = arith.addf %174, %178 : vector<8x1xf32>
    %cst_107 = arith.constant 1.250000e+00 : f32
    %180 = vector.broadcast %cst_107 : f32 to vector<8x1xf32>
    %181 = arith.mulf %180, %179 : vector<8x1xf32>
    %182 = arith.addf %163, %181 : vector<8x1xf32>
    %c8_i32 = arith.constant 8 : i32
    %183 = arith.muli %arg0, %c8_i32 : i32
    %184 = tpu.iota {dimensions = array<i32: 0>} : vector<8x1xi32>
    %185 = vector.broadcast %183 : i32 to vector<8x1xi32>
    %186 = arith.addi %185, %184 : vector<8x1xi32>
    %c20_i32 = arith.constant 20 : i32
    %187 = vector.broadcast %c20_i32 : i32 to vector<8x1xi32>
    %188 = arith.cmpi slt, %186, %187 : vector<8x1xi32>
    %cst_108 = arith.constant 0.000000e+00 : f32
    %189 = vector.broadcast %cst_108 : f32 to vector<8x1xf32>
    %190 = arith.select %188, %182, %189 : vector<8x1xi1>, vector<8x1xf32>
    %cst_109 = arith.constant dense<0.000000e+00> : vector<1xf32>
    %191 = vector.multi_reduction <add>, %190, %cst_109 [0] : vector<8x1xf32> to vector<1xf32>
    %192 = vector.shape_cast %191 : vector<1xf32> to vector<1x1xf32>
    %193 = vector.shape_cast %192 : vector<1x1xf32> to vector<1x1xf32>
    %194 = vector.broadcast %193 : vector<1x1xf32> to vector<8x128xf32>
    %c0_110 = arith.constant 0 : index
    %c0_111 = arith.constant 0 : index
    %195 = vector.load %arg23[%c0_110, %c0_111] : memref<8x128xf32, #tpu.memory_space<vmem>>, vector<8x128xf32>
    tpu.vector_store %arg23[%c0_110, %c0_111], %194 {strides = array<i32>} : memref<8x128xf32, #tpu.memory_space<vmem>>, vector<8x128xf32>,
    return
  }
  func.func @transform_0(%arg0: i32) -> (i32, i32) {
    %c0_i32 = arith.constant 0 : i32
    %c0_i32_0 = arith.constant 0 : i32
    return %arg0, %c0_i32 : i32, i32
  }
  func.func @transform_1(%arg0: i32) -> (i32, i32) {
    %c0_i32 = arith.constant 0 : i32
    %c0_i32_0 = arith.constant 0 : i32
    %c0_i32_1 = arith.constant 0 : i32
    return %c0_i32, %c0_i32_0 : i32, i32
  }
  func.func @transform_2(%arg0: i32) -> (i32, i32) {
    %c0_i32 = arith.constant 0 : i32
    %c0_i32_0 = arith.constant 0 : i32
    %c0_i32_1 = arith.constant 0 : i32
    return %c0_i32, %c0_i32_0 : i32, i32
  }
  func.func @transform_3(%arg0: i32) -> (i32, i32) {
    %c0_i32 = arith.constant 0 : i32
    %c0_i32_0 = arith.constant 0 : i32
    %c0_i32_1 = arith.constant 0 : i32
    return %c0_i32, %c0_i32_0 : i32, i32
  }
  func.func @transform_4(%arg0: i32) -> (i32, i32) {
    %c0_i32 = arith.constant 0 : i32
    %c0_i32_0 = arith.constant 0 : i32
    %c0_i32_1 = arith.constant 0 : i32
    return %c0_i32, %c0_i32_0 : i32, i32
  }
  func.func @transform_5(%arg0: i32) -> (i32, i32) {
    %c0_i32 = arith.constant 0 : i32
    %c0_i32_0 = arith.constant 0 : i32
    %c0_i32_1 = arith.constant 0 : i32
    return %c0_i32, %c0_i32_0 : i32, i32
  }
  func.func @transform_6(%arg0: i32) -> (i32, i32) {
    %c0_i32 = arith.constant 0 : i32
    %c0_i32_0 = arith.constant 0 : i32
    %c0_i32_1 = arith.constant 0 : i32
    return %c0_i32, %c0_i32_0 : i32, i32
  }
  func.func @transform_7(%arg0: i32) -> (i32, i32) {
    %c0_i32 = arith.constant 0 : i32
    %c0_i32_0 = arith.constant 0 : i32
    %c0_i32_1 = arith.constant 0 : i32
    return %c0_i32, %c0_i32_0 : i32, i32
  }
  func.func @transform_8(%arg0: i32) -> (i32, i32) {
    %c0_i32 = arith.constant 0 : i32
    %c0_i32_0 = arith.constant 0 : i32
    %c0_i32_1 = arith.constant 0 : i32
    return %c0_i32, %c0_i32_0 : i32, i32
  }
  func.func @transform_9(%arg0: i32) -> (i32, i32) {
    %c0_i32 = arith.constant 0 : i32
    %c0_i32_0 = arith.constant 0 : i32
    %c0_i32_1 = arith.constant 0 : i32
    return %c0_i32, %c0_i32_0 : i32, i32
  }
  func.func @transform_10(%arg0: i32) -> (i32, i32) {
    %c0_i32 = arith.constant 0 : i32
    %c0_i32_0 = arith.constant 0 : i32
    %c0_i32_1 = arith.constant 0 : i32
    return %c0_i32, %c0_i32_0 : i32, i32
  }
  func.func @transform_11(%arg0: i32) -> (i32, i32) {
    %c0_i32 = arith.constant 0 : i32
    %c0_i32_0 = arith.constant 0 : i32
    %c0_i32_1 = arith.constant 0 : i32
    return %c0_i32, %c0_i32_0 : i32, i32
  }
  func.func @transform_12(%arg0: i32) -> (i32, i32) {
    %c0_i32 = arith.constant 0 : i32
    %c0_i32_0 = arith.constant 0 : i32
    %c0_i32_1 = arith.constant 0 : i32
    return %c0_i32, %c0_i32_0 : i32, i32
  }
  func.func @transform_13(%arg0: i32) -> (i32, i32) {
    %c0_i32 = arith.constant 0 : i32
    %c0_i32_0 = arith.constant 0 : i32
    %c0_i32_1 = arith.constant 0 : i32
    return %c0_i32, %c0_i32_0 : i32, i32
  }
  func.func @transform_14(%arg0: i32) -> (i32, i32) {
    %c0_i32 = arith.constant 0 : i32
    %c0_i32_0 = arith.constant 0 : i32
    %c0_i32_1 = arith.constant 0 : i32
    return %c0_i32, %c0_i32_0 : i32, i32
  }
  func.func @transform_15(%arg0: i32) -> (i32, i32) {
    %c0_i32 = arith.constant 0 : i32
    %c0_i32_0 = arith.constant 0 : i32
    %c0_i32_1 = arith.constant 0 : i32
    return %c0_i32, %c0_i32_0 : i32, i32
  }
  func.func @transform_16(%arg0: i32) -> (i32, i32) {
    %c0_i32 = arith.constant 0 : i32
    %c0_i32_0 = arith.constant 0 : i32
    %c0_i32_1 = arith.constant 0 : i32
    return %c0_i32, %c0_i32_0 : i32, i32
  }
  func.func @transform_17(%arg0: i32) -> (i32, i32, i32) {
    %c0_i32 = arith.constant 0 : i32
    %c0_i32_0 = arith.constant 0 : i32
    %c0_i32_1 = arith.constant 0 : i32
    %c0_i32_2 = arith.constant 0 : i32
    return %c0_i32, %c0_i32_0, %c0_i32_1 : i32, i32, i32
  }
  func.func @transform_18(%arg0: i32) -> (i32, i32, i32) {
    %c0_i32 = arith.constant 0 : i32
    %c0_i32_0 = arith.constant 0 : i32
    %c0_i32_1 = arith.constant 0 : i32
    %c0_i32_2 = arith.constant 0 : i32
    return %c0_i32, %c0_i32_0, %c0_i32_1 : i32, i32, i32
  }
  func.func @transform_19(%arg0: i32) -> (i32, i32, i32) {
    %c0_i32 = arith.constant 0 : i32
    %c0_i32_0 = arith.constant 0 : i32
    %c0_i32_1 = arith.constant 0 : i32
    %c0_i32_2 = arith.constant 0 : i32
    return %c0_i32, %c0_i32_0, %c0_i32_1 : i32, i32, i32
  }
  func.func @transform_20(%arg0: i32) -> (i32, i32, i32) {
    %c0_i32 = arith.constant 0 : i32
    %c0_i32_0 = arith.constant 0 : i32
    %c0_i32_1 = arith.constant 0 : i32
    %c0_i32_2 = arith.constant 0 : i32
    return %c0_i32, %c0_i32_0, %c0_i32_1 : i32, i32, i32
  }
  func.func @transform_21(%arg0: i32) -> (i32, i32) {
    %c0_i32 = arith.constant 0 : i32
    %c0_i32_0 = arith.constant 0 : i32
    return %arg0, %c0_i32 : i32, i32
  }
  func.func @transform_22(%arg0: i32) -> (i32, i32) {
    %c0_i32 = arith.constant 0 : i32
    %c0_i32_0 = arith.constant 0 : i32
    return %arg0, %c0_i32 : i32, i32
  }
}

</mosaic_0001>

<llo_original>
// kernel: tpu_custom_call.1
$region0: #{tpu_custom_call.1}
  #allocation0 [shape = 'u32[]', space=smem, size = 0x4, offset = 0x4, fixed_abs, tag = 'smem constant byte address 0x4 - core index']
  #allocation1 [shape = 'u32[144,128]{1,0:T(1,128)}', space=vmem, size = 0x12000, scoped, tag = 'internal scratch']
  %s0 = inlined_call_operand.hbm [shape: f32[24,768], index: 0, kind: input, shape index: {}]
  %s1 = inlined_call_operand.hbm [shape: bf16[768,512], index: 1, kind: input, shape index: {}]
  %s2 = inlined_call_operand.hbm [shape: f32[1,512], index: 2, kind: input, shape index: {}]
  %s3 = inlined_call_operand.vmem [shape: bf16[512,256], index: 3, kind: input, shape index: {}]
  %s4 = inlined_call_operand.hbm [shape: f32[1,256], index: 4, kind: input, shape index: {}]
  %s5 = inlined_call_operand.hbm [shape: bf16[256,128], index: 5, kind: input, shape index: {}]
  %s6 = inlined_call_operand.hbm [shape: f32[1,128], index: 6, kind: input, shape index: {}]
  %s7 = inlined_call_operand.vmem [shape: bf16[128,32], index: 7, kind: input, shape index: {}]
  %s8 = inlined_call_operand.hbm [shape: f32[1,32], index: 8, kind: input, shape index: {}]
  %s9 = inlined_call_operand.vmem [shape: bf16[32,128], index: 9, kind: input, shape index: {}]
  %s10 = inlined_call_operand.hbm [shape: f32[1,128], index: 10, kind: input, shape index: {}]
  %s11 = inlined_call_operand.hbm [shape: bf16[128,256], index: 11, kind: input, shape index: {}]
  %s12 = inlined_call_operand.vmem [shape: f32[1,256], index: 12, kind: input, shape index: {}]
  %s13 = inlined_call_operand.vmem [shape: bf16[256,512], index: 13, kind: input, shape index: {}]
  %s14 = inlined_call_operand.vmem [shape: f32[1,512], index: 14, kind: input, shape index: {}]
  %s15 = inlined_call_operand.hbm [shape: bf16[512,768], index: 15, kind: input, shape index: {}]
  %s16 = inlined_call_operand.vmem [shape: f32[1,768], index: 16, kind: input, shape index: {}]
  %s17 = inlined_call_operand.vmem [shape: bf16[3,256,32], index: 17, kind: input, shape index: {}]
  %s18 = inlined_call_operand.vmem [shape: bf16[3,256,32], index: 18, kind: input, shape index: {}]
  %s19 = inlined_call_operand.hbm [shape: bf16[3,32,256], index: 19, kind: input, shape index: {}]
  %s20 = inlined_call_operand.vmem [shape: f32[3,1,256], index: 20, kind: input, shape index: {}]
  %s21 = inlined_call_operand.hbm [shape: f32[24,768], index: 21, kind: output, shape index: {0}]
  %s22 = inlined_call_operand.hbm [shape: f32[24,128], index: 22, kind: output, shape index: {1}]
  %23 = xla_tuple %s21, %s22
  %s24 = sld [smem:[#allocation0]]
  $region169: #{tpu_custom_call.1} parent=0
    _
  %s26 = ssub.s32 1, %s24
  %s27 = scalar_select 0, %s26, %s24
  $region1: #{tpu_custom_call.1} parent=0
    #allocation2 [shape = 'u8[49152]{0}', space=vmem, size = 0xc000, scoped, tag = 'input window, operand 0']
    #allocation3 [shape = 's32[2]{0}', space=sflag, size = 0x8, scoped, tag = 'scoped memory for tpu_custom_call.1']
    #allocation4 [shape = 's32[2]{0}', space=sflag, size = 0x8, scoped, tag = 'scoped memory for tpu_custom_call.1']
    #allocation5 [shape = 'u8[786432]{0}', space=vmem, size = 0xc0000, scoped, tag = 'input window, operand 1, single buffered']
    #allocation6 [shape = 's32[1]{0}', space=sflag, size = 0x4, scoped, tag = 'scoped memory for tpu_custom_call.1']
    #allocation7 [shape = 'u8[2048]{0}', space=vmem, size = 0x800, scoped, tag = 'input window, operand 2, single buffered']
    #allocation8 [shape = 'u8[1024]{0}', space=vmem, size = 0x400, scoped, tag = 'input window, operand 4, single buffered']
    #allocation9 [shape = 's32[1]{0}', space=sflag, size = 0x4, scoped, tag = 'scoped memory for tpu_custom_call.1']
    #allocation10 [shape = 'u8[65536]{0}', space=vmem, size = 0x10000, scoped, tag = 'input window, operand 5, single buffered']
    #allocation11 [shape = 'u8[512]{0}', space=vmem, size = 0x400, scoped, tag = 'input window, operand 6, single buffered']
    #allocation12 [shape = 's32[1]{0}', space=sflag, size = 0x4, scoped, tag = 'scoped memory for tpu_custom_call.1']
    #allocation13 [shape = 'u8[512]{0}', space=vmem, size = 0x400, scoped, tag = 'input window, operand 8, single buffered']
    #allocation14 [shape = 'u8[512]{0}', space=vmem, size = 0x400, scoped, tag = 'input window, operand 10, single buffered']
    #allocation15 [shape = 's32[1]{0}', space=sflag, size = 0x4, scoped, tag = 'scoped memory for tpu_custom_call.1']
    #allocation16 [shape = 'u8[65536]{0}', space=vmem, size = 0x10000, scoped, tag = 'input window, operand 11, single buffered']
    #allocation17 [shape = 'u8[786432]{0}', space=vmem, size = 0xc0000, scoped, tag = 'input window, operand 15, single buffered']
    #allocation18 [shape = 's32[1]{0}', space=sflag, size = 0x4, scoped, tag = 'scoped memory for tpu_custom_call.1']
    #allocation19 [shape = 'u8[49152]{0}', space=vmem, size = 0xc000, scoped, tag = 'input window, operand 19, single buffered']
    #allocation20 [shape = 'u8[49152]{0}', space=vmem, size = 0xc000, scoped, tag = 'output window, operand 0']
    #allocation21 [shape = 'u8[8192]{0}', space=vmem, size = 0x2000, scoped, tag = 'output window, operand 1']
    #allocation22 [shape = 's32[2]{0}', space=sflag, size = 0x8, scoped, tag = 'scoped memory for tpu_custom_call.1']
    %28 = vsyncpa [#allocation3], 0
    %s29 = scalar_lea.sflag [#allocation3], 1
    %30 = vsyncpa %s29, 0
    %31 = vsyncpa [#allocation6], 0
    %32 = vsyncpa [#allocation9], 0
    %33 = vsyncpa [#allocation12], 0
    %34 = vsyncpa [#allocation15], 0
    %35 = vsyncpa [#allocation18], 0
    %36 = vsyncpa [#allocation4], 0
    %s37 = scalar_lea.sflag [#allocation4], 1
    %38 = vsyncpa %s37, 0
    %39 = vsyncpa [#allocation22], 0
    %s40 = scalar_lea.sflag [#allocation22], 1
    %41 = vsyncpa %s40, 0
    loop: start=0, step=1, limit=5
    $region2: #{tpu_custom_call.1} parent=1 // loop_pre_header
      _
    $region3: #{tpu_custom_call.1} parent=1 // loop_header
      %s43 = sphi 0, %s47
      %p44 = scmp.ge.s32.totalorder %s43, 5
      %s53 = sphi 0, %s55
      %s56 = sphi 0, %s53
      %s57 = sphi 0, %s56
      %s73 = sphi 0, %s57
      %s77 = sphi 0, %s77
      %s79 = sphi 0, %s77
      %s80 = sphi 0, %s79
      %s94 = sphi 0, %s80
      %s98 = sphi 0, %s98
      %s100 = sphi 0, %s98
      %s101 = sphi 0, %s100
      %s115 = sphi 0, %s101
      %s119 = sphi 0, %s119
      %s121 = sphi 0, %s119
      %s122 = sphi 0, %s121
      %s136 = sphi 0, %s122
      %s140 = sphi 0, %s140
      %s142 = sphi 0, %s140
      %s143 = sphi 0, %s142
      %s157 = sphi 0, %s143
      %s161 = sphi 0, %s161
      %s163 = sphi 0, %s161
      %s164 = sphi 0, %s163
      %s178 = sphi 0, %s164
      %s182 = sphi 0, %s182
      %s184 = sphi 0, %s182
      %s185 = sphi 0, %s184
      %s199 = sphi 0, %s185
      %s203 = sphi 0, %s203
      %s205 = sphi 0, %s203
      %s206 = sphi 0, %s205
      %s220 = sphi 0, %s206
      %s224 = sphi 0, %s224
      %s226 = sphi 0, %s224
      %s227 = sphi 0, %s226
      %s241 = sphi 0, %s227
      %s245 = sphi 0, %s245
      %s247 = sphi 0, %s245
      %s248 = sphi 0, %s247
      %s262 = sphi 0, %s248
      %s266 = sphi 0, %s266
      %s268 = sphi 0, %s266
      %s269 = sphi 0, %s268
      %s283 = sphi 0, %s269
      %s287 = sphi 0, %s287
      %s289 = sphi 0, %s287
      %s290 = sphi 0, %s289
      %s304 = sphi 0, %s290
      %s308 = sphi 0, %s308
      %s310 = sphi 0, %s308
      %s311 = sphi 0, %s310
      %s325 = sphi 0, %s311
      %s329 = sphi 0, %s329
      %s331 = sphi 0, %s329
      %s332 = sphi 0, %s331
      %s346 = sphi 0, %s332
      %s350 = sphi 0, %s350
      %s352 = sphi 0, %s350
      %s353 = sphi 0, %s352
      %s367 = sphi 0, %s353
      %s371 = sphi 0, %s371
      %s373 = sphi 0, %s371
      %s374 = sphi 0, %s373
      %s388 = sphi 0, %s374
      %s392 = sphi 0, %s392
      %s394 = sphi 0, %s392
      %s395 = sphi 0, %s394
      %s409 = sphi 0, %s395
      %s413 = sphi 0, %s413
      %s415 = sphi 0, %s413
      %s416 = sphi 0, %s415
      %s430 = sphi 0, %s416
      %s434 = sphi 0, %s434
      %s436 = sphi 0, %s434
      %s437 = sphi 0, %s436
      %s451 = sphi 0, %s437
      %s455 = sphi 0, %s455
      %s457 = sphi 0, %s455
      %s458 = sphi 0, %s457
      %s472 = sphi 0, %s458
      %s476 = sphi 0, %s476
      %s478 = sphi 0, %s476
      %s479 = sphi 0, %s478
      %s493 = sphi 0, %s479
      %s499 = sphi 0, %s501
      %s502 = sphi 0, %s499
      %s503 = sphi 0, %s502
      %s519 = sphi 0, %s503
      %s525 = sphi 0, %s527
      %s528 = sphi 0, %s525
      %s529 = sphi 0, %s528
      %s545 = sphi 0, %s529
    $region4: #{tpu_custom_call.1} parent=1 // loop_header_branch
      %46 = sbr.rel (%p44) target = $region8
    $region5: #{tpu_custom_call.1} parent=1 // loop_body
      %s48 = ssub.s32 %s43, 1
      %s49 = ssub.s32 %s43, 2
      %s50 = sadd.s32 %s43, 1
      %s51 = ssub.s32 %s43, %s50
      %p52 = scmp.eq.s32.totalorder %s51, 0
      %s54 = sadd.s32 %s53, 1
      %s55 = scalar_select %p52, %s53, %s54
      %p58 = pneg %p52
      %p59 = scmp.eq.s32.totalorder %s43, 2
      %p60 = por %p58, %p59
      %p61 = scmp.ne.s32.totalorder %s53, %s56
      %p62 = scmp.eq.s32.totalorder %s43, 0
      %p63 = por %p61, %p62
      %p64 = scmp.ne.s32.totalorder %s53, %s56
      %p65 = scmp.eq.s32.totalorder %s48, 2
      %p66 = por %p64, %p65
      %p67 = scmp.ne.s32.totalorder %s56, %s57
      %p68 = scmp.eq.s32.totalorder %s48, 0
      %p69 = por %p67, %p68
      %p70 = scmp.ne.s32.totalorder %s56, %s57
      %p71 = scmp.eq.s32.totalorder %s49, 2
      %p72 = por %p70, %p71
      %p74 = scmp.ne.s32.totalorder %s57, %s73
      %p75 = scmp.eq.s32.totalorder %s49, 0
      %p76 = por %p74, %p75
      %s78 = sadd.s32 %s77, 1
      %p81 = scmp.eq.s32.totalorder %s43, 2
      %p82 = scmp.ne.s32.totalorder %s77, %s79
      %p83 = scmp.eq.s32.totalorder %s43, 0
      %p84 = por %p82, %p83
      %p85 = scmp.ne.s32.totalorder %s77, %s79
      %p86 = scmp.eq.s32.totalorder %s48, 2
      %p87 = por %p85, %p86
      %p88 = scmp.ne.s32.totalorder %s79, %s80
      %p89 = scmp.eq.s32.totalorder %s48, 0
      %p90 = por %p88, %p89
      %p91 = scmp.ne.s32.totalorder %s79, %s80
      %p92 = scmp.eq.s32.totalorder %s49, 2
      %p93 = por %p91, %p92
      %p95 = scmp.ne.s32.totalorder %s80, %s94
      %p96 = scmp.eq.s32.totalorder %s49, 0
      %p97 = por %p95, %p96
      %s99 = sadd.s32 %s98, 1
      %p102 = scmp.eq.s32.totalorder %s43, 2
      %p103 = scmp.ne.s32.totalorder %s98, %s100
      %p104 = scmp.eq.s32.totalorder %s43, 0
      %p105 = por %p103, %p104
      %p106 = scmp.ne.s32.totalorder %s98, %s100
      %p107 = scmp.eq.s32.totalorder %s48, 2
      %p108 = por %p106, %p107
      %p109 = scmp.ne.s32.totalorder %s100, %s101
      %p110 = scmp.eq.s32.totalorder %s48, 0
      %p111 = por %p109, %p110
      %p112 = scmp.ne.s32.totalorder %s100, %s101
      %p113 = scmp.eq.s32.totalorder %s49, 2
      %p114 = por %p112, %p113
      %p116 = scmp.ne.s32.totalorder %s101, %s115
      %p117 = scmp.eq.s32.totalorder %s49, 0
      %p118 = por %p116, %p117
      %s120 = sadd.s32 %s119, 1
      %p123 = scmp.eq.s32.totalorder %s43, 2
      %p124 = scmp.ne.s32.totalorder %s119, %s121
      %p125 = scmp.eq.s32.totalorder %s43, 0
      %p126 = por %p124, %p125
      %p127 = scmp.ne.s32.totalorder %s119, %s121
      %p128 = scmp.eq.s32.totalorder %s48, 2
      %p129 = por %p127, %p128
      %p130 = scmp.ne.s32.totalorder %s121, %s122
      %p131 = scmp.eq.s32.totalorder %s48, 0
      %p132 = por %p130, %p131
      %p133 = scmp.ne.s32.totalorder %s121, %s122
      %p134 = scmp.eq.s32.totalorder %s49, 2
      %p135 = por %p133, %p134
      %p137 = scmp.ne.s32.totalorder %s122, %s136
      %p138 = scmp.eq.s32.totalorder %s49, 0
      %p139 = por %p137, %p138
      %s141 = sadd.s32 %s140, 1
      %p144 = scmp.eq.s32.totalorder %s43, 2
      %p145 = scmp.ne.s32.totalorder %s140, %s142
      %p146 = scmp.eq.s32.totalorder %s43, 0
      %p147 = por %p145, %p146
      %p148 = scmp.ne.s32.totalorder %s140, %s142
      %p149 = scmp.eq.s32.totalorder %s48, 2
      %p150 = por %p148, %p149
      %p151 = scmp.ne.s32.totalorder %s142, %s143
      %p152 = scmp.eq.s32.totalorder %s48, 0
      %p153 = por %p151, %p152
      %p154 = scmp.ne.s32.totalorder %s142, %s143
      %p155 = scmp.eq.s32.totalorder %s49, 2
      %p156 = por %p154, %p155
      %p158 = scmp.ne.s32.totalorder %s143, %s157
      %p159 = scmp.eq.s32.totalorder %s49, 0
      %p160 = por %p158, %p159
      %s162 = sadd.s32 %s161, 1
      %p165 = scmp.eq.s32.totalorder %s43, 2
      %p166 = scmp.ne.s32.totalorder %s161, %s163
      %p167 = scmp.eq.s32.totalorder %s43, 0
      %p168 = por %p166, %p167
      %p169 = scmp.ne.s32.totalorder %s161, %s163
      %p170 = scmp.eq.s32.totalorder %s48, 2
      %p171 = por %p169, %p170
      %p172 = scmp.ne.s32.totalorder %s163, %s164
      %p173 = scmp.eq.s32.totalorder %s48, 0
      %p174 = por %p172, %p173
      %p175 = scmp.ne.s32.totalorder %s163, %s164
      %p176 = scmp.eq.s32.totalorder %s49, 2
      %p177 = por %p175, %p176
      %p179 = scmp.ne.s32.totalorder %s164, %s178
      %p180 = scmp.eq.s32.totalorder %s49, 0
      %p181 = por %p179, %p180
      %s183 = sadd.s32 %s182, 1
      %p186 = scmp.eq.s32.totalorder %s43, 2
      %p187 = scmp.ne.s32.totalorder %s182, %s184
      %p188 = scmp.eq.s32.totalorder %s43, 0
      %p189 = por %p187, %p188
      %p190 = scmp.ne.s32.totalorder %s182, %s184
      %p191 = scmp.eq.s32.totalorder %s48, 2
      %p192 = por %p190, %p191
      %p193 = scmp.ne.s32.totalorder %s184, %s185
      %p194 = scmp.eq.s32.totalorder %s48, 0
      %p195 = por %p193, %p194
      %p196 = scmp.ne.s32.totalorder %s184, %s185
      %p197 = scmp.eq.s32.totalorder %s49, 2
      %p198 = por %p196, %p197
      %p200 = scmp.ne.s32.totalorder %s185, %s199
      %p201 = scmp.eq.s32.totalorder %s49, 0
      %p202 = por %p200, %p201
      %s204 = sadd.s32 %s203, 1
      %p207 = scmp.eq.s32.totalorder %s43, 2
      %p208 = scmp.ne.s32.totalorder %s203, %s205
      %p209 = scmp.eq.s32.totalorder %s43, 0
      %p210 = por %p208, %p209
      %p211 = scmp.ne.s32.totalorder %s203, %s205
      %p212 = scmp.eq.s32.totalorder %s48, 2
      %p213 = por %p211, %p212
      %p214 = scmp.ne.s32.totalorder %s205, %s206
      %p215 = scmp.eq.s32.totalorder %s48, 0
      %p216 = por %p214, %p215
      %p217 = scmp.ne.s32.totalorder %s205, %s206
      %p218 = scmp.eq.s32.totalorder %s49, 2
      %p219 = por %p217, %p218
      %p221 = scmp.ne.s32.totalorder %s206, %s220
      %p222 = scmp.eq.s32.totalorder %s49, 0
      %p223 = por %p221, %p222
      %s225 = sadd.s32 %s224, 1
      %p228 = scmp.eq.s32.totalorder %s43, 2
      %p229 = scmp.ne.s32.totalorder %s224, %s226
      %p230 = scmp.eq.s32.totalorder %s43, 0
      %p231 = por %p229, %p230
      %p232 = scmp.ne.s32.totalorder %s224, %s226
      %p233 = scmp.eq.s32.totalorder %s48, 2
      %p234 = por %p232, %p233
      %p235 = scmp.ne.s32.totalorder %s226, %s227
      %p236 = scmp.eq.s32.totalorder %s48, 0
      %p237 = por %p235, %p236
      %p238 = scmp.ne.s32.totalorder %s226, %s227
      %p239 = scmp.eq.s32.totalorder %s49, 2
      %p240 = por %p238, %p239
      %p242 = scmp.ne.s32.totalorder %s227, %s241
      %p243 = scmp.eq.s32.totalorder %s49, 0
      %p244 = por %p242, %p243
      %s246 = sadd.s32 %s245, 1
      %p249 = scmp.eq.s32.totalorder %s43, 2
      %p250 = scmp.ne.s32.totalorder %s245, %s247
      %p251 = scmp.eq.s32.totalorder %s43, 0
      %p252 = por %p250, %p251
      %p253 = scmp.ne.s32.totalorder %s245, %s247
      %p254 = scmp.eq.s32.totalorder %s48, 2
      %p255 = por %p253, %p254
      %p256 = scmp.ne.s32.totalorder %s247, %s248
      %p257 = scmp.eq.s32.totalorder %s48, 0
      %p258 = por %p256, %p257
      %p259 = scmp.ne.s32.totalorder %s247, %s248
      %p260 = scmp.eq.s32.totalorder %s49, 2
      %p261 = por %p259, %p260
      %p263 = scmp.ne.s32.totalorder %s248, %s262
      %p264 = scmp.eq.s32.totalorder %s49, 0
      %p265 = por %p263, %p264
      %s267 = sadd.s32 %s266, 1
      %p270 = scmp.eq.s32.totalorder %s43, 2
      %p271 = scmp.ne.s32.totalorder %s266, %s268
      %p272 = scmp.eq.s32.totalorder %s43, 0
      %p273 = por %p271, %p272
      %p274 = scmp.ne.s32.totalorder %s266, %s268
      %p275 = scmp.eq.s32.totalorder %s48, 2
      %p276 = por %p274, %p275
      %p277 = scmp.ne.s32.totalorder %s268, %s269
      %p278 = scmp.eq.s32.totalorder %s48, 0
      %p279 = por %p277, %p278
      %p280 = scmp.ne.s32.totalorder %s268, %s269
      %p281 = scmp.eq.s32.totalorder %s49, 2
      %p282 = por %p280, %p281
      %p284 = scmp.ne.s32.totalorder %s269, %s283
      %p285 = scmp.eq.s32.totalorder %s49, 0
      %p286 = por %p284, %p285
      %s288 = sadd.s32 %s287, 1
      %p291 = scmp.eq.s32.totalorder %s43, 2
      %p292 = scmp.ne.s32.totalorder %s287, %s289
      %p293 = scmp.eq.s32.totalorder %s43, 0
      %p294 = por %p292, %p293
      %p295 = scmp.ne.s32.totalorder %s287, %s289
      %p296 = scmp.eq.s32.totalorder %s48, 2
      %p297 = por %p295, %p296
      %p298 = scmp.ne.s32.totalorder %s289, %s290
      %p299 = scmp.eq.s32.totalorder %s48, 0
      %p300 = por %p298, %p299
      %p301 = scmp.ne.s32.totalorder %s289, %s290
      %p302 = scmp.eq.s32.totalorder %s49, 2
      %p303 = por %p301, %p302
      %p305 = scmp.ne.s32.totalorder %s290, %s304
      %p306 = scmp.eq.s32.totalorder %s49, 0
      %p307 = por %p305, %p306
      %s309 = sadd.s32 %s308, 1
      %p312 = scmp.eq.s32.totalorder %s43, 2
      %p313 = scmp.ne.s32.totalorder %s308, %s310
      %p314 = scmp.eq.s32.totalorder %s43, 0
      %p315 = por %p313, %p314
      %p316 = scmp.ne.s32.totalorder %s308, %s310
      %p317 = scmp.eq.s32.totalorder %s48, 2
      %p318 = por %p316, %p317
      %p319 = scmp.ne.s32.totalorder %s310, %s311
      %p320 = scmp.eq.s32.totalorder %s48, 0
      %p321 = por %p319, %p320
      %p322 = scmp.ne.s32.totalorder %s310, %s311
      %p323 = scmp.eq.s32.totalorder %s49, 2
      %p324 = por %p322, %p323
      %p326 = scmp.ne.s32.totalorder %s311, %s325
      %p327 = scmp.eq.s32.totalorder %s49, 0
      %p328 = por %p326, %p327
      %s330 = sadd.s32 %s329, 1
      %p333 = scmp.eq.s32.totalorder %s43, 2
      %p334 = scmp.ne.s32.totalorder %s329, %s331
      %p335 = scmp.eq.s32.totalorder %s43, 0
      %p336 = por %p334, %p335
      %p337 = scmp.ne.s32.totalorder %s329, %s331
      %p338 = scmp.eq.s32.totalorder %s48, 2
      %p339 = por %p337, %p338
      %p340 = scmp.ne.s32.totalorder %s331, %s332
      %p341 = scmp.eq.s32.totalorder %s48, 0
      %p342 = por %p340, %p341
      %p343 = scmp.ne.s32.totalorder %s331, %s332
      %p344 = scmp.eq.s32.totalorder %s49, 2
      %p345 = por %p343, %p344
      %p347 = scmp.ne.s32.totalorder %s332, %s346
      %p348 = scmp.eq.s32.totalorder %s49, 0
      %p349 = por %p347, %p348
      %s351 = sadd.s32 %s350, 1
      %p354 = scmp.eq.s32.totalorder %s43, 2
      %p355 = scmp.ne.s32.totalorder %s350, %s352
      %p356 = scmp.eq.s32.totalorder %s43, 0
      %p357 = por %p355, %p356
      %p358 = scmp.ne.s32.totalorder %s350, %s352
      %p359 = scmp.eq.s32.totalorder %s48, 2
      %p360 = por %p358, %p359
      %p361 = scmp.ne.s32.totalorder %s352, %s353
      %p362 = scmp.eq.s32.totalorder %s48, 0
      %p363 = por %p361, %p362
      %p364 = scmp.ne.s32.totalorder %s352, %s353
      %p365 = scmp.eq.s32.totalorder %s49, 2
      %p366 = por %p364, %p365
      %p368 = scmp.ne.s32.totalorder %s353, %s367
      %p369 = scmp.eq.s32.totalorder %s49, 0
      %p370 = por %p368, %p369
      %s372 = sadd.s32 %s371, 1
      %p375 = scmp.eq.s32.totalorder %s43, 2
      %p376 = scmp.ne.s32.totalorder %s371, %s373
      %p377 = scmp.eq.s32.totalorder %s43, 0
      %p378 = por %p376, %p377
      %p379 = scmp.ne.s32.totalorder %s371, %s373
      %p380 = scmp.eq.s32.totalorder %s48, 2
      %p381 = por %p379, %p380
      %p382 = scmp.ne.s32.totalorder %s373, %s374
      %p383 = scmp.eq.s32.totalorder %s48, 0
      %p384 = por %p382, %p383
      %p385 = scmp.ne.s32.totalorder %s373, %s374
      %p386 = scmp.eq.s32.totalorder %s49, 2
      %p387 = por %p385, %p386
      %p389 = scmp.ne.s32.totalorder %s374, %s388
      %p390 = scmp.eq.s32.totalorder %s49, 0
      %p391 = por %p389, %p390
      %s393 = sadd.s32 %s392, 1
      %p396 = scmp.eq.s32.totalorder %s43, 2
      %p397 = scmp.ne.s32.totalorder %s392, %s394
      %p398 = scmp.eq.s32.totalorder %s43, 0
      %p399 = por %p397, %p398
      %p400 = scmp.ne.s32.totalorder %s392, %s394
      %p401 = scmp.eq.s32.totalorder %s48, 2
      %p402 = por %p400, %p401
      %p403 = scmp.ne.s32.totalorder %s394, %s395
      %p404 = scmp.eq.s32.totalorder %s48, 0
      %p405 = por %p403, %p404
      %p406 = scmp.ne.s32.totalorder %s394, %s395
      %p407 = scmp.eq.s32.totalorder %s49, 2
      %p408 = por %p406, %p407
      %p410 = scmp.ne.s32.totalorder %s395, %s409
      %p411 = scmp.eq.s32.totalorder %s49, 0
      %p412 = por %p410, %p411
      %s414 = sadd.s32 %s413, 1
      %p417 = scmp.eq.s32.totalorder %s43, 2
      %p418 = scmp.ne.s32.totalorder %s413, %s415
      %p419 = scmp.eq.s32.totalorder %s43, 0
      %p420 = por %p418, %p419
      %p421 = scmp.ne.s32.totalorder %s413, %s415
      %p422 = scmp.eq.s32.totalorder %s48, 2
      %p423 = por %p421, %p422
      %p424 = scmp.ne.s32.totalorder %s415, %s416
      %p425 = scmp.eq.s32.totalorder %s48, 0
      %p426 = por %p424, %p425
      %p427 = scmp.ne.s32.totalorder %s415, %s416
      %p428 = scmp.eq.s32.totalorder %s49, 2
      %p429 = por %p427, %p428
      %p431 = scmp.ne.s32.totalorder %s416, %s430
      %p432 = scmp.eq.s32.totalorder %s49, 0
      %p433 = por %p431, %p432
      %s435 = sadd.s32 %s434, 1
      %p438 = scmp.eq.s32.totalorder %s43, 2
      %p439 = scmp.ne.s32.totalorder %s434, %s436
      %p440 = scmp.eq.s32.totalorder %s43, 0
      %p441 = por %p439, %p440
      %p442 = scmp.ne.s32.totalorder %s434, %s436
      %p443 = scmp.eq.s32.totalorder %s48, 2
      %p444 = por %p442, %p443
      %p445 = scmp.ne.s32.totalorder %s436, %s437
      %p446 = scmp.eq.s32.totalorder %s48, 0
      %p447 = por %p445, %p446
      %p448 = scmp.ne.s32.totalorder %s436, %s437
      %p449 = scmp.eq.s32.totalorder %s49, 2
      %p450 = por %p448, %p449
      %p452 = scmp.ne.s32.totalorder %s437, %s451
      %p453 = scmp.eq.s32.totalorder %s49, 0
      %p454 = por %p452, %p453
      %s456 = sadd.s32 %s455, 1
      %p459 = scmp.eq.s32.totalorder %s43, 2
      %p460 = scmp.ne.s32.totalorder %s455, %s457
      %p461 = scmp.eq.s32.totalorder %s43, 0
      %p462 = por %p460, %p461
      %p463 = scmp.ne.s32.totalorder %s455, %s457
      %p464 = scmp.eq.s32.totalorder %s48, 2
      %p465 = por %p463, %p464
      %p466 = scmp.ne.s32.totalorder %s457, %s458
      %p467 = scmp.eq.s32.totalorder %s48, 0
      %p468 = por %p466, %p467
      %p469 = scmp.ne.s32.totalorder %s457, %s458
      %p470 = scmp.eq.s32.totalorder %s49, 2
      %p471 = por %p469, %p470
      %p473 = scmp.ne.s32.totalorder %s458, %s472
      %p474 = scmp.eq.s32.totalorder %s49, 0
      %p475 = por %p473, %p474
      %s477 = sadd.s32 %s476, 1
      %p480 = scmp.eq.s32.totalorder %s43, 2
      %p481 = scmp.ne.s32.totalorder %s476, %s478
      %p482 = scmp.eq.s32.totalorder %s43, 0
      %p483 = por %p481, %p482
      %p484 = scmp.ne.s32.totalorder %s476, %s478
      %p485 = scmp.eq.s32.totalorder %s48, 2
      %p486 = por %p484, %p485
      %p487 = scmp.ne.s32.totalorder %s478, %s479
      %p488 = scmp.eq.s32.totalorder %s48, 0
      %p489 = por %p487, %p488
      %p490 = scmp.ne.s32.totalorder %s478, %s479
      %p491 = scmp.eq.s32.totalorder %s49, 2
      %p492 = por %p490, %p491
      %p494 = scmp.ne.s32.totalorder %s479, %s493
      %p495 = scmp.eq.s32.totalorder %s49, 0
      %p496 = por %p494, %p495
      %s497 = ssub.s32 %s43, %s50
      %p498 = scmp.eq.s32.totalorder %s497, 0
      %s500 = sadd.s32 %s499, 1
      %s501 = scalar_select %p498, %s499, %s500
      %p504 = pneg %p498
      %p505 = scmp.eq.s32.totalorder %s43, 2
      %p506 = por %p504, %p505
      %p507 = scmp.ne.s32.totalorder %s499, %s502
      %p508 = scmp.eq.s32.totalorder %s43, 0
      %p509 = por %p507, %p508
      %p510 = scmp.ne.s32.totalorder %s499, %s502
      %p511 = scmp.eq.s32.totalorder %s48, 2
      %p512 = por %p510, %p511
      %p513 = scmp.ne.s32.totalorder %s502, %s503
      %p514 = scmp.eq.s32.totalorder %s48, 0
      %p515 = por %p513, %p514
      %p516 = scmp.ne.s32.totalorder %s502, %s503
      %p517 = scmp.eq.s32.totalorder %s49, 2
      %p518 = por %p516, %p517
      %p520 = scmp.ne.s32.totalorder %s503, %s519
      %p521 = scmp.eq.s32.totalorder %s49, 0
      %p522 = por %p520, %p521
      %s523 = ssub.s32 %s43, %s50
      %p524 = scmp.eq.s32.totalorder %s523, 0
      %s526 = sadd.s32 %s525, 1
      %s527 = scalar_select %p524, %s525, %s526
      %p530 = pneg %p524
      %p531 = scmp.eq.s32.totalorder %s43, 2
      %p532 = por %p530, %p531
      %p533 = scmp.ne.s32.totalorder %s525, %s528
      %p534 = scmp.eq.s32.totalorder %s43, 0
      %p535 = por %p533, %p534
      %p536 = scmp.ne.s32.totalorder %s525, %s528
      %p537 = scmp.eq.s32.totalorder %s48, 2
      %p538 = por %p536, %p537
      %p539 = scmp.ne.s32.totalorder %s528, %s529
      %p540 = scmp.eq.s32.totalorder %s48, 0
      %p541 = por %p539, %p540
      %p542 = scmp.ne.s32.totalorder %s528, %s529
      %p543 = scmp.eq.s32.totalorder %s49, 2
      %p544 = por %p542, %p543
      %p546 = scmp.ne.s32.totalorder %s529, %s545
      %p547 = scmp.eq.s32.totalorder %s49, 0
      %p548 = por %p546, %p547
      %p549 = scmp.le.s32.totalorder 1, %s43
      %p550 = scmp.lt.s32.totalorder %s43, 4
      %p551 = pnand %p549, %p550
      %p552 = pneg %p551
      // Predicated region
      $region9: #{tpu_custom_call.1} parent=5 // pred_check
        _
      $region10: #{tpu_custom_call.1} parent=5 // pred_check_branch
        %554 = sbr.rel (%p551) target = $region12
      $region11: #{tpu_custom_call.1} parent=5 // pred_region
        %s555 = ssub.s32 %s43, 1
        // Predicated region
        $region13: #{tpu_custom_call.1} parent=11 // pred_check
          %p556 = pneg %p90
        $region14: #{tpu_custom_call.1} parent=11 // pred_check_branch
          %558 = sbr.rel (%p556) target = $region16
        $region15: #{tpu_custom_call.1} parent=11 // pred_region
          %s560 = ssub.s32 24576, 24576
          %561 = vsyncadd [#allocation6], %s560
          %s562 = sshll.u32 [#allocation5], 4
          %s563 = int_to_ptr.vmem [resolvable:$true] %s562
          %568 = dma.hbm_to_vmem [thread:$0]  %s1, 24576, %s563, [#allocation6], 256, 256, 16
        $region16: #{tpu_custom_call.1} parent=11 // pred_fallthru
          _
        // Predicated region
        $region17: #{tpu_custom_call.1} parent=11 // pred_check
          %p569 = pneg %p111
        $region18: #{tpu_custom_call.1} parent=11 // pred_check_branch
          %571 = sbr.rel (%p569) target = $region20
        $region19: #{tpu_custom_call.1} parent=11 // pred_region
          %s573 = ssub.s32 64, 64
          %574 = vsyncadd [#allocation6], %s573
          %s576 = sshll.u32 [#allocation7], 4
          %s577 = int_to_ptr.vmem [resolvable:$true] %s576
          %579 = dma.hbm_to_vmem [thread:$0]  %s2, 64, %s577, [#allocation6]
        $region20: #{tpu_custom_call.1} parent=11 // pred_fallthru
          _
        // Predicated region
        $region21: #{tpu_custom_call.1} parent=11 // pred_check
          %p580 = pneg %p132
        $region22: #{tpu_custom_call.1} parent=11 // pred_check_branch
          %582 = sbr.rel (%p580) target = $region24
        $region23: #{tpu_custom_call.1} parent=11 // pred_region
          _
        $region24: #{tpu_custom_call.1} parent=11 // pred_fallthru
          _
        // Predicated region
        $region25: #{tpu_custom_call.1} parent=11 // pred_check
          %p583 = pneg %p153
        $region26: #{tpu_custom_call.1} parent=11 // pred_check_branch
          %585 = sbr.rel (%p583) target = $region28
        $region27: #{tpu_custom_call.1} parent=11 // pred_region
          %s587 = ssub.s32 32, 32
          %588 = vsyncadd [#allocation9], %s587
          %s590 = sshll.u32 [#allocation8], 4
          %s591 = int_to_ptr.vmem [resolvable:$true] %s590
          %593 = dma.hbm_to_vmem [thread:$0]  %s4, 32, %s591, [#allocation9]
        $region28: #{tpu_custom_call.1} parent=11 // pred_fallthru
          _
        // Predicated region
        $region29: #{tpu_custom_call.1} parent=11 // pred_check
          %p594 = pneg %p174
        $region30: #{tpu_custom_call.1} parent=11 // pred_check_branch
          %596 = sbr.rel (%p594) target = $region32
        $region31: #{tpu_custom_call.1} parent=11 // pred_region
          %s598 = ssub.s32 2048, 2048
          %599 = vsyncadd [#allocation9], %s598
          %s600 = sshll.u32 [#allocation10], 4
          %s601 = int_to_ptr.vmem [resolvable:$true] %s600
          %606 = dma.hbm_to_vmem [thread:$0]  %s5, 2048, %s601, [#allocation9], 64, 64, 4
        $region32: #{tpu_custom_call.1} parent=11 // pred_fallthru
          _
        // Predicated region
        $region33: #{tpu_custom_call.1} parent=11 // pred_check
          %p607 = pneg %p195
        $region34: #{tpu_custom_call.1} parent=11 // pred_check_branch
          %609 = sbr.rel (%p607) target = $region36
        $region35: #{tpu_custom_call.1} parent=11 // pred_region
          %s611 = ssub.s32 16, 16
          %612 = vsyncadd [#allocation12], %s611
          %s614 = sshll.u32 [#allocation11], 4
          %s615 = int_to_ptr.vmem [resolvable:$true] %s614
          %617 = dma.hbm_to_vmem [thread:$0]  %s6, 16, %s615, [#allocation12]
        $region36: #{tpu_custom_call.1} parent=11 // pred_fallthru
          _
        // Predicated region
        $region37: #{tpu_custom_call.1} parent=11 // pred_check
          %p618 = pneg %p216
        $region38: #{tpu_custom_call.1} parent=11 // pred_check_branch
          %620 = sbr.rel (%p618) target = $region40
        $region39: #{tpu_custom_call.1} parent=11 // pred_region
          _
        $region40: #{tpu_custom_call.1} parent=11 // pred_fallthru
          _
        // Predicated region
        $region41: #{tpu_custom_call.1} parent=11 // pred_check
          %p621 = pneg %p237
        $region42: #{tpu_custom_call.1} parent=11 // pred_check_branch
          %623 = sbr.rel (%p621) target = $region44
        $region43: #{tpu_custom_call.1} parent=11 // pred_region
          %s625 = ssub.s32 16, 16
          %626 = vsyncadd [#allocation12], %s625
          %s628 = sshll.u32 [#allocation13], 4
          %s629 = int_to_ptr.vmem [resolvable:$true] %s628
          %631 = dma.hbm_to_vmem [thread:$0]  %s8, 16, %s629, [#allocation12]
        $region44: #{tpu_custom_call.1} parent=11 // pred_fallthru
          _
        // Predicated region
        $region45: #{tpu_custom_call.1} parent=11 // pred_check
          %p632 = pneg %p258
        $region46: #{tpu_custom_call.1} parent=11 // pred_check_branch
          %634 = sbr.rel (%p632) target = $region48
        $region47: #{tpu_custom_call.1} parent=11 // pred_region
          _
        $region48: #{tpu_custom_call.1} parent=11 // pred_fallthru
          _
        // Predicated region
        $region49: #{tpu_custom_call.1} parent=11 // pred_check
          %p635 = pneg %p279
        $region50: #{tpu_custom_call.1} parent=11 // pred_check_branch
          %637 = sbr.rel (%p635) target = $region52
        $region51: #{tpu_custom_call.1} parent=11 // pred_region
          %s639 = ssub.s32 16, 16
          %640 = vsyncadd [#allocation15], %s639
          %s642 = sshll.u32 [#allocation14], 4
          %s643 = int_to_ptr.vmem [resolvable:$true] %s642
          %645 = dma.hbm_to_vmem [thread:$0]  %s10, 16, %s643, [#allocation15]
        $region52: #{tpu_custom_call.1} parent=11 // pred_fallthru
          _
        // Predicated region
        $region53: #{tpu_custom_call.1} parent=11 // pred_check
          %p646 = pneg %p300
        $region54: #{tpu_custom_call.1} parent=11 // pred_check_branch
          %648 = sbr.rel (%p646) target = $region56
        $region55: #{tpu_custom_call.1} parent=11 // pred_region
          %s650 = ssub.s32 2048, 2048
          %651 = vsyncadd [#allocation15], %s650
          %s652 = sshll.u32 [#allocation16], 4
          %s653 = int_to_ptr.vmem [resolvable:$true] %s652
          %658 = dma.hbm_to_vmem [thread:$0]  %s11, 2048, %s653, [#allocation15], 128, 128, 8
        $region56: #{tpu_custom_call.1} parent=11 // pred_fallthru
          _
        // Predicated region
        $region57: #{tpu_custom_call.1} parent=11 // pred_check
          %p659 = pneg %p321
        $region58: #{tpu_custom_call.1} parent=11 // pred_check_branch
          %661 = sbr.rel (%p659) target = $region60
        $region59: #{tpu_custom_call.1} parent=11 // pred_region
          _
        $region60: #{tpu_custom_call.1} parent=11 // pred_fallthru
          _
        // Predicated region
        $region61: #{tpu_custom_call.1} parent=11 // pred_check
          %p662 = pneg %p342
        $region62: #{tpu_custom_call.1} parent=11 // pred_check_branch
          %664 = sbr.rel (%p662) target = $region64
        $region63: #{tpu_custom_call.1} parent=11 // pred_region
          _
        $region64: #{tpu_custom_call.1} parent=11 // pred_fallthru
          _
        // Predicated region
        $region65: #{tpu_custom_call.1} parent=11 // pred_check
          %p665 = pneg %p363
        $region66: #{tpu_custom_call.1} parent=11 // pred_check_branch
          %667 = sbr.rel (%p665) target = $region68
        $region67: #{tpu_custom_call.1} parent=11 // pred_region
          _
        $region68: #{tpu_custom_call.1} parent=11 // pred_fallthru
          _
        // Predicated region
        $region69: #{tpu_custom_call.1} parent=11 // pred_check
          %p668 = pneg %p384
        $region70: #{tpu_custom_call.1} parent=11 // pred_check_branch
          %670 = sbr.rel (%p668) target = $region72
        $region71: #{tpu_custom_call.1} parent=11 // pred_region
          %s672 = ssub.s32 24576, 24576
          %673 = vsyncadd [#allocation18], %s672
          %s674 = sshll.u32 [#allocation17], 4
          %s675 = int_to_ptr.vmem [resolvable:$true] %s674
          %680 = dma.hbm_to_vmem [thread:$0]  %s15, 24576, %s675, [#allocation18], 384, 384, 24
        $region72: #{tpu_custom_call.1} parent=11 // pred_fallthru
          _
        // Predicated region
        $region73: #{tpu_custom_call.1} parent=11 // pred_check
          %p681 = pneg %p405
        $region74: #{tpu_custom_call.1} parent=11 // pred_check_branch
          %683 = sbr.rel (%p681) target = $region76
        $region75: #{tpu_custom_call.1} parent=11 // pred_region
          _
        $region76: #{tpu_custom_call.1} parent=11 // pred_fallthru
          _
        // Predicated region
        $region77: #{tpu_custom_call.1} parent=11 // pred_check
          %p684 = pneg %p426
        $region78: #{tpu_custom_call.1} parent=11 // pred_check_branch
          %686 = sbr.rel (%p684) target = $region80
        $region79: #{tpu_custom_call.1} parent=11 // pred_region
          _
        $region80: #{tpu_custom_call.1} parent=11 // pred_fallthru
          _
        // Predicated region
        $region81: #{tpu_custom_call.1} parent=11 // pred_check
          %p687 = pneg %p447
        $region82: #{tpu_custom_call.1} parent=11 // pred_check_branch
          %689 = sbr.rel (%p687) target = $region84
        $region83: #{tpu_custom_call.1} parent=11 // pred_region
          _
        $region84: #{tpu_custom_call.1} parent=11 // pred_fallthru
          _
        // Predicated region
        $region85: #{tpu_custom_call.1} parent=11 // pred_check
          %p690 = pneg %p468
        $region86: #{tpu_custom_call.1} parent=11 // pred_check_branch
          %692 = sbr.rel (%p690) target = $region88
        $region87: #{tpu_custom_call.1} parent=11 // pred_region
          %s694 = ssub.s32 1536, 1536
          %695 = vsyncadd [#allocation18], %s694
          %s696 = sshll.u32 [#allocation19], 4
          %s697 = int_to_ptr.vmem [resolvable:$true] %s696
          %702 = dma.hbm_to_vmem [thread:$0]  %s19, 1536, %s697, [#allocation18], 128, 128, 8
        $region88: #{tpu_custom_call.1} parent=11 // pred_fallthru
          _
        // Predicated region
        $region89: #{tpu_custom_call.1} parent=11 // pred_check
          %p703 = pneg %p489
        $region90: #{tpu_custom_call.1} parent=11 // pred_check_branch
          %705 = sbr.rel (%p703) target = $region92
        $region91: #{tpu_custom_call.1} parent=11 // pred_region
          _
        $region92: #{tpu_custom_call.1} parent=11 // pred_fallthru
          _
      $region12: #{tpu_custom_call.1} parent=5 // pred_fallthru
        _
      %p706 = scmp.lt.s32.totalorder %s43, 3
      // Predicated region
      $region93: #{tpu_custom_call.1} parent=5 // pred_check
        %p707 = pneg %p706
      $region94: #{tpu_custom_call.1} parent=5 // pred_check_branch
        %709 = sbr.rel (%p707) target = $region96
      $region95: #{tpu_custom_call.1} parent=5 // pred_region
        // Predicated region
        $region97: #{tpu_custom_call.1} parent=95 // pred_check
          %p710 = pneg %p63
        $region98: #{tpu_custom_call.1} parent=95 // pred_check_branch
          %712 = sbr.rel (%p710) target = $region100
        $region99: #{tpu_custom_call.1} parent=95 // pred_region
          %s713 = sand.u32 %s53, 1
          %s714 = scalar_lea.sflag [#allocation3], %s713
          %s715 = sand.u32 %s53, 1
          %s716 = smul.addr %s715, 48
          %s717 = scalar_lea.vmem [#allocation2], %s716
          %s719 = ssub.s32 768, 768
          %720 = vsyncadd %s714, %s719
          %s721 = smul.addr %s43, 6
          %s722 = smul.addr %s721, 128
          %s723 = scalar_lea.hbm %s0, %s722
          %s725 = sshll.u32 %s717, 4
          %s726 = int_to_ptr.vmem [resolvable:$true] %s725
          %728 = dma.hbm_to_vmem [thread:$0]  %s723, 768, %s726, %s714
        $region100: #{tpu_custom_call.1} parent=95 // pred_fallthru
          _
      $region96: #{tpu_custom_call.1} parent=5 // pred_fallthru
        _
      %p729 = scmp.le.s32.totalorder 1, %s43
      %p730 = scmp.lt.s32.totalorder %s43, 4
      %p731 = pnand %p729, %p730
      %p732 = pneg %p731
      // Predicated region
      $region101: #{tpu_custom_call.1} parent=5 // pred_check
        _
      $region102: #{tpu_custom_call.1} parent=5 // pred_check_branch
        %734 = sbr.rel (%p731) target = $region104
      $region103: #{tpu_custom_call.1} parent=5 // pred_region
        %s735 = ssub.s32 %s43, 1
        %s736 = sand.u32 %s56, 1
        %s737 = scalar_lea.sflag [#allocation3], %s736
        %s738 = sand.u32 %s56, 1
        %s739 = smul.addr %s738, 48
        %s740 = scalar_lea.vmem [#allocation2], %s739
        // Predicated region
        $region105: #{tpu_custom_call.1} parent=103 // pred_check
          %p741 = pneg %p69
        $region106: #{tpu_custom_call.1} parent=103 // pred_check_branch
          %743 = sbr.rel (%p741) target = $region108
        $region107: #{tpu_custom_call.1} parent=103 // pred_region
          %744 = dma.done %s737, 768
        $region108: #{tpu_custom_call.1} parent=103 // pred_fallthru
          _
        // Predicated region
        $region109: #{tpu_custom_call.1} parent=103 // pred_check
          %p745 = pneg %p90
        $region110: #{tpu_custom_call.1} parent=103 // pred_check_branch
          %747 = sbr.rel (%p745) target = $region112
        $region111: #{tpu_custom_call.1} parent=103 // pred_region
          %748 = dma.done [#allocation6], 24576
        $region112: #{tpu_custom_call.1} parent=103 // pred_fallthru
          _
        // Predicated region
        $region113: #{tpu_custom_call.1} parent=103 // pred_check
          %p749 = pneg %p111
        $region114: #{tpu_custom_call.1} parent=103 // pred_check_branch
          %751 = sbr.rel (%p749) target = $region116
        $region115: #{tpu_custom_call.1} parent=103 // pred_region
          %752 = dma.done [#allocation6], 64
        $region116: #{tpu_custom_call.1} parent=103 // pred_fallthru
          _
        // Predicated region
        $region117: #{tpu_custom_call.1} parent=103 // pred_check
          %p753 = pneg %p153
        $region118: #{tpu_custom_call.1} parent=103 // pred_check_branch
          %755 = sbr.rel (%p753) target = $region120
        $region119: #{tpu_custom_call.1} parent=103 // pred_region
          %756 = dma.done [#allocation9], 32
        $region120: #{tpu_custom_call.1} parent=103 // pred_fallthru
          _
        // Predicated region
        $region121: #{tpu_custom_call.1} parent=103 // pred_check
          %p757 = pneg %p174
        $region122: #{tpu_custom_call.1} parent=103 // pred_check_branch
          %759 = sbr.rel (%p757) target = $region124
        $region123: #{tpu_custom_call.1} parent=103 // pred_region
          %760 = dma.done [#allocation9], 2048
        $region124: #{tpu_custom_call.1} parent=103 // pred_fallthru
          _
        // Predicated region
        $region125: #{tpu_custom_call.1} parent=103 // pred_check
          %p761 = pneg %p195
        $region126: #{tpu_custom_call.1} parent=103 // pred_check_branch
          %763 = sbr.rel (%p761) target = $region128
        $region127: #{tpu_custom_call.1} parent=103 // pred_region
          %764 = dma.done [#allocation12], 16
        $region128: #{tpu_custom_call.1} parent=103 // pred_fallthru
          _
        // Predicated region
        $region129: #{tpu_custom_call.1} parent=103 // pred_check
          %p765 = pneg %p237
        $region130: #{tpu_custom_call.1} parent=103 // pred_check_branch
          %767 = sbr.rel (%p765) target = $region132
        $region131: #{tpu_custom_call.1} parent=103 // pred_region
          %768 = dma.done [#allocation12], 16
        $region132: #{tpu_custom_call.1} parent=103 // pred_fallthru
          _
        // Predicated region
        $region133: #{tpu_custom_call.1} parent=103 // pred_check
          %p769 = pneg %p279
        $region134: #{tpu_custom_call.1} parent=103 // pred_check_branch
          %771 = sbr.rel (%p769) target = $region136
        $region135: #{tpu_custom_call.1} parent=103 // pred_region
          %772 = dma.done [#allocation15], 16
        $region136: #{tpu_custom_call.1} parent=103 // pred_fallthru
          _
        // Predicated region
        $region137: #{tpu_custom_call.1} parent=103 // pred_check
          %p773 = pneg %p300
        $region138: #{tpu_custom_call.1} parent=103 // pred_check_branch
          %775 = sbr.rel (%p773) target = $region140
        $region139: #{tpu_custom_call.1} parent=103 // pred_region
          %776 = dma.done [#allocation15], 2048
        $region140: #{tpu_custom_call.1} parent=103 // pred_fallthru
          _
        // Predicated region
        $region141: #{tpu_custom_call.1} parent=103 // pred_check
          %p777 = pneg %p384
        $region142: #{tpu_custom_call.1} parent=103 // pred_check_branch
          %779 = sbr.rel (%p777) target = $region144
        $region143: #{tpu_custom_call.1} parent=103 // pred_region
          %780 = dma.done [#allocation18], 24576
        $region144: #{tpu_custom_call.1} parent=103 // pred_fallthru
          _
        // Predicated region
        $region145: #{tpu_custom_call.1} parent=103 // pred_check
          %p781 = pneg %p468
        $region146: #{tpu_custom_call.1} parent=103 // pred_check_branch
          %783 = sbr.rel (%p781) target = $region148
        $region147: #{tpu_custom_call.1} parent=103 // pred_region
          %784 = dma.done [#allocation18], 1536
        $region148: #{tpu_custom_call.1} parent=103 // pred_fallthru
          _
        %s785 = sand.u32 %s56, 1
        %s786 = scalar_lea.sflag [#allocation3], %s785
        %s787 = sand.u32 %s56, 1
        %s788 = smul.addr %s787, 48
        %s789 = scalar_lea.vmem [#allocation2], %s788
        %p790 = pneg %p69
        %p791 = pneg %p66
        %p792 = pneg %p90
        %p793 = pneg %p87
        %p794 = pneg %p111
        %p795 = pneg %p108
        %p796 = pneg %p132
        %p797 = pneg %p129
        %p798 = pneg %p153
        %p799 = pneg %p150
        %p800 = pneg %p174
        %p801 = pneg %p171
        %p802 = pneg %p195
        %p803 = pneg %p192
        %p804 = pneg %p216
        %p805 = pneg %p213
        %p806 = pneg %p237
        %p807 = pneg %p234
        %p808 = pneg %p258
        %p809 = pneg %p255
        %p810 = pneg %p279
        %p811 = pneg %p276
        %p812 = pneg %p300
        %p813 = pneg %p297
        %p814 = pneg %p321
        %p815 = pneg %p318
        %p816 = pneg %p342
        %p817 = pneg %p339
        %p818 = pneg %p363
        %p819 = pneg %p360
        %p820 = pneg %p384
        %p821 = pneg %p381
        %p822 = pneg %p405
        %p823 = pneg %p402
        %p824 = pneg %p426
        %p825 = pneg %p423
        %p826 = pneg %p447
        %p827 = pneg %p444
        %p828 = pneg %p468
        %p829 = pneg %p465
        %p830 = pneg %p489
        %p831 = pneg %p486
        %p832 = pneg %p515
        %p833 = pneg %p512
        %s834 = sand.u32 %s502, 1
        %s835 = scalar_lea.sflag [#allocation4], %s834
        %s836 = sand.u32 %s502, 1
        %s837 = smul.addr %s836, 48
        %s838 = scalar_lea.vmem [#allocation20], %s837
        %p839 = pneg %p541
        %p840 = pneg %p538
        %s841 = sand.u32 %s528, 1
        %s842 = scalar_lea.sflag [#allocation22], %s841
        %s843 = sand.u32 %s528, 1
        %s844 = smul.addr %s843, 8
        %s845 = scalar_lea.vmem [#allocation21], %s844
        %v847 = vld [vmem:[%s740] sm:$0xff]
        %v848 = vld [vmem:[%s740 + $0x8] sm:$0xff]
        %v849 = vld [vmem:[%s740 + $0x10] sm:$0xff]
        %v850 = vld [vmem:[%s740 + $0x18] sm:$0xff]
        %v851 = vld [vmem:[%s740 + $0x20] sm:$0xff]
        %v852 = vld [vmem:[%s740 + $0x28] sm:$0xff]
        %v853 = vpack.c.bf16 %v847, %v847
        %v854 = vpack.c.bf16 %v848, %v848
        %v855 = vpack.c.bf16 %v849, %v849
        %v856 = vpack.c.bf16 %v850, %v850
        %v857 = vpack.c.bf16 %v851, %v851
        %v858 = vpack.c.bf16 %v852, %v852
        %v859 = vld [vmem:[#allocation5] sm:$0xff]
        %v860 = vld [vmem:[#allocation5 + $0x8] sm:$0xff]
        %v861 = vld [vmem:[#allocation5 + $0x10] sm:$0xff]
        %v862 = vld [vmem:[#allocation5 + $0x18] sm:$0xff]
        %v863 = vld [vmem:[#allocation5 + $0x20] sm:$0xff]
        %v864 = vld [vmem:[#allocation5 + $0x28] sm:$0xff]
        %v865 = vld [vmem:[#allocation5 + $0x30] sm:$0xff]
        %v866 = vld [vmem:[#allocation5 + $0x38] sm:$0xff]
        %v867 = vld [vmem:[#allocation5 + $0x40] sm:$0xff]
        %v868 = vld [vmem:[#allocation5 + $0x48] sm:$0xff]
        %v869 = vld [vmem:[#allocation5 + $0x50] sm:$0xff]
        %v870 = vld [vmem:[#allocation5 + $0x58] sm:$0xff]
        %v871 = vld [vmem:[#allocation5 + $0x60] sm:$0xff]
        %v872 = vld [vmem:[#allocation5 + $0x68] sm:$0xff]
        %v873 = vld [vmem:[#allocation5 + $0x70] sm:$0xff]
        %v874 = vld [vmem:[#allocation5 + $0x78] sm:$0xff]
        %v875 = vld [vmem:[#allocation5 + $0x80] sm:$0xff]
        %v876 = vld [vmem:[#allocation5 + $0x88] sm:$0xff]
        %v877 = vld [vmem:[#allocation5 + $0x90] sm:$0xff]
        %v878 = vld [vmem:[#allocation5 + $0x98] sm:$0xff]
        %v879 = vld [vmem:[#allocation5 + $0xa0] sm:$0xff]
        %v880 = vld [vmem:[#allocation5 + $0xa8] sm:$0xff]
        %v881 = vld [vmem:[#allocation5 + $0xb0] sm:$0xff]
        %v882 = vld [vmem:[#allocation5 + $0xb8] sm:$0xff]
        %v883 = vld [vmem:[#allocation5 + $0xc0] sm:$0xff]
        %v884 = vld [vmem:[#allocation5 + $0xc8] sm:$0xff]
        %v885 = vld [vmem:[#allocation5 + $0xd0] sm:$0xff]
        %v886 = vld [vmem:[#allocation5 + $0xd8] sm:$0xff]
        %v887 = vld [vmem:[#allocation5 + $0xe0] sm:$0xff]
        %v888 = vld [vmem:[#allocation5 + $0xe8] sm:$0xff]
        %v889 = vld [vmem:[#allocation5 + $0xf0] sm:$0xff]
        %v890 = vld [vmem:[#allocation5 + $0xf8] sm:$0xff]
        %v891 = vld [vmem:[#allocation5 + $0x100] sm:$0xff]
        %v892 = vld [vmem:[#allocation5 + $0x108] sm:$0xff]
        %v893 = vld [vmem:[#allocation5 + $0x110] sm:$0xff]
        %v894 = vld [vmem:[#allocation5 + $0x118] sm:$0xff]
        %v895 = vld [vmem:[#allocation5 + $0x120] sm:$0xff]
        %v896 = vld [vmem:[#allocation5 + $0x128] sm:$0xff]
        %v897 = vld [vmem:[#allocation5 + $0x130] sm:$0xff]
        %v898 = vld [vmem:[#allocation5 + $0x138] sm:$0xff]
        %v899 = vld [vmem:[#allocation5 + $0x140] sm:$0xff]
        %v900 = vld [vmem:[#allocation5 + $0x148] sm:$0xff]
        %v901 = vld [vmem:[#allocation5 + $0x150] sm:$0xff]
        %v902 = vld [vmem:[#allocation5 + $0x158] sm:$0xff]
        %v903 = vld [vmem:[#allocation5 + $0x160] sm:$0xff]
        %v904 = vld [vmem:[#allocation5 + $0x168] sm:$0xff]
        %v905 = vld [vmem:[#allocation5 + $0x170] sm:$0xff]
        %v906 = vld [vmem:[#allocation5 + $0x178] sm:$0xff]
        %v907 = vld [vmem:[#allocation5 + $0x180] sm:$0xff]
        %v908 = vld [vmem:[#allocation5 + $0x188] sm:$0xff]
        %v909 = vld [vmem:[#allocation5 + $0x190] sm:$0xff]
        %v910 = vld [vmem:[#allocation5 + $0x198] sm:$0xff]
        %v911 = vld [vmem:[#allocation5 + $0x1a0] sm:$0xff]
        %v912 = vld [vmem:[#allocation5 + $0x1a8] sm:$0xff]
        %v913 = vld [vmem:[#allocation5 + $0x1b0] sm:$0xff]
        %v914 = vld [vmem:[#allocation5 + $0x1b8] sm:$0xff]
        %v915 = vld [vmem:[#allocation5 + $0x1c0] sm:$0xff]
        %v916 = vld [vmem:[#allocation5 + $0x1c8] sm:$0xff]
        %v917 = vld [vmem:[#allocation5 + $0x1d0] sm:$0xff]
        %v918 = vld [vmem:[#allocation5 + $0x1d8] sm:$0xff]
        %v919 = vld [vmem:[#allocation5 + $0x1e0] sm:$0xff]
        %v920 = vld [vmem:[#allocation5 + $0x1e8] sm:$0xff]
        %v921 = vld [vmem:[#allocation5 + $0x1f0] sm:$0xff]
        %v922 = vld [vmem:[#allocation5 + $0x1f8] sm:$0xff]
        %v923 = vld [vmem:[#allocation5 + $0x200] sm:$0xff]
        %v924 = vld [vmem:[#allocation5 + $0x208] sm:$0xff]
        %v925 = vld [vmem:[#allocation5 + $0x210] sm:$0xff]
        %v926 = vld [vmem:[#allocation5 + $0x218] sm:$0xff]
        %v927 = vld [vmem:[#allocation5 + $0x220] sm:$0xff]
        %v928 = vld [vmem:[#allocation5 + $0x228] sm:$0xff]
        %v929 = vld [vmem:[#allocation5 + $0x230] sm:$0xff]
        %v930 = vld [vmem:[#allocation5 + $0x238] sm:$0xff]
        %v931 = vld [vmem:[#allocation5 + $0x240] sm:$0xff]
        %v932 = vld [vmem:[#allocation5 + $0x248] sm:$0xff]
        %v933 = vld [vmem:[#allocation5 + $0x250] sm:$0xff]
        %v934 = vld [vmem:[#allocation5 + $0x258] sm:$0xff]
        %v935 = vld [vmem:[#allocation5 + $0x260] sm:$0xff]
        %v936 = vld [vmem:[#allocation5 + $0x268] sm:$0xff]
        %v937 = vld [vmem:[#allocation5 + $0x270] sm:$0xff]
        %v938 = vld [vmem:[#allocation5 + $0x278] sm:$0xff]
        %v939 = vld [vmem:[#allocation5 + $0x280] sm:$0xff]
        %v940 = vld [vmem:[#allocation5 + $0x288] sm:$0xff]
        %v941 = vld [vmem:[#allocation5 + $0x290] sm:$0xff]
        %v942 = vld [vmem:[#allocation5 + $0x298] sm:$0xff]
        %v943 = vld [vmem:[#allocation5 + $0x2a0] sm:$0xff]
        %v944 = vld [vmem:[#allocation5 + $0x2a8] sm:$0xff]
        %v945 = vld [vmem:[#allocation5 + $0x2b0] sm:$0xff]
        %v946 = vld [vmem:[#allocation5 + $0x2b8] sm:$0xff]
        %v947 = vld [vmem:[#allocation5 + $0x2c0] sm:$0xff]
        %v948 = vld [vmem:[#allocation5 + $0x2c8] sm:$0xff]
        %v949 = vld [vmem:[#allocation5 + $0x2d0] sm:$0xff]
        %v950 = vld [vmem:[#allocation5 + $0x2d8] sm:$0xff]
        %v951 = vld [vmem:[#allocation5 + $0x2e0] sm:$0xff]
        %v952 = vld [vmem:[#allocation5 + $0x2e8] sm:$0xff]
        %v953 = vld [vmem:[#allocation5 + $0x2f0] sm:$0xff]
        %v954 = vld [vmem:[#allocation5 + $0x2f8] sm:$0xff]
        %v955 = vld [vmem:[#allocation5 + $0x300] sm:$0xff]
        %v956 = vld [vmem:[#allocation5 + $0x308] sm:$0xff]
        %v957 = vld [vmem:[#allocation5 + $0x310] sm:$0xff]
        %v958 = vld [vmem:[#allocation5 + $0x318] sm:$0xff]
        %v959 = vld [vmem:[#allocation5 + $0x320] sm:$0xff]
        %v960 = vld [vmem:[#allocation5 + $0x328] sm:$0xff]
        %v961 = vld [vmem:[#allocation5 + $0x330] sm:$0xff]
        %v962 = vld [vmem:[#allocation5 + $0x338] sm:$0xff]
        %v963 = vld [vmem:[#allocation5 + $0x340] sm:$0xff]
        %v964 = vld [vmem:[#allocation5 + $0x348] sm:$0xff]
        %v965 = vld [vmem:[#allocation5 + $0x350] sm:$0xff]
        %v966 = vld [vmem:[#allocation5 + $0x358] sm:$0xff]
        %v967 = vld [vmem:[#allocation5 + $0x360] sm:$0xff]
        %v968 = vld [vmem:[#allocation5 + $0x368] sm:$0xff]
        %v969 = vld [vmem:[#allocation5 + $0x370] sm:$0xff]
        %v970 = vld [vmem:[#allocation5 + $0x378] sm:$0xff]
        %v971 = vld [vmem:[#allocation5 + $0x380] sm:$0xff]
        %v972 = vld [vmem:[#allocation5 + $0x388] sm:$0xff]
        %v973 = vld [vmem:[#allocation5 + $0x390] sm:$0xff]
        %v974 = vld [vmem:[#allocation5 + $0x398] sm:$0xff]
        %v975 = vld [vmem:[#allocation5 + $0x3a0] sm:$0xff]
        %v976 = vld [vmem:[#allocation5 + $0x3a8] sm:$0xff]
        %v977 = vld [vmem:[#allocation5 + $0x3b0] sm:$0xff]
        %v978 = vld [vmem:[#allocation5 + $0x3b8] sm:$0xff]
        %v979 = vld [vmem:[#allocation5 + $0x3c0] sm:$0xff]
        %v980 = vld [vmem:[#allocation5 + $0x3c8] sm:$0xff]
        %v981 = vld [vmem:[#allocation5 + $0x3d0] sm:$0xff]
        %v982 = vld [vmem:[#allocation5 + $0x3d8] sm:$0xff]
        %v983 = vld [vmem:[#allocation5 + $0x3e0] sm:$0xff]
        %v984 = vld [vmem:[#allocation5 + $0x3e8] sm:$0xff]
        %v985 = vld [vmem:[#allocation5 + $0x3f0] sm:$0xff]
        %v986 = vld [vmem:[#allocation5 + $0x3f8] sm:$0xff]
        %v987 = vld [vmem:[#allocation5 + $0x400] sm:$0xff]
        %v988 = vld [vmem:[#allocation5 + $0x408] sm:$0xff]
        %v989 = vld [vmem:[#allocation5 + $0x410] sm:$0xff]
        %v990 = vld [vmem:[#allocation5 + $0x418] sm:$0xff]
        %v991 = vld [vmem:[#allocation5 + $0x420] sm:$0xff]
        %v992 = vld [vmem:[#allocation5 + $0x428] sm:$0xff]
        %v993 = vld [vmem:[#allocation5 + $0x430] sm:$0xff]
        %v994 = vld [vmem:[#allocation5 + $0x438] sm:$0xff]
        %v995 = vld [vmem:[#allocation5 + $0x440] sm:$0xff]
        %v996 = vld [vmem:[#allocation5 + $0x448] sm:$0xff]
        %v997 = vld [vmem:[#allocation5 + $0x450] sm:$0xff]
        %v998 = vld [vmem:[#allocation5 + $0x458] sm:$0xff]
        %v999 = vld [vmem:[#allocation5 + $0x460] sm:$0xff]
        %v1000 = vld [vmem:[#allocation5 + $0x468] sm:$0xff]
        %v1001 = vld [vmem:[#allocation5 + $0x470] sm:$0xff]
        %v1002 = vld [vmem:[#allocation5 + $0x478] sm:$0xff]
        %v1003 = vld [vmem:[#allocation5 + $0x480] sm:$0xff]
        %v1004 = vld [vmem:[#allocation5 + $0x488] sm:$0xff]
        %v1005 = vld [vmem:[#allocation5 + $0x490] sm:$0xff]
        %v1006 = vld [vmem:[#allocation5 + $0x498] sm:$0xff]
        %v1007 = vld [vmem:[#allocation5 + $0x4a0] sm:$0xff]
        %v1008 = vld [vmem:[#allocation5 + $0x4a8] sm:$0xff]
        %v1009 = vld [vmem:[#allocation5 + $0x4b0] sm:$0xff]
        %v1010 = vld [vmem:[#allocation5 + $0x4b8] sm:$0xff]
        %v1011 = vld [vmem:[#allocation5 + $0x4c0] sm:$0xff]
        %v1012 = vld [vmem:[#allocation5 + $0x4c8] sm:$0xff]
        %v1013 = vld [vmem:[#allocation5 + $0x4d0] sm:$0xff]
        %v1014 = vld [vmem:[#allocation5 + $0x4d8] sm:$0xff]
        %v1015 = vld [vmem:[#allocation5 + $0x4e0] sm:$0xff]
        %v1016 = vld [vmem:[#allocation5 + $0x4e8] sm:$0xff]
        %v1017 = vld [vmem:[#allocation5 + $0x4f0] sm:$0xff]
        %v1018 = vld [vmem:[#allocation5 + $0x4f8] sm:$0xff]
        %v1019 = vld [vmem:[#allocation5 + $0x500] sm:$0xff]
        %v1020 = vld [vmem:[#allocation5 + $0x508] sm:$0xff]
        %v1021 = vld [vmem:[#allocation5 + $0x510] sm:$0xff]
        %v1022 = vld [vmem:[#allocation5 + $0x518] sm:$0xff]
        %v1023 = vld [vmem:[#allocation5 + $0x520] sm:$0xff]
        %v1024 = vld [vmem:[#allocation5 + $0x528] sm:$0xff]
        %v1025 = vld [vmem:[#allocation5 + $0x530] sm:$0xff]
        %v1026 = vld [vmem:[#allocation5 + $0x538] sm:$0xff]
        %v1027 = vld [vmem:[#allocation5 + $0x540] sm:$0xff]
        %v1028 = vld [vmem:[#allocation5 + $0x548] sm:$0xff]
        %v1029 = vld [vmem:[#allocation5 + $0x550] sm:$0xff]
        %v1030 = vld [vmem:[#allocation5 + $0x558] sm:$0xff]
        %v1031 = vld [vmem:[#allocation5 + $0x560] sm:$0xff]
        %v1032 = vld [vmem:[#allocation5 + $0x568] sm:$0xff]
        %v1033 = vld [vmem:[#allocation5 + $0x570] sm:$0xff]
        %v1034 = vld [vmem:[#allocation5 + $0x578] sm:$0xff]
        %v1035 = vld [vmem:[#allocation5 + $0x580] sm:$0xff]
        %v1036 = vld [vmem:[#allocation5 + $0x588] sm:$0xff]
        %v1037 = vld [vmem:[#allocation5 + $0x590] sm:$0xff]
        %v1038 = vld [vmem:[#allocation5 + $0x598] sm:$0xff]
        %v1039 = vld [vmem:[#allocation5 + $0x5a0] sm:$0xff]
        %v1040 = vld [vmem:[#allocation5 + $0x5a8] sm:$0xff]
        %v1041 = vld [vmem:[#allocation5 + $0x5b0] sm:$0xff]
        %v1042 = vld [vmem:[#allocation5 + $0x5b8] sm:$0xff]
        %v1043 = vld [vmem:[#allocation5 + $0x5c0] sm:$0xff]
        %v1044 = vld [vmem:[#allocation5 + $0x5c8] sm:$0xff]
        %v1045 = vld [vmem:[#allocation5 + $0x5d0] sm:$0xff]
        %v1046 = vld [vmem:[#allocation5 + $0x5d8] sm:$0xff]
        %v1047 = vld [vmem:[#allocation5 + $0x5e0] sm:$0xff]
        %v1048 = vld [vmem:[#allocation5 + $0x5e8] sm:$0xff]
        %v1049 = vld [vmem:[#allocation5 + $0x5f0] sm:$0xff]
        %v1050 = vld [vmem:[#allocation5 + $0x5f8] sm:$0xff]
        %v1051 = vld [vmem:[#allocation7] sm:$0xf]
        %v1053 = vlaneseq
        %v1054 = vshrl.u32 %v1053, 7
        %v1055 = vsub.s32 0, %v1054
        %v1056 = vrot.slane %v1051, %v1055
        %v1057 = vlaneseq
        %v1058 = vshrl.u32 %v1057, 7
        %v1059 = vsub.s32 1, %v1058
        %v1060 = vrot.slane %v1051, %v1059
        %v1061 = vlaneseq
        %v1062 = vshrl.u32 %v1061, 7
        %v1063 = vsub.s32 2, %v1062
        %v1064 = vrot.slane %v1051, %v1063
        %v1065 = vlaneseq
        %v1066 = vshrl.u32 %v1065, 7
        %v1067 = vsub.s32 3, %v1066
        %v1068 = vrot.slane %v1051, %v1067
        %v1265 = vunpack.c.l.b16 %v859
        %v1266 = vunpack.c.h.b16 %v859
        %v1267 = vunpack.c.l.b16 %v860
        %v1268 = vunpack.c.h.b16 %v860
        %v1269 = vunpack.c.l.b16 %v861
        %v1270 = vunpack.c.h.b16 %v861
        %v1271 = vunpack.c.l.b16 %v862
        %v1272 = vunpack.c.h.b16 %v862
        %v1273 = vunpack.c.l.b16 %v863
        %v1274 = vunpack.c.h.b16 %v863
        %v1275 = vunpack.c.l.b16 %v864
        %v1276 = vunpack.c.h.b16 %v864
        %v1277 = vunpack.c.l.b16 %v865
        %v1278 = vunpack.c.h.b16 %v865
        %v1279 = vunpack.c.l.b16 %v866
        %v1280 = vunpack.c.h.b16 %v866
        %v1281 = vunpack.c.l.b16 %v867
        %v1282 = vunpack.c.h.b16 %v867
        %v1283 = vunpack.c.l.b16 %v868
        %v1284 = vunpack.c.h.b16 %v868
        %v1285 = vunpack.c.l.b16 %v869
        %v1286 = vunpack.c.h.b16 %v869
        %v1287 = vunpack.c.l.b16 %v870
        %v1288 = vunpack.c.h.b16 %v870
        %v1289 = vunpack.c.l.b16 %v871
        %v1290 = vunpack.c.h.b16 %v871
        %v1291 = vunpack.c.l.b16 %v872
        %v1292 = vunpack.c.h.b16 %v872
        %v1293 = vunpack.c.l.b16 %v873
        %v1294 = vunpack.c.h.b16 %v873
        %v1295 = vunpack.c.l.b16 %v874
        %v1296 = vunpack.c.h.b16 %v874
        %v1297 = vunpack.c.l.b16 %v875
        %v1298 = vunpack.c.h.b16 %v875
        %v1299 = vunpack.c.l.b16 %v876
        %v1300 = vunpack.c.h.b16 %v876
        %v1301 = vunpack.c.l.b16 %v877
        %v1302 = vunpack.c.h.b16 %v877
        %v1303 = vunpack.c.l.b16 %v878
        %v1304 = vunpack.c.h.b16 %v878
        %v1305 = vunpack.c.l.b16 %v879
        %v1306 = vunpack.c.h.b16 %v879
        %v1307 = vunpack.c.l.b16 %v880
        %v1308 = vunpack.c.h.b16 %v880
        %v1309 = vunpack.c.l.b16 %v881
        %v1310 = vunpack.c.h.b16 %v881
        %v1311 = vunpack.c.l.b16 %v882
        %v1312 = vunpack.c.h.b16 %v882
        %v1313 = vunpack.c.l.b16 %v883
        %v1314 = vunpack.c.h.b16 %v883
        %v1315 = vunpack.c.l.b16 %v884
        %v1316 = vunpack.c.h.b16 %v884
        %v1317 = vunpack.c.l.b16 %v885
        %v1318 = vunpack.c.h.b16 %v885
        %v1319 = vunpack.c.l.b16 %v886
        %v1320 = vunpack.c.h.b16 %v886
        %v1321 = vunpack.c.l.b16 %v887
        %v1322 = vunpack.c.h.b16 %v887
        %v1323 = vunpack.c.l.b16 %v888
        %v1324 = vunpack.c.h.b16 %v888
        %v1325 = vunpack.c.l.b16 %v889
        %v1326 = vunpack.c.h.b16 %v889
        %v1327 = vunpack.c.l.b16 %v890
        %v1328 = vunpack.c.h.b16 %v890
        %v1329 = vunpack.c.l.b16 %v891
        %v1330 = vunpack.c.h.b16 %v891
        %v1331 = vunpack.c.l.b16 %v892
        %v1332 = vunpack.c.h.b16 %v892
        %v1333 = vunpack.c.l.b16 %v893
        %v1334 = vunpack.c.h.b16 %v893
        %v1335 = vunpack.c.l.b16 %v894
        %v1336 = vunpack.c.h.b16 %v894
        %v1337 = vunpack.c.l.b16 %v895
        %v1338 = vunpack.c.h.b16 %v895
        %v1339 = vunpack.c.l.b16 %v896
        %v1340 = vunpack.c.h.b16 %v896
        %v1341 = vunpack.c.l.b16 %v897
        %v1342 = vunpack.c.h.b16 %v897
        %v1343 = vunpack.c.l.b16 %v898
        %v1344 = vunpack.c.h.b16 %v898
        %v1345 = vunpack.c.l.b16 %v899
        %v1346 = vunpack.c.h.b16 %v899
        %v1347 = vunpack.c.l.b16 %v900
        %v1348 = vunpack.c.h.b16 %v900
        %v1349 = vunpack.c.l.b16 %v901
        %v1350 = vunpack.c.h.b16 %v901
        %v1351 = vunpack.c.l.b16 %v902
        %v1352 = vunpack.c.h.b16 %v902
        %v1353 = vunpack.c.l.b16 %v903
        %v1354 = vunpack.c.h.b16 %v903
        %v1355 = vunpack.c.l.b16 %v904
        %v1356 = vunpack.c.h.b16 %v904
        %v1357 = vunpack.c.l.b16 %v905
        %v1358 = vunpack.c.h.b16 %v905
        %v1359 = vunpack.c.l.b16 %v906
        %v1360 = vunpack.c.h.b16 %v906
        %v1361 = vunpack.c.l.b16 %v907
        %v1362 = vunpack.c.h.b16 %v907
        %v1363 = vunpack.c.l.b16 %v908
        %v1364 = vunpack.c.h.b16 %v908
        %v1365 = vunpack.c.l.b16 %v909
        %v1366 = vunpack.c.h.b16 %v909
        %v1367 = vunpack.c.l.b16 %v910
        %v1368 = vunpack.c.h.b16 %v910
        %v1369 = vunpack.c.l.b16 %v911
        %v1370 = vunpack.c.h.b16 %v911
        %v1371 = vunpack.c.l.b16 %v912
        %v1372 = vunpack.c.h.b16 %v912
        %v1373 = vunpack.c.l.b16 %v913
        %v1374 = vunpack.c.h.b16 %v913
        %v1375 = vunpack.c.l.b16 %v914
        %v1376 = vunpack.c.h.b16 %v914
        %v1377 = vunpack.c.l.b16 %v915
        %v1378 = vunpack.c.h.b16 %v915
        %v1379 = vunpack.c.l.b16 %v916
        %v1380 = vunpack.c.h.b16 %v916
        %v1381 = vunpack.c.l.b16 %v917
        %v1382 = vunpack.c.h.b16 %v917
        %v1383 = vunpack.c.l.b16 %v918
        %v1384 = vunpack.c.h.b16 %v918
        %v1385 = vunpack.c.l.b16 %v919
        %v1386 = vunpack.c.h.b16 %v919
        %v1387 = vunpack.c.l.b16 %v920
        %v1388 = vunpack.c.h.b16 %v920
        %v1389 = vunpack.c.l.b16 %v921
        %v1390 = vunpack.c.h.b16 %v921
        %v1391 = vunpack.c.l.b16 %v922
        %v1392 = vunpack.c.h.b16 %v922
        %v1393 = vunpack.c.l.b16 %v923
        %v1394 = vunpack.c.h.b16 %v923
        %v1395 = vunpack.c.l.b16 %v924
        %v1396 = vunpack.c.h.b16 %v924
        %v1397 = vunpack.c.l.b16 %v925
        %v1398 = vunpack.c.h.b16 %v925
        %v1399 = vunpack.c.l.b16 %v926
        %v1400 = vunpack.c.h.b16 %v926
        %v1401 = vunpack.c.l.b16 %v927
        %v1402 = vunpack.c.h.b16 %v927
        %v1403 = vunpack.c.l.b16 %v928
        %v1404 = vunpack.c.h.b16 %v928
        %v1405 = vunpack.c.l.b16 %v929
        %v1406 = vunpack.c.h.b16 %v929
        %v1407 = vunpack.c.l.b16 %v930
        %v1408 = vunpack.c.h.b16 %v930
        %v1409 = vunpack.c.l.b16 %v931
        %v1410 = vunpack.c.h.b16 %v931
        %v1411 = vunpack.c.l.b16 %v932
        %v1412 = vunpack.c.h.b16 %v932
        %v1413 = vunpack.c.l.b16 %v933
        %v1414 = vunpack.c.h.b16 %v933
        %v1415 = vunpack.c.l.b16 %v934
        %v1416 = vunpack.c.h.b16 %v934
        %v1417 = vunpack.c.l.b16 %v935
        %v1418 = vunpack.c.h.b16 %v935
        %v1419 = vunpack.c.l.b16 %v936
        %v1420 = vunpack.c.h.b16 %v936
        %v1421 = vunpack.c.l.b16 %v937
        %v1422 = vunpack.c.h.b16 %v937
        %v1423 = vunpack.c.l.b16 %v938
        %v1424 = vunpack.c.h.b16 %v938
        %v1425 = vunpack.c.l.b16 %v939
        %v1426 = vunpack.c.h.b16 %v939
        %v1427 = vunpack.c.l.b16 %v940
        %v1428 = vunpack.c.h.b16 %v940
        %v1429 = vunpack.c.l.b16 %v941
        %v1430 = vunpack.c.h.b16 %v941
        %v1431 = vunpack.c.l.b16 %v942
        %v1432 = vunpack.c.h.b16 %v942
        %v1433 = vunpack.c.l.b16 %v943
        %v1434 = vunpack.c.h.b16 %v943
        %v1435 = vunpack.c.l.b16 %v944
        %v1436 = vunpack.c.h.b16 %v944
        %v1437 = vunpack.c.l.b16 %v945
        %v1438 = vunpack.c.h.b16 %v945
        %v1439 = vunpack.c.l.b16 %v946
        %v1440 = vunpack.c.h.b16 %v946
        %v1441 = vunpack.c.l.b16 %v947
        %v1442 = vunpack.c.h.b16 %v947
        %v1443 = vunpack.c.l.b16 %v948
        %v1444 = vunpack.c.h.b16 %v948
        %v1445 = vunpack.c.l.b16 %v949
        %v1446 = vunpack.c.h.b16 %v949
        %v1447 = vunpack.c.l.b16 %v950
        %v1448 = vunpack.c.h.b16 %v950
        %v1449 = vunpack.c.l.b16 %v951
        %v1450 = vunpack.c.h.b16 %v951
        %v1451 = vunpack.c.l.b16 %v952
        %v1452 = vunpack.c.h.b16 %v952
        %v1453 = vunpack.c.l.b16 %v953
        %v1454 = vunpack.c.h.b16 %v953
        %v1455 = vunpack.c.l.b16 %v954
        %v1456 = vunpack.c.h.b16 %v954
        %v1457 = vunpack.c.l.b16 %v955
        %v1458 = vunpack.c.h.b16 %v955
        %v1459 = vunpack.c.l.b16 %v956
        %v1460 = vunpack.c.h.b16 %v956
        %v1461 = vunpack.c.l.b16 %v957
        %v1462 = vunpack.c.h.b16 %v957
        %v1463 = vunpack.c.l.b16 %v958
        %v1464 = vunpack.c.h.b16 %v958
        %v1465 = vunpack.c.l.b16 %v959
        %v1466 = vunpack.c.h.b16 %v959
        %v1467 = vunpack.c.l.b16 %v960
        %v1468 = vunpack.c.h.b16 %v960
        %v1469 = vunpack.c.l.b16 %v961
        %v1470 = vunpack.c.h.b16 %v961
        %v1471 = vunpack.c.l.b16 %v962
        %v1472 = vunpack.c.h.b16 %v962
        %v1473 = vunpack.c.l.b16 %v963
        %v1474 = vunpack.c.h.b16 %v963
        %v1475 = vunpack.c.l.b16 %v964
        %v1476 = vunpack.c.h.b16 %v964
        %v1477 = vunpack.c.l.b16 %v965
        %v1478 = vunpack.c.h.b16 %v965
        %v1479 = vunpack.c.l.b16 %v966
        %v1480 = vunpack.c.h.b16 %v966
        %v1481 = vunpack.c.l.b16 %v967
        %v1482 = vunpack.c.h.b16 %v967
        %v1483 = vunpack.c.l.b16 %v968
        %v1484 = vunpack.c.h.b16 %v968
        %v1485 = vunpack.c.l.b16 %v969
        %v1486 = vunpack.c.h.b16 %v969
        %v1487 = vunpack.c.l.b16 %v970
        %v1488 = vunpack.c.h.b16 %v970
        %v1489 = vunpack.c.l.b16 %v971
        %v1490 = vunpack.c.h.b16 %v971
        %v1491 = vunpack.c.l.b16 %v972
        %v1492 = vunpack.c.h.b16 %v972
        %v1493 = vunpack.c.l.b16 %v973
        %v1494 = vunpack.c.h.b16 %v973
        %v1495 = vunpack.c.l.b16 %v974
        %v1496 = vunpack.c.h.b16 %v974
        %v1497 = vunpack.c.l.b16 %v975
        %v1498 = vunpack.c.h.b16 %v975
        %v1499 = vunpack.c.l.b16 %v976
        %v1500 = vunpack.c.h.b16 %v976
        %v1501 = vunpack.c.l.b16 %v977
        %v1502 = vunpack.c.h.b16 %v977
        %v1503 = vunpack.c.l.b16 %v978
        %v1504 = vunpack.c.h.b16 %v978
        %v1505 = vunpack.c.l.b16 %v979
        %v1506 = vunpack.c.h.b16 %v979
        %v1507 = vunpack.c.l.b16 %v980
        %v1508 = vunpack.c.h.b16 %v980
        %v1509 = vunpack.c.l.b16 %v981
        %v1510 = vunpack.c.h.b16 %v981
        %v1511 = vunpack.c.l.b16 %v982
        %v1512 = vunpack.c.h.b16 %v982
        %v1513 = vunpack.c.l.b16 %v983
        %v1514 = vunpack.c.h.b16 %v983
        %v1515 = vunpack.c.l.b16 %v984
        %v1516 = vunpack.c.h.b16 %v984
        %v1517 = vunpack.c.l.b16 %v985
        %v1518 = vunpack.c.h.b16 %v985
        %v1519 = vunpack.c.l.b16 %v986
        %v1520 = vunpack.c.h.b16 %v986
        %v1521 = vunpack.c.l.b16 %v987
        %v1522 = vunpack.c.h.b16 %v987
        %v1523 = vunpack.c.l.b16 %v988
        %v1524 = vunpack.c.h.b16 %v988
        %v1525 = vunpack.c.l.b16 %v989
        %v1526 = vunpack.c.h.b16 %v989
        %v1527 = vunpack.c.l.b16 %v990
        %v1528 = vunpack.c.h.b16 %v990
        %v1529 = vunpack.c.l.b16 %v991
        %v1530 = vunpack.c.h.b16 %v991
        %v1531 = vunpack.c.l.b16 %v992
        %v1532 = vunpack.c.h.b16 %v992
        %v1533 = vunpack.c.l.b16 %v993
        %v1534 = vunpack.c.h.b16 %v993
        %v1535 = vunpack.c.l.b16 %v994
        %v1536 = vunpack.c.h.b16 %v994
        %v1537 = vunpack.c.l.b16 %v995
        %v1538 = vunpack.c.h.b16 %v995
        %v1539 = vunpack.c.l.b16 %v996
        %v1540 = vunpack.c.h.b16 %v996
        %v1541 = vunpack.c.l.b16 %v997
        %v1542 = vunpack.c.h.b16 %v997
        %v1543 = vunpack.c.l.b16 %v998
        %v1544 = vunpack.c.h.b16 %v998
        %v1545 = vunpack.c.l.b16 %v999
        %v1546 = vunpack.c.h.b16 %v999
        %v1547 = vunpack.c.l.b16 %v1000
        %v1548 = vunpack.c.h.b16 %v1000
        %v1549 = vunpack.c.l.b16 %v1001
        %v1550 = vunpack.c.h.b16 %v1001
        %v1551 = vunpack.c.l.b16 %v1002
        %v1552 = vunpack.c.h.b16 %v1002
        %v1553 = vunpack.c.l.b16 %v1003
        %v1554 = vunpack.c.h.b16 %v1003
        %v1555 = vunpack.c.l.b16 %v1004
        %v1556 = vunpack.c.h.b16 %v1004
        %v1557 = vunpack.c.l.b16 %v1005
        %v1558 = vunpack.c.h.b16 %v1005
        %v1559 = vunpack.c.l.b16 %v1006
        %v1560 = vunpack.c.h.b16 %v1006
        %v1561 = vunpack.c.l.b16 %v1007
        %v1562 = vunpack.c.h.b16 %v1007
        %v1563 = vunpack.c.l.b16 %v1008
        %v1564 = vunpack.c.h.b16 %v1008
        %v1565 = vunpack.c.l.b16 %v1009
        %v1566 = vunpack.c.h.b16 %v1009
        %v1567 = vunpack.c.l.b16 %v1010
        %v1568 = vunpack.c.h.b16 %v1010
        %v1569 = vunpack.c.l.b16 %v1011
        %v1570 = vunpack.c.h.b16 %v1011
        %v1571 = vunpack.c.l.b16 %v1012
        %v1572 = vunpack.c.h.b16 %v1012
        %v1573 = vunpack.c.l.b16 %v1013
        %v1574 = vunpack.c.h.b16 %v1013
        %v1575 = vunpack.c.l.b16 %v1014
        %v1576 = vunpack.c.h.b16 %v1014
        %v1577 = vunpack.c.l.b16 %v1015
        %v1578 = vunpack.c.h.b16 %v1015
        %v1579 = vunpack.c.l.b16 %v1016
        %v1580 = vunpack.c.h.b16 %v1016
        %v1581 = vunpack.c.l.b16 %v1017
        %v1582 = vunpack.c.h.b16 %v1017
        %v1583 = vunpack.c.l.b16 %v1018
        %v1584 = vunpack.c.h.b16 %v1018
        %v1585 = vunpack.c.l.b16 %v1019
        %v1586 = vunpack.c.h.b16 %v1019
        %v1587 = vunpack.c.l.b16 %v1020
        %v1588 = vunpack.c.h.b16 %v1020
        %v1589 = vunpack.c.l.b16 %v1021
        %v1590 = vunpack.c.h.b16 %v1021
        %v1591 = vunpack.c.l.b16 %v1022
        %v1592 = vunpack.c.h.b16 %v1022
        %v1593 = vunpack.c.l.b16 %v1023
        %v1594 = vunpack.c.h.b16 %v1023
        %v1595 = vunpack.c.l.b16 %v1024
        %v1596 = vunpack.c.h.b16 %v1024
        %v1597 = vunpack.c.l.b16 %v1025
        %v1598 = vunpack.c.h.b16 %v1025
        %v1599 = vunpack.c.l.b16 %v1026
        %v1600 = vunpack.c.h.b16 %v1026
        %v1601 = vunpack.c.l.b16 %v1027
        %v1602 = vunpack.c.h.b16 %v1027
        %v1603 = vunpack.c.l.b16 %v1028
        %v1604 = vunpack.c.h.b16 %v1028
        %v1605 = vunpack.c.l.b16 %v1029
        %v1606 = vunpack.c.h.b16 %v1029
        %v1607 = vunpack.c.l.b16 %v1030
        %v1608 = vunpack.c.h.b16 %v1030
        %v1609 = vunpack.c.l.b16 %v1031
        %v1610 = vunpack.c.h.b16 %v1031
        %v1611 = vunpack.c.l.b16 %v1032
        %v1612 = vunpack.c.h.b16 %v1032
        %v1613 = vunpack.c.l.b16 %v1033
        %v1614 = vunpack.c.h.b16 %v1033
        %v1615 = vunpack.c.l.b16 %v1034
        %v1616 = vunpack.c.h.b16 %v1034
        %v1617 = vunpack.c.l.b16 %v1035
        %v1618 = vunpack.c.h.b16 %v1035
        %v1619 = vunpack.c.l.b16 %v1036
        %v1620 = vunpack.c.h.b16 %v1036
        %v1621 = vunpack.c.l.b16 %v1037
        %v1622 = vunpack.c.h.b16 %v1037
        %v1623 = vunpack.c.l.b16 %v1038
        %v1624 = vunpack.c.h.b16 %v1038
        %v1625 = vunpack.c.l.b16 %v1039
        %v1626 = vunpack.c.h.b16 %v1039
        %v1627 = vunpack.c.l.b16 %v1040
        %v1628 = vunpack.c.h.b16 %v1040
        %v1629 = vunpack.c.l.b16 %v1041
        %v1630 = vunpack.c.h.b16 %v1041
        %v1631 = vunpack.c.l.b16 %v1042
        %v1632 = vunpack.c.h.b16 %v1042
        %v1633 = vunpack.c.l.b16 %v1043
        %v1634 = vunpack.c.h.b16 %v1043
        %v1635 = vunpack.c.l.b16 %v1044
        %v1636 = vunpack.c.h.b16 %v1044
        %v1637 = vunpack.c.l.b16 %v1045
        %v1638 = vunpack.c.h.b16 %v1045
        %v1639 = vunpack.c.l.b16 %v1046
        %v1640 = vunpack.c.h.b16 %v1046
        %v1641 = vunpack.c.l.b16 %v1047
        %v1642 = vunpack.c.h.b16 %v1047
        %v1643 = vunpack.c.l.b16 %v1048
        %v1644 = vunpack.c.h.b16 %v1048
        %v1645 = vunpack.c.l.b16 %v1049
        %v1646 = vunpack.c.h.b16 %v1049
        %v1647 = vunpack.c.l.b16 %v1050
        %v1648 = vunpack.c.h.b16 %v1050
        %v1649 = vpack.c.b16 %v1269, %v1265
        %v1650 = vpack.c.b16 %v1270, %v1266
        %v1651 = vpack.c.b16 %v1271, %v1267
        %v1652 = vpack.c.b16 %v1272, %v1268
        %v1653 = vpack.c.b16 %v1277, %v1273
        %v1654 = vpack.c.b16 %v1278, %v1274
        %v1655 = vpack.c.b16 %v1279, %v1275
        %v1656 = vpack.c.b16 %v1280, %v1276
        %v1657 = vpack.c.b16 %v1285, %v1281
        %v1658 = vpack.c.b16 %v1286, %v1282
        %v1659 = vpack.c.b16 %v1287, %v1283
        %v1660 = vpack.c.b16 %v1288, %v1284
        %v1661 = vpack.c.b16 %v1293, %v1289
        %v1662 = vpack.c.b16 %v1294, %v1290
        %v1663 = vpack.c.b16 %v1295, %v1291
        %v1664 = vpack.c.b16 %v1296, %v1292
        %v1665 = vpack.c.b16 %v1301, %v1297
        %v1666 = vpack.c.b16 %v1302, %v1298
        %v1667 = vpack.c.b16 %v1303, %v1299
        %v1668 = vpack.c.b16 %v1304, %v1300
        %v1669 = vpack.c.b16 %v1309, %v1305
        %v1670 = vpack.c.b16 %v1310, %v1306
        %v1671 = vpack.c.b16 %v1311, %v1307
        %v1672 = vpack.c.b16 %v1312, %v1308
        %v1673 = vpack.c.b16 %v1317, %v1313
        %v1674 = vpack.c.b16 %v1318, %v1314
        %v1675 = vpack.c.b16 %v1319, %v1315
        %v1676 = vpack.c.b16 %v1320, %v1316
        %v1677 = vpack.c.b16 %v1325, %v1321
        %v1678 = vpack.c.b16 %v1326, %v1322
        %v1679 = vpack.c.b16 %v1327, %v1323
        %v1680 = vpack.c.b16 %v1328, %v1324
        %v1681 = vpack.c.b16 %v1333, %v1329
        %v1682 = vpack.c.b16 %v1334, %v1330
        %v1683 = vpack.c.b16 %v1335, %v1331
        %v1684 = vpack.c.b16 %v1336, %v1332
        %v1685 = vpack.c.b16 %v1341, %v1337
        %v1686 = vpack.c.b16 %v1342, %v1338
        %v1687 = vpack.c.b16 %v1343, %v1339
        %v1688 = vpack.c.b16 %v1344, %v1340
        %v1689 = vpack.c.b16 %v1349, %v1345
        %v1690 = vpack.c.b16 %v1350, %v1346
        %v1691 = vpack.c.b16 %v1351, %v1347
        %v1692 = vpack.c.b16 %v1352, %v1348
        %v1693 = vpack.c.b16 %v1357, %v1353
        %v1694 = vpack.c.b16 %v1358, %v1354
        %v1695 = vpack.c.b16 %v1359, %v1355
        %v1696 = vpack.c.b16 %v1360, %v1356
        %v1697 = vpack.c.b16 %v1365, %v1361
        %v1698 = vpack.c.b16 %v1366, %v1362
        %v1699 = vpack.c.b16 %v1367, %v1363
        %v1700 = vpack.c.b16 %v1368, %v1364
        %v1701 = vpack.c.b16 %v1373, %v1369
        %v1702 = vpack.c.b16 %v1374, %v1370
        %v1703 = vpack.c.b16 %v1375, %v1371
        %v1704 = vpack.c.b16 %v1376, %v1372
        %v1705 = vpack.c.b16 %v1381, %v1377
        %v1706 = vpack.c.b16 %v1382, %v1378
        %v1707 = vpack.c.b16 %v1383, %v1379
        %v1708 = vpack.c.b16 %v1384, %v1380
        %v1709 = vpack.c.b16 %v1389, %v1385
        %v1710 = vpack.c.b16 %v1390, %v1386
        %v1711 = vpack.c.b16 %v1391, %v1387
        %v1712 = vpack.c.b16 %v1392, %v1388
        %v1713 = vpack.c.b16 %v1397, %v1393
        %v1714 = vpack.c.b16 %v1398, %v1394
        %v1715 = vpack.c.b16 %v1399, %v1395
        %v1716 = vpack.c.b16 %v1400, %v1396
        %v1717 = vpack.c.b16 %v1405, %v1401
        %v1718 = vpack.c.b16 %v1406, %v1402
        %v1719 = vpack.c.b16 %v1407, %v1403
        %v1720 = vpack.c.b16 %v1408, %v1404
        %v1721 = vpack.c.b16 %v1413, %v1409
        %v1722 = vpack.c.b16 %v1414, %v1410
        %v1723 = vpack.c.b16 %v1415, %v1411
        %v1724 = vpack.c.b16 %v1416, %v1412
        %v1725 = vpack.c.b16 %v1421, %v1417
        %v1726 = vpack.c.b16 %v1422, %v1418
        %v1727 = vpack.c.b16 %v1423, %v1419
        %v1728 = vpack.c.b16 %v1424, %v1420
        %v1729 = vpack.c.b16 %v1429, %v1425
        %v1730 = vpack.c.b16 %v1430, %v1426
        %v1731 = vpack.c.b16 %v1431, %v1427
        %v1732 = vpack.c.b16 %v1432, %v1428
        %v1733 = vpack.c.b16 %v1437, %v1433
        %v1734 = vpack.c.b16 %v1438, %v1434
        %v1735 = vpack.c.b16 %v1439, %v1435
        %v1736 = vpack.c.b16 %v1440, %v1436
        %v1737 = vpack.c.b16 %v1445, %v1441
        %v1738 = vpack.c.b16 %v1446, %v1442
        %v1739 = vpack.c.b16 %v1447, %v1443
        %v1740 = vpack.c.b16 %v1448, %v1444
        %v1741 = vpack.c.b16 %v1453, %v1449
        %v1742 = vpack.c.b16 %v1454, %v1450
        %v1743 = vpack.c.b16 %v1455, %v1451
        %v1744 = vpack.c.b16 %v1456, %v1452
        %v1745 = vpack.c.b16 %v1461, %v1457
        %v1746 = vpack.c.b16 %v1462, %v1458
        %v1747 = vpack.c.b16 %v1463, %v1459
        %v1748 = vpack.c.b16 %v1464, %v1460
        %v1749 = vpack.c.b16 %v1469, %v1465
        %v1750 = vpack.c.b16 %v1470, %v1466
        %v1751 = vpack.c.b16 %v1471, %v1467
        %v1752 = vpack.c.b16 %v1472, %v1468
        %v1753 = vpack.c.b16 %v1477, %v1473
        %v1754 = vpack.c.b16 %v1478, %v1474
        %v1755 = vpack.c.b16 %v1479, %v1475
        %v1756 = vpack.c.b16 %v1480, %v1476
        %v1757 = vpack.c.b16 %v1485, %v1481
        %v1758 = vpack.c.b16 %v1486, %v1482
        %v1759 = vpack.c.b16 %v1487, %v1483
        %v1760 = vpack.c.b16 %v1488, %v1484
        %v1761 = vpack.c.b16 %v1493, %v1489
        %v1762 = vpack.c.b16 %v1494, %v1490
        %v1763 = vpack.c.b16 %v1495, %v1491
        %v1764 = vpack.c.b16 %v1496, %v1492
        %v1765 = vpack.c.b16 %v1501, %v1497
        %v1766 = vpack.c.b16 %v1502, %v1498
        %v1767 = vpack.c.b16 %v1503, %v1499
        %v1768 = vpack.c.b16 %v1504, %v1500
        %v1769 = vpack.c.b16 %v1509, %v1505
        %v1770 = vpack.c.b16 %v1510, %v1506
        %v1771 = vpack.c.b16 %v1511, %v1507
        %v1772 = vpack.c.b16 %v1512, %v1508
        %v1773 = vpack.c.b16 %v1517, %v1513
        %v1774 = vpack.c.b16 %v1518, %v1514
        %v1775 = vpack.c.b16 %v1519, %v1515
        %v1776 = vpack.c.b16 %v1520, %v1516
        %v1777 = vpack.c.b16 %v1525, %v1521
        %v1778 = vpack.c.b16 %v1526, %v1522
        %v1779 = vpack.c.b16 %v1527, %v1523
        %v1780 = vpack.c.b16 %v1528, %v1524
        %v1781 = vpack.c.b16 %v1533, %v1529
        %v1782 = vpack.c.b16 %v1534, %v1530
        %v1783 = vpack.c.b16 %v1535, %v1531
        %v1784 = vpack.c.b16 %v1536, %v1532
        %v1785 = vpack.c.b16 %v1541, %v1537
        %v1786 = vpack.c.b16 %v1542, %v1538
        %v1787 = vpack.c.b16 %v1543, %v1539
        %v1788 = vpack.c.b16 %v1544, %v1540
        %v1789 = vpack.c.b16 %v1549, %v1545
        %v1790 = vpack.c.b16 %v1550, %v1546
        %v1791 = vpack.c.b16 %v1551, %v1547
        %v1792 = vpack.c.b16 %v1552, %v1548
        %v1793 = vpack.c.b16 %v1557, %v1553
        %v1794 = vpack.c.b16 %v1558, %v1554
        %v1795 = vpack.c.b16 %v1559, %v1555
        %v1796 = vpack.c.b16 %v1560, %v1556
        %v1797 = vpack.c.b16 %v1565, %v1561
        %v1798 = vpack.c.b16 %v1566, %v1562
        %v1799 = vpack.c.b16 %v1567, %v1563
        %v1800 = vpack.c.b16 %v1568, %v1564
        %v1801 = vpack.c.b16 %v1573, %v1569
        %v1802 = vpack.c.b16 %v1574, %v1570
        %v1803 = vpack.c.b16 %v1575, %v1571
        %v1804 = vpack.c.b16 %v1576, %v1572
        %v1805 = vpack.c.b16 %v1581, %v1577
        %v1806 = vpack.c.b16 %v1582, %v1578
        %v1807 = vpack.c.b16 %v1583, %v1579
        %v1808 = vpack.c.b16 %v1584, %v1580
        %v1809 = vpack.c.b16 %v1589, %v1585
        %v1810 = vpack.c.b16 %v1590, %v1586
        %v1811 = vpack.c.b16 %v1591, %v1587
        %v1812 = vpack.c.b16 %v1592, %v1588
        %v1813 = vpack.c.b16 %v1597, %v1593
        %v1814 = vpack.c.b16 %v1598, %v1594
        %v1815 = vpack.c.b16 %v1599, %v1595
        %v1816 = vpack.c.b16 %v1600, %v1596
        %v1817 = vpack.c.b16 %v1605, %v1601
        %v1818 = vpack.c.b16 %v1606, %v1602
        %v1819 = vpack.c.b16 %v1607, %v1603
        %v1820 = vpack.c.b16 %v1608, %v1604
        %v1821 = vpack.c.b16 %v1613, %v1609
        %v1822 = vpack.c.b16 %v1614, %v1610
        %v1823 = vpack.c.b16 %v1615, %v1611
        %v1824 = vpack.c.b16 %v1616, %v1612
        %v1825 = vpack.c.b16 %v1621, %v1617
        %v1826 = vpack.c.b16 %v1622, %v1618
        %v1827 = vpack.c.b16 %v1623, %v1619
        %v1828 = vpack.c.b16 %v1624, %v1620
        %v1829 = vpack.c.b16 %v1629, %v1625
        %v1830 = vpack.c.b16 %v1630, %v1626
        %v1831 = vpack.c.b16 %v1631, %v1627
        %v1832 = vpack.c.b16 %v1632, %v1628
        %v1833 = vpack.c.b16 %v1637, %v1633
        %v1834 = vpack.c.b16 %v1638, %v1634
        %v1835 = vpack.c.b16 %v1639, %v1635
        %v1836 = vpack.c.b16 %v1640, %v1636
        %v1837 = vpack.c.b16 %v1645, %v1641
        %v1838 = vpack.c.b16 %v1646, %v1642
        %v1839 = vpack.c.b16 %v1647, %v1643
        %v1840 = vpack.c.b16 %v1648, %v1644
        %2033 = vmatprep.subr.bf16.mxu0 %v1678
        %2034 = vmatpush1.bf16.msra.mxu0 %v1677
        %2035 = vmatprep.subr.bf16.mxu0 %v1674
        %2036 = vmatpush1.bf16.msra.mxu0 %v1673
        %2037 = vmatprep.subr.bf16.mxu0 %v1670
        %2038 = vmatpush1.bf16.msra.mxu0 %v1669
        %2039 = vmatprep.subr.bf16.mxu0 %v1666
        %2040 = vmatpush1.bf16.msra.mxu0 %v1665
        %2041 = vmatprep.subr.bf16.mxu0 %v1662
        %2042 = vmatpush1.bf16.msra.mxu0 %v1661
        %2043 = vmatprep.subr.bf16.mxu0 %v1658
        %2044 = vmatpush1.bf16.msra.mxu0 %v1657
        %2045 = vmatprep.subr.bf16.mxu0 %v1654
        %2046 = vmatpush1.bf16.msra.mxu0 %v1653
        %2047 = vmatprep.subr.bf16.mxu0 %v1650
        %2048 = vmatpush1.bf16.msra.mxu0 %v1649
        %2049 = vmatprep.subr.bf16.mxu0 %v1710
        %2050 = vmatpush2.bf16.msra.mxu0 %v1709
        %2051 = vmatprep.subr.bf16.mxu0 %v1706
        %2052 = vmatpush2.bf16.msra.mxu0 %v1705
        %2053 = vmatprep.subr.bf16.mxu0 %v1702
        %2054 = vmatpush2.bf16.msra.mxu0 %v1701
        %2055 = vmatprep.subr.bf16.mxu0 %v1698
        %2056 = vmatpush2.bf16.msra.mxu0 %v1697
        %2057 = vmatprep.subr.bf16.mxu0 %v1694
        %2058 = vmatpush2.bf16.msra.mxu0 %v1693
        %2059 = vmatprep.subr.bf16.mxu0 %v1690
        %2060 = vmatpush2.bf16.msra.mxu0 %v1689
        %2061 = vmatprep.subr.bf16.mxu0 %v1686
        %2062 = vmatpush2.bf16.msra.mxu0 %v1685
        %2063 = vmatprep.subr.bf16.mxu0 %v1682
        %2064 = vmatpush2.bf16.msra.mxu0 %v1681
        %2065 = vmatprep.mubr.bf16.mxu0 %v854
        %2066 = vmatmul.mubr.bf16.gmra.mxu0 %v853
        %v2067 = vpop.f32.mrf.mxu0
        %v2068 = vadd.f32 %v1056, %v2067
        %v2069 = vpop.f32.mrf.mxu0
        %v2070 = vadd.f32 %v1060, %v2069
        %v2071 = vpop.f32.mrf.mxu0
        %v2072 = vpop.f32.mrf.mxu0
        %2073 = vdwg.mxu0
        %2074 = vmatprep.subr.bf16.mxu0 %v1742
        %2075 = vmatpush1.bf16.msra.mxu0 %v1741
        %2076 = vmatprep.subr.bf16.mxu0 %v1738
        %2077 = vmatpush1.bf16.msra.mxu0 %v1737
        %2078 = vmatprep.subr.bf16.mxu0 %v1734
        %2079 = vmatpush1.bf16.msra.mxu0 %v1733
        %2080 = vmatprep.subr.bf16.mxu0 %v1730
        %2081 = vmatpush1.bf16.msra.mxu0 %v1729
        %2082 = vmatprep.subr.bf16.mxu0 %v1726
        %2083 = vmatpush1.bf16.msra.mxu0 %v1725
        %2084 = vmatprep.subr.bf16.mxu0 %v1722
        %2085 = vmatpush1.bf16.msra.mxu0 %v1721
        %2086 = vmatprep.subr.bf16.mxu0 %v1718
        %2087 = vmatpush1.bf16.msra.mxu0 %v1717
        %2088 = vmatprep.subr.bf16.mxu0 %v1714
        %2089 = vmatpush1.bf16.msra.mxu0 %v1713
        %2090 = vmatprep.subr.bf16.mxu0 %v1774
        %2091 = vmatpush2.bf16.msra.mxu0 %v1773
        %2092 = vmatprep.subr.bf16.mxu0 %v1770
        %2093 = vmatpush2.bf16.msra.mxu0 %v1769
        %2094 = vmatprep.subr.bf16.mxu0 %v1766
        %2095 = vmatpush2.bf16.msra.mxu0 %v1765
        %2096 = vmatprep.subr.bf16.mxu0 %v1762
        %2097 = vmatpush2.bf16.msra.mxu0 %v1761
        %2098 = vmatprep.subr.bf16.mxu0 %v1758
        %2099 = vmatpush2.bf16.msra.mxu0 %v1757
        %2100 = vmatprep.subr.bf16.mxu0 %v1754
        %2101 = vmatpush2.bf16.msra.mxu0 %v1753
        %2102 = vmatprep.subr.bf16.mxu0 %v1750
        %2103 = vmatpush2.bf16.msra.mxu0 %v1749
        %2104 = vmatprep.subr.bf16.mxu0 %v1746
        %2105 = vmatpush2.bf16.msra.mxu0 %v1745
        %2106 = vmatprep.mubr.bf16.mxu0 %v856
        %2107 = vmatmul.mubr.bf16.gmra.mxu0 %v855
        %v2108 = vpop.f32.mrf.mxu0
        %v2109 = vadd.f32 %v2068, %v2108
        %v2110 = vpop.f32.mrf.mxu0
        %v2111 = vadd.f32 %v2070, %v2110
        %v2112 = vpop.f32.mrf.mxu0
        %v2113 = vpop.f32.mrf.mxu0
        %2114 = vdwg.mxu0
        %2115 = vmatprep.subr.bf16.mxu0 %v1806
        %2116 = vmatpush1.bf16.msra.mxu0 %v1805
        %2117 = vmatprep.subr.bf16.mxu0 %v1802
        %2118 = vmatpush1.bf16.msra.mxu0 %v1801
        %2119 = vmatprep.subr.bf16.mxu0 %v1798
        %2120 = vmatpush1.bf16.msra.mxu0 %v1797
        %2121 = vmatprep.subr.bf16.mxu0 %v1794
        %2122 = vmatpush1.bf16.msra.mxu0 %v1793
        %2123 = vmatprep.subr.bf16.mxu0 %v1790
        %2124 = vmatpush1.bf16.msra.mxu0 %v1789
        %2125 = vmatprep.subr.bf16.mxu0 %v1786
        %2126 = vmatpush1.bf16.msra.mxu0 %v1785
        %2127 = vmatprep.subr.bf16.mxu0 %v1782
        %2128 = vmatpush1.bf16.msra.mxu0 %v1781
        %2129 = vmatprep.subr.bf16.mxu0 %v1778
        %2130 = vmatpush1.bf16.msra.mxu0 %v1777
        %2131 = vmatprep.subr.bf16.mxu0 %v1838
        %2132 = vmatpush2.bf16.msra.mxu0 %v1837
        %2133 = vmatprep.subr.bf16.mxu0 %v1834
        %2134 = vmatpush2.bf16.msra.mxu0 %v1833
        %2135 = vmatprep.subr.bf16.mxu0 %v1830
        %2136 = vmatpush2.bf16.msra.mxu0 %v1829
        %2137 = vmatprep.subr.bf16.mxu0 %v1826
        %2138 = vmatpush2.bf16.msra.mxu0 %v1825
        %2139 = vmatprep.subr.bf16.mxu0 %v1822
        %2140 = vmatpush2.bf16.msra.mxu0 %v1821
        %2141 = vmatprep.subr.bf16.mxu0 %v1818
        %2142 = vmatpush2.bf16.msra.mxu0 %v1817
        %2143 = vmatprep.subr.bf16.mxu0 %v1814
        %2144 = vmatpush2.bf16.msra.mxu0 %v1813
        %2145 = vmatprep.subr.bf16.mxu0 %v1810
        %2146 = vmatpush2.bf16.msra.mxu0 %v1809
        %2147 = vmatprep.mubr.bf16.mxu0 %v858
        %2148 = vmatmul.mubr.bf16.gmra.mxu0 %v857
        %v2149 = vpop.f32.mrf.mxu0
        %v2150 = vadd.f32 %v2109, %v2149
        %v2151 = vpop.f32.mrf.mxu0
        %v2152 = vadd.f32 %v2111, %v2151
        %v2153 = vpop.f32.mrf.mxu0
        %v2154 = vpop.f32.mrf.mxu0
        %2155 = vdwg.mxu0
        %2156 = vmatprep.subr.bf16.mxu0 %v1680
        %2157 = vmatpush1.bf16.msra.mxu0 %v1679
        %2158 = vmatprep.subr.bf16.mxu0 %v1676
        %2159 = vmatpush1.bf16.msra.mxu0 %v1675
        %2160 = vmatprep.subr.bf16.mxu0 %v1672
        %2161 = vmatpush1.bf16.msra.mxu0 %v1671
        %2162 = vmatprep.subr.bf16.mxu0 %v1668
        %2163 = vmatpush1.bf16.msra.mxu0 %v1667
        %2164 = vmatprep.subr.bf16.mxu0 %v1664
        %2165 = vmatpush1.bf16.msra.mxu0 %v1663
        %2166 = vmatprep.subr.bf16.mxu0 %v1660
        %2167 = vmatpush1.bf16.msra.mxu0 %v1659
        %2168 = vmatprep.subr.bf16.mxu0 %v1656
        %2169 = vmatpush1.bf16.msra.mxu0 %v1655
        %2170 = vmatprep.subr.bf16.mxu0 %v1652
        %2171 = vmatpush1.bf16.msra.mxu0 %v1651
        %2172 = vmatprep.subr.bf16.mxu0 %v1712
        %2173 = vmatpush2.bf16.msra.mxu0 %v1711
        %2174 = vmatprep.subr.bf16.mxu0 %v1708
        %2175 = vmatpush2.bf16.msra.mxu0 %v1707
        %2176 = vmatprep.subr.bf16.mxu0 %v1704
        %2177 = vmatpush2.bf16.msra.mxu0 %v1703
        %2178 = vmatprep.subr.bf16.mxu0 %v1700
        %2179 = vmatpush2.bf16.msra.mxu0 %v1699
        %2180 = vmatprep.subr.bf16.mxu0 %v1696
        %2181 = vmatpush2.bf16.msra.mxu0 %v1695
        %2182 = vmatprep.subr.bf16.mxu0 %v1692
        %2183 = vmatpush2.bf16.msra.mxu0 %v1691
        %2184 = vmatprep.subr.bf16.mxu0 %v1688
        %2185 = vmatpush2.bf16.msra.mxu0 %v1687
        %2186 = vmatprep.subr.bf16.mxu0 %v1684
        %2187 = vmatpush2.bf16.msra.mxu0 %v1683
        %2188 = vmatprep.mubr.bf16.mxu0 %v854
        %2189 = vmatmul.mubr.bf16.gmra.mxu0 %v853
        %v2190 = vpop.f32.mrf.mxu0
        %v2191 = vadd.f32 %v1064, %v2190
        %v2192 = vpop.f32.mrf.mxu0
        %v2193 = vadd.f32 %v1068, %v2192
        %v2194 = vpop.f32.mrf.mxu0
        %v2195 = vpop.f32.mrf.mxu0
        %2196 = vdwg.mxu0
        %2197 = vmatprep.subr.bf16.mxu0 %v1744
        %2198 = vmatpush1.bf16.msra.mxu0 %v1743
        %2199 = vmatprep.subr.bf16.mxu0 %v1740
        %2200 = vmatpush1.bf16.msra.mxu0 %v1739
        %2201 = vmatprep.subr.bf16.mxu0 %v1736
        %2202 = vmatpush1.bf16.msra.mxu0 %v1735
        %2203 = vmatprep.subr.bf16.mxu0 %v1732
        %2204 = vmatpush1.bf16.msra.mxu0 %v1731
        %2205 = vmatprep.subr.bf16.mxu0 %v1728
        %2206 = vmatpush1.bf16.msra.mxu0 %v1727
        %2207 = vmatprep.subr.bf16.mxu0 %v1724
        %2208 = vmatpush1.bf16.msra.mxu0 %v1723
        %2209 = vmatprep.subr.bf16.mxu0 %v1720
        %2210 = vmatpush1.bf16.msra.mxu0 %v1719
        %2211 = vmatprep.subr.bf16.mxu0 %v1716
        %2212 = vmatpush1.bf16.msra.mxu0 %v1715
        %2213 = vmatprep.subr.bf16.mxu0 %v1776
        %2214 = vmatpush2.bf16.msra.mxu0 %v1775
        %2215 = vmatprep.subr.bf16.mxu0 %v1772
        %2216 = vmatpush2.bf16.msra.mxu0 %v1771
        %2217 = vmatprep.subr.bf16.mxu0 %v1768
        %2218 = vmatpush2.bf16.msra.mxu0 %v1767
        %2219 = vmatprep.subr.bf16.mxu0 %v1764
        %2220 = vmatpush2.bf16.msra.mxu0 %v1763
        %2221 = vmatprep.subr.bf16.mxu0 %v1760
        %2222 = vmatpush2.bf16.msra.mxu0 %v1759
        %2223 = vmatprep.subr.bf16.mxu0 %v1756
        %2224 = vmatpush2.bf16.msra.mxu0 %v1755
        %2225 = vmatprep.subr.bf16.mxu0 %v1752
        %2226 = vmatpush2.bf16.msra.mxu0 %v1751
        %2227 = vmatprep.subr.bf16.mxu0 %v1748
        %2228 = vmatpush2.bf16.msra.mxu0 %v1747
        %2229 = vmatprep.mubr.bf16.mxu0 %v856
        %2230 = vmatmul.mubr.bf16.gmra.mxu0 %v855
        %v2231 = vpop.f32.mrf.mxu0
        %v2232 = vadd.f32 %v2191, %v2231
        %v2233 = vpop.f32.mrf.mxu0
        %v2234 = vadd.f32 %v2193, %v2233
        %v2235 = vpop.f32.mrf.mxu0
        %v2236 = vpop.f32.mrf.mxu0
        %2237 = vdwg.mxu0
        %2238 = vmatprep.subr.bf16.mxu0 %v1808
        %2239 = vmatpush1.bf16.msra.mxu0 %v1807
        %2240 = vmatprep.subr.bf16.mxu0 %v1804
        %2241 = vmatpush1.bf16.msra.mxu0 %v1803
        %2242 = vmatprep.subr.bf16.mxu0 %v1800
        %2243 = vmatpush1.bf16.msra.mxu0 %v1799
        %2244 = vmatprep.subr.bf16.mxu0 %v1796
        %2245 = vmatpush1.bf16.msra.mxu0 %v1795
        %2246 = vmatprep.subr.bf16.mxu0 %v1792
        %2247 = vmatpush1.bf16.msra.mxu0 %v1791
        %2248 = vmatprep.subr.bf16.mxu0 %v1788
        %2249 = vmatpush1.bf16.msra.mxu0 %v1787
        %2250 = vmatprep.subr.bf16.mxu0 %v1784
        %2251 = vmatpush1.bf16.msra.mxu0 %v1783
        %2252 = vmatprep.subr.bf16.mxu0 %v1780
        %2253 = vmatpush1.bf16.msra.mxu0 %v1779
        %2254 = vmatprep.subr.bf16.mxu0 %v1840
        %2255 = vmatpush2.bf16.msra.mxu0 %v1839
        %2256 = vmatprep.subr.bf16.mxu0 %v1836
        %2257 = vmatpush2.bf16.msra.mxu0 %v1835
        %2258 = vmatprep.subr.bf16.mxu0 %v1832
        %2259 = vmatpush2.bf16.msra.mxu0 %v1831
        %2260 = vmatprep.subr.bf16.mxu0 %v1828
        %2261 = vmatpush2.bf16.msra.mxu0 %v1827
        %2262 = vmatprep.subr.bf16.mxu0 %v1824
        %2263 = vmatpush2.bf16.msra.mxu0 %v1823
        %2264 = vmatprep.subr.bf16.mxu0 %v1820
        %2265 = vmatpush2.bf16.msra.mxu0 %v1819
        %2266 = vmatprep.subr.bf16.mxu0 %v1816
        %2267 = vmatpush2.bf16.msra.mxu0 %v1815
        %2268 = vmatprep.subr.bf16.mxu0 %v1812
        %2269 = vmatpush2.bf16.msra.mxu0 %v1811
        %2270 = vmatprep.mubr.bf16.mxu0 %v858
        %2271 = vmatmul.mubr.bf16.gmra.mxu0 %v857
        %v2272 = vpop.f32.mrf.mxu0
        %v2273 = vadd.f32 %v2232, %v2272
        %v2274 = vpop.f32.mrf.mxu0
        %v2275 = vadd.f32 %v2234, %v2274
        %v2276 = vpop.f32.mrf.mxu0
        %v2277 = vpop.f32.mrf.mxu0
        %2278 = vdwg.mxu0
        %v2279 = vmax.f32 %v2150, 0.0
        %v2280 = vmax.f32 %v2152, 0.0
        %v2281 = vmax.f32 %v2273, 0.0
        %v2282 = vmax.f32 %v2275, 0.0
        %v2283 = vpack.c.bf16 %v2279, %v2279
        %v2284 = vpack.c.bf16 %v2280, %v2280
        %v2285 = vpack.c.bf16 %v2281, %v2281
        %v2286 = vpack.c.bf16 %v2282, %v2282
        %v2287 = vld [vmem:[%s3] sm:$0xff]
        %v2288 = vld [vmem:[%s3 + $0x8] sm:$0xff]
        %v2289 = vld [vmem:[%s3 + $0x10] sm:$0xff]
        %v2290 = vld [vmem:[%s3 + $0x18] sm:$0xff]
        %v2291 = vld [vmem:[%s3 + $0x20] sm:$0xff]
        %v2292 = vld [vmem:[%s3 + $0x28] sm:$0xff]
        %v2293 = vld [vmem:[%s3 + $0x30] sm:$0xff]
        %v2294 = vld [vmem:[%s3 + $0x38] sm:$0xff]
        %v2295 = vld [vmem:[%s3 + $0x40] sm:$0xff]
        %v2296 = vld [vmem:[%s3 + $0x48] sm:$0xff]
        %v2297 = vld [vmem:[%s3 + $0x50] sm:$0xff]
        %v2298 = vld [vmem:[%s3 + $0x58] sm:$0xff]
        %v2299 = vld [vmem:[%s3 + $0x60] sm:$0xff]
        %v2300 = vld [vmem:[%s3 + $0x68] sm:$0xff]
        %v2301 = vld [vmem:[%s3 + $0x70] sm:$0xff]
        %v2302 = vld [vmem:[%s3 + $0x78] sm:$0xff]
        %v2303 = vld [vmem:[%s3 + $0x80] sm:$0xff]
        %v2304 = vld [vmem:[%s3 + $0x88] sm:$0xff]
        %v2305 = vld [vmem:[%s3 + $0x90] sm:$0xff]
        %v2306 = vld [vmem:[%s3 + $0x98] sm:$0xff]
        %v2307 = vld [vmem:[%s3 + $0xa0] sm:$0xff]
        %v2308 = vld [vmem:[%s3 + $0xa8] sm:$0xff]
        %v2309 = vld [vmem:[%s3 + $0xb0] sm:$0xff]
        %v2310 = vld [vmem:[%s3 + $0xb8] sm:$0xff]
        %v2311 = vld [vmem:[%s3 + $0xc0] sm:$0xff]
        %v2312 = vld [vmem:[%s3 + $0xc8] sm:$0xff]
        %v2313 = vld [vmem:[%s3 + $0xd0] sm:$0xff]
        %v2314 = vld [vmem:[%s3 + $0xd8] sm:$0xff]
        %v2315 = vld [vmem:[%s3 + $0xe0] sm:$0xff]
        %v2316 = vld [vmem:[%s3 + $0xe8] sm:$0xff]
        %v2317 = vld [vmem:[%s3 + $0xf0] sm:$0xff]
        %v2318 = vld [vmem:[%s3 + $0xf8] sm:$0xff]
        %v2319 = vld [vmem:[%s3 + $0x100] sm:$0xff]
        %v2320 = vld [vmem:[%s3 + $0x108] sm:$0xff]
        %v2321 = vld [vmem:[%s3 + $0x110] sm:$0xff]
        %v2322 = vld [vmem:[%s3 + $0x118] sm:$0xff]
        %v2323 = vld [vmem:[%s3 + $0x120] sm:$0xff]
        %v2324 = vld [vmem:[%s3 + $0x128] sm:$0xff]
        %v2325 = vld [vmem:[%s3 + $0x130] sm:$0xff]
        %v2326 = vld [vmem:[%s3 + $0x138] sm:$0xff]
        %v2327 = vld [vmem:[%s3 + $0x140] sm:$0xff]
        %v2328 = vld [vmem:[%s3 + $0x148] sm:$0xff]
        %v2329 = vld [vmem:[%s3 + $0x150] sm:$0xff]
        %v2330 = vld [vmem:[%s3 + $0x158] sm:$0xff]
        %v2331 = vld [vmem:[%s3 + $0x160] sm:$0xff]
        %v2332 = vld [vmem:[%s3 + $0x168] sm:$0xff]
        %v2333 = vld [vmem:[%s3 + $0x170] sm:$0xff]
        %v2334 = vld [vmem:[%s3 + $0x178] sm:$0xff]
        %v2335 = vld [vmem:[%s3 + $0x180] sm:$0xff]
        %v2336 = vld [vmem:[%s3 + $0x188] sm:$0xff]
        %v2337 = vld [vmem:[%s3 + $0x190] sm:$0xff]
        %v2338 = vld [vmem:[%s3 + $0x198] sm:$0xff]
        %v2339 = vld [vmem:[%s3 + $0x1a0] sm:$0xff]
        %v2340 = vld [vmem:[%s3 + $0x1a8] sm:$0xff]
        %v2341 = vld [vmem:[%s3 + $0x1b0] sm:$0xff]
        %v2342 = vld [vmem:[%s3 + $0x1b8] sm:$0xff]
        %v2343 = vld [vmem:[%s3 + $0x1c0] sm:$0xff]
        %v2344 = vld [vmem:[%s3 + $0x1c8] sm:$0xff]
        %v2345 = vld [vmem:[%s3 + $0x1d0] sm:$0xff]
        %v2346 = vld [vmem:[%s3 + $0x1d8] sm:$0xff]
        %v2347 = vld [vmem:[%s3 + $0x1e0] sm:$0xff]
        %v2348 = vld [vmem:[%s3 + $0x1e8] sm:$0xff]
        %v2349 = vld [vmem:[%s3 + $0x1f0] sm:$0xff]
        %v2350 = vld [vmem:[%s3 + $0x1f8] sm:$0xff]
        %v2351 = vld [vmem:[#allocation8] sm:$0x3]
        %v2353 = vlaneseq
        %v2354 = vshrl.u32 %v2353, 7
        %v2355 = vsub.s32 0, %v2354
        %v2356 = vrot.slane %v2351, %v2355
        %v2357 = vlaneseq
        %v2358 = vshrl.u32 %v2357, 7
        %v2359 = vsub.s32 1, %v2358
        %v2360 = vrot.slane %v2351, %v2359
        %v2427 = vunpack.c.l.b16 %v2287
        %v2428 = vunpack.c.h.b16 %v2287
        %v2429 = vunpack.c.l.b16 %v2288
        %v2430 = vunpack.c.h.b16 %v2288
        %v2431 = vunpack.c.l.b16 %v2289
        %v2432 = vunpack.c.h.b16 %v2289
        %v2433 = vunpack.c.l.b16 %v2290
        %v2434 = vunpack.c.h.b16 %v2290
        %v2435 = vunpack.c.l.b16 %v2291
        %v2436 = vunpack.c.h.b16 %v2291
        %v2437 = vunpack.c.l.b16 %v2292
        %v2438 = vunpack.c.h.b16 %v2292
        %v2439 = vunpack.c.l.b16 %v2293
        %v2440 = vunpack.c.h.b16 %v2293
        %v2441 = vunpack.c.l.b16 %v2294
        %v2442 = vunpack.c.h.b16 %v2294
        %v2443 = vunpack.c.l.b16 %v2295
        %v2444 = vunpack.c.h.b16 %v2295
        %v2445 = vunpack.c.l.b16 %v2296
        %v2446 = vunpack.c.h.b16 %v2296
        %v2447 = vunpack.c.l.b16 %v2297
        %v2448 = vunpack.c.h.b16 %v2297
        %v2449 = vunpack.c.l.b16 %v2298
        %v2450 = vunpack.c.h.b16 %v2298
        %v2451 = vunpack.c.l.b16 %v2299
        %v2452 = vunpack.c.h.b16 %v2299
        %v2453 = vunpack.c.l.b16 %v2300
        %v2454 = vunpack.c.h.b16 %v2300
        %v2455 = vunpack.c.l.b16 %v2301
        %v2456 = vunpack.c.h.b16 %v2301
        %v2457 = vunpack.c.l.b16 %v2302
        %v2458 = vunpack.c.h.b16 %v2302
        %v2459 = vunpack.c.l.b16 %v2303
        %v2460 = vunpack.c.h.b16 %v2303
        %v2461 = vunpack.c.l.b16 %v2304
        %v2462 = vunpack.c.h.b16 %v2304
        %v2463 = vunpack.c.l.b16 %v2305
        %v2464 = vunpack.c.h.b16 %v2305
        %v2465 = vunpack.c.l.b16 %v2306
        %v2466 = vunpack.c.h.b16 %v2306
        %v2467 = vunpack.c.l.b16 %v2307
        %v2468 = vunpack.c.h.b16 %v2307
        %v2469 = vunpack.c.l.b16 %v2308
        %v2470 = vunpack.c.h.b16 %v2308
        %v2471 = vunpack.c.l.b16 %v2309
        %v2472 = vunpack.c.h.b16 %v2309
        %v2473 = vunpack.c.l.b16 %v2310
        %v2474 = vunpack.c.h.b16 %v2310
        %v2475 = vunpack.c.l.b16 %v2311
        %v2476 = vunpack.c.h.b16 %v2311
        %v2477 = vunpack.c.l.b16 %v2312
        %v2478 = vunpack.c.h.b16 %v2312
        %v2479 = vunpack.c.l.b16 %v2313
        %v2480 = vunpack.c.h.b16 %v2313
        %v2481 = vunpack.c.l.b16 %v2314
        %v2482 = vunpack.c.h.b16 %v2314
        %v2483 = vunpack.c.l.b16 %v2315
        %v2484 = vunpack.c.h.b16 %v2315
        %v2485 = vunpack.c.l.b16 %v2316
        %v2486 = vunpack.c.h.b16 %v2316
        %v2487 = vunpack.c.l.b16 %v2317
        %v2488 = vunpack.c.h.b16 %v2317
        %v2489 = vunpack.c.l.b16 %v2318
        %v2490 = vunpack.c.h.b16 %v2318
        %v2491 = vunpack.c.l.b16 %v2319
        %v2492 = vunpack.c.h.b16 %v2319
        %v2493 = vunpack.c.l.b16 %v2320
        %v2494 = vunpack.c.h.b16 %v2320
        %v2495 = vunpack.c.l.b16 %v2321
        %v2496 = vunpack.c.h.b16 %v2321
        %v2497 = vunpack.c.l.b16 %v2322
        %v2498 = vunpack.c.h.b16 %v2322
        %v2499 = vunpack.c.l.b16 %v2323
        %v2500 = vunpack.c.h.b16 %v2323
        %v2501 = vunpack.c.l.b16 %v2324
        %v2502 = vunpack.c.h.b16 %v2324
        %v2503 = vunpack.c.l.b16 %v2325
        %v2504 = vunpack.c.h.b16 %v2325
        %v2505 = vunpack.c.l.b16 %v2326
        %v2506 = vunpack.c.h.b16 %v2326
        %v2507 = vunpack.c.l.b16 %v2327
        %v2508 = vunpack.c.h.b16 %v2327
        %v2509 = vunpack.c.l.b16 %v2328
        %v2510 = vunpack.c.h.b16 %v2328
        %v2511 = vunpack.c.l.b16 %v2329
        %v2512 = vunpack.c.h.b16 %v2329
        %v2513 = vunpack.c.l.b16 %v2330
        %v2514 = vunpack.c.h.b16 %v2330
        %v2515 = vunpack.c.l.b16 %v2331
        %v2516 = vunpack.c.h.b16 %v2331
        %v2517 = vunpack.c.l.b16 %v2332
        %v2518 = vunpack.c.h.b16 %v2332
        %v2519 = vunpack.c.l.b16 %v2333
        %v2520 = vunpack.c.h.b16 %v2333
        %v2521 = vunpack.c.l.b16 %v2334
        %v2522 = vunpack.c.h.b16 %v2334
        %v2523 = vunpack.c.l.b16 %v2335
        %v2524 = vunpack.c.h.b16 %v2335
        %v2525 = vunpack.c.l.b16 %v2336
        %v2526 = vunpack.c.h.b16 %v2336
        %v2527 = vunpack.c.l.b16 %v2337
        %v2528 = vunpack.c.h.b16 %v2337
        %v2529 = vunpack.c.l.b16 %v2338
        %v2530 = vunpack.c.h.b16 %v2338
        %v2531 = vunpack.c.l.b16 %v2339
        %v2532 = vunpack.c.h.b16 %v2339
        %v2533 = vunpack.c.l.b16 %v2340
        %v2534 = vunpack.c.h.b16 %v2340
        %v2535 = vunpack.c.l.b16 %v2341
        %v2536 = vunpack.c.h.b16 %v2341
        %v2537 = vunpack.c.l.b16 %v2342
        %v2538 = vunpack.c.h.b16 %v2342
        %v2539 = vunpack.c.l.b16 %v2343
        %v2540 = vunpack.c.h.b16 %v2343
        %v2541 = vunpack.c.l.b16 %v2344
        %v2542 = vunpack.c.h.b16 %v2344
        %v2543 = vunpack.c.l.b16 %v2345
        %v2544 = vunpack.c.h.b16 %v2345
        %v2545 = vunpack.c.l.b16 %v2346
        %v2546 = vunpack.c.h.b16 %v2346
        %v2547 = vunpack.c.l.b16 %v2347
        %v2548 = vunpack.c.h.b16 %v2347
        %v2549 = vunpack.c.l.b16 %v2348
        %v2550 = vunpack.c.h.b16 %v2348
        %v2551 = vunpack.c.l.b16 %v2349
        %v2552 = vunpack.c.h.b16 %v2349
        %v2553 = vunpack.c.l.b16 %v2350
        %v2554 = vunpack.c.h.b16 %v2350
        %v2555 = vpack.c.b16 %v2429, %v2427
        %v2556 = vpack.c.b16 %v2430, %v2428
        %v2557 = vpack.c.b16 %v2433, %v2431
        %v2558 = vpack.c.b16 %v2434, %v2432
        %v2559 = vpack.c.b16 %v2437, %v2435
        %v2560 = vpack.c.b16 %v2438, %v2436
        %v2561 = vpack.c.b16 %v2441, %v2439
        %v2562 = vpack.c.b16 %v2442, %v2440
        %v2563 = vpack.c.b16 %v2445, %v2443
        %v2564 = vpack.c.b16 %v2446, %v2444
        %v2565 = vpack.c.b16 %v2449, %v2447
        %v2566 = vpack.c.b16 %v2450, %v2448
        %v2567 = vpack.c.b16 %v2453, %v2451
        %v2568 = vpack.c.b16 %v2454, %v2452
        %v2569 = vpack.c.b16 %v2457, %v2455
        %v2570 = vpack.c.b16 %v2458, %v2456
        %v2571 = vpack.c.b16 %v2461, %v2459
        %v2572 = vpack.c.b16 %v2462, %v2460
        %v2573 = vpack.c.b16 %v2465, %v2463
        %v2574 = vpack.c.b16 %v2466, %v2464
        %v2575 = vpack.c.b16 %v2469, %v2467
        %v2576 = vpack.c.b16 %v2470, %v2468
        %v2577 = vpack.c.b16 %v2473, %v2471
        %v2578 = vpack.c.b16 %v2474, %v2472
        %v2579 = vpack.c.b16 %v2477, %v2475
        %v2580 = vpack.c.b16 %v2478, %v2476
        %v2581 = vpack.c.b16 %v2481, %v2479
        %v2582 = vpack.c.b16 %v2482, %v2480
        %v2583 = vpack.c.b16 %v2485, %v2483
        %v2584 = vpack.c.b16 %v2486, %v2484
        %v2585 = vpack.c.b16 %v2489, %v2487
        %v2586 = vpack.c.b16 %v2490, %v2488
        %v2587 = vpack.c.b16 %v2493, %v2491
        %v2588 = vpack.c.b16 %v2494, %v2492
        %v2589 = vpack.c.b16 %v2497, %v2495
        %v2590 = vpack.c.b16 %v2498, %v2496
        %v2591 = vpack.c.b16 %v2501, %v2499
        %v2592 = vpack.c.b16 %v2502, %v2500
        %v2593 = vpack.c.b16 %v2505, %v2503
        %v2594 = vpack.c.b16 %v2506, %v2504
        %v2595 = vpack.c.b16 %v2509, %v2507
        %v2596 = vpack.c.b16 %v2510, %v2508
        %v2597 = vpack.c.b16 %v2513, %v2511
        %v2598 = vpack.c.b16 %v2514, %v2512
        %v2599 = vpack.c.b16 %v2517, %v2515
        %v2600 = vpack.c.b16 %v2518, %v2516
        %v2601 = vpack.c.b16 %v2521, %v2519
        %v2602 = vpack.c.b16 %v2522, %v2520
        %v2603 = vpack.c.b16 %v2525, %v2523
        %v2604 = vpack.c.b16 %v2526, %v2524
        %v2605 = vpack.c.b16 %v2529, %v2527
        %v2606 = vpack.c.b16 %v2530, %v2528
        %v2607 = vpack.c.b16 %v2533, %v2531
        %v2608 = vpack.c.b16 %v2534, %v2532
        %v2609 = vpack.c.b16 %v2537, %v2535
        %v2610 = vpack.c.b16 %v2538, %v2536
        %v2611 = vpack.c.b16 %v2541, %v2539
        %v2612 = vpack.c.b16 %v2542, %v2540
        %v2613 = vpack.c.b16 %v2545, %v2543
        %v2614 = vpack.c.b16 %v2546, %v2544
        %v2615 = vpack.c.b16 %v2549, %v2547
        %v2616 = vpack.c.b16 %v2550, %v2548
        %v2617 = vpack.c.b16 %v2553, %v2551
        %v2618 = vpack.c.b16 %v2554, %v2552
        %2683 = vmatprep.subr.bf16.mxu0 %v2570
        %2684 = vmatpush1.bf16.msra.mxu0 %v2569
        %2685 = vmatprep.subr.bf16.mxu0 %v2568
        %2686 = vmatpush1.bf16.msra.mxu0 %v2567
        %2687 = vmatprep.subr.bf16.mxu0 %v2566
        %2688 = vmatpush1.bf16.msra.mxu0 %v2565
        %2689 = vmatprep.subr.bf16.mxu0 %v2564
        %2690 = vmatpush1.bf16.msra.mxu0 %v2563
        %2691 = vmatprep.subr.bf16.mxu0 %v2562
        %2692 = vmatpush1.bf16.msra.mxu0 %v2561
        %2693 = vmatprep.subr.bf16.mxu0 %v2560
        %2694 = vmatpush1.bf16.msra.mxu0 %v2559
        %2695 = vmatprep.subr.bf16.mxu0 %v2558
        %2696 = vmatpush1.bf16.msra.mxu0 %v2557
        %2697 = vmatprep.subr.bf16.mxu0 %v2556
        %2698 = vmatpush1.bf16.msra.mxu0 %v2555
        %2699 = vmatprep.subr.bf16.mxu0 %v2586
        %2700 = vmatpush2.bf16.msra.mxu0 %v2585
        %2701 = vmatprep.subr.bf16.mxu0 %v2584
        %2702 = vmatpush2.bf16.msra.mxu0 %v2583
        %2703 = vmatprep.subr.bf16.mxu0 %v2582
        %2704 = vmatpush2.bf16.msra.mxu0 %v2581
        %2705 = vmatprep.subr.bf16.mxu0 %v2580
        %2706 = vmatpush2.bf16.msra.mxu0 %v2579
        %2707 = vmatprep.subr.bf16.mxu0 %v2578
        %2708 = vmatpush2.bf16.msra.mxu0 %v2577
        %2709 = vmatprep.subr.bf16.mxu0 %v2576
        %2710 = vmatpush2.bf16.msra.mxu0 %v2575
        %2711 = vmatprep.subr.bf16.mxu0 %v2574
        %2712 = vmatpush2.bf16.msra.mxu0 %v2573
        %2713 = vmatprep.subr.bf16.mxu0 %v2572
        %2714 = vmatpush2.bf16.msra.mxu0 %v2571
        %2715 = vmatprep.mubr.bf16.mxu0 %v2284
        %2716 = vmatmul.mubr.bf16.gmra.mxu0 %v2283
        %v2717 = vpop.f32.mrf.mxu0
        %v2718 = vadd.f32 %v2356, %v2717
        %v2719 = vpop.f32.mrf.mxu0
        %v2720 = vadd.f32 %v2360, %v2719
        %v2721 = vpop.f32.mrf.mxu0
        %v2722 = vpop.f32.mrf.mxu0
        %2723 = vdwg.mxu0
        %2724 = vmatprep.subr.bf16.mxu0 %v2602
        %2725 = vmatpush1.bf16.msra.mxu0 %v2601
        %2726 = vmatprep.subr.bf16.mxu0 %v2600
        %2727 = vmatpush1.bf16.msra.mxu0 %v2599
        %2728 = vmatprep.subr.bf16.mxu0 %v2598
        %2729 = vmatpush1.bf16.msra.mxu0 %v2597
        %2730 = vmatprep.subr.bf16.mxu0 %v2596
        %2731 = vmatpush1.bf16.msra.mxu0 %v2595
        %2732 = vmatprep.subr.bf16.mxu0 %v2594
        %2733 = vmatpush1.bf16.msra.mxu0 %v2593
        %2734 = vmatprep.subr.bf16.mxu0 %v2592
        %2735 = vmatpush1.bf16.msra.mxu0 %v2591
        %2736 = vmatprep.subr.bf16.mxu0 %v2590
        %2737 = vmatpush1.bf16.msra.mxu0 %v2589
        %2738 = vmatprep.subr.bf16.mxu0 %v2588
        %2739 = vmatpush1.bf16.msra.mxu0 %v2587
        %2740 = vmatprep.subr.bf16.mxu0 %v2618
        %2741 = vmatpush2.bf16.msra.mxu0 %v2617
        %2742 = vmatprep.subr.bf16.mxu0 %v2616
        %2743 = vmatpush2.bf16.msra.mxu0 %v2615
        %2744 = vmatprep.subr.bf16.mxu0 %v2614
        %2745 = vmatpush2.bf16.msra.mxu0 %v2613
        %2746 = vmatprep.subr.bf16.mxu0 %v2612
        %2747 = vmatpush2.bf16.msra.mxu0 %v2611
        %2748 = vmatprep.subr.bf16.mxu0 %v2610
        %2749 = vmatpush2.bf16.msra.mxu0 %v2609
        %2750 = vmatprep.subr.bf16.mxu0 %v2608
        %2751 = vmatpush2.bf16.msra.mxu0 %v2607
        %2752 = vmatprep.subr.bf16.mxu0 %v2606
        %2753 = vmatpush2.bf16.msra.mxu0 %v2605
        %2754 = vmatprep.subr.bf16.mxu0 %v2604
        %2755 = vmatpush2.bf16.msra.mxu0 %v2603
        %2756 = vmatprep.mubr.bf16.mxu0 %v2286
        %2757 = vmatmul.mubr.bf16.gmra.mxu0 %v2285
        %v2758 = vpop.f32.mrf.mxu0
        %v2759 = vadd.f32 %v2718, %v2758
        %v2760 = vpop.f32.mrf.mxu0
        %v2761 = vadd.f32 %v2720, %v2760
        %v2762 = vpop.f32.mrf.mxu0
        %v2763 = vpop.f32.mrf.mxu0
        %2764 = vdwg.mxu0
        %v2765 = vmax.f32 %v2759, 0.0
        %v2766 = vmax.f32 %v2761, 0.0
        %v2767 = vpack.c.bf16 %v2765, %v2765
        %v2768 = vpack.c.bf16 %v2766, %v2766
        %v2769 = vld [vmem:[#allocation10] sm:$0xf]
        %v2770 = vld [vmem:[#allocation10 + $0x4] sm:$0xf]
        %v2771 = vld [vmem:[#allocation10 + $0x8] sm:$0xf]
        %v2772 = vld [vmem:[#allocation10 + $0xc] sm:$0xf]
        %v2773 = vld [vmem:[#allocation10 + $0x10] sm:$0xf]
        %v2774 = vld [vmem:[#allocation10 + $0x14] sm:$0xf]
        %v2775 = vld [vmem:[#allocation10 + $0x18] sm:$0xf]
        %v2776 = vld [vmem:[#allocation10 + $0x1c] sm:$0xf]
        %v2777 = vld [vmem:[#allocation10 + $0x20] sm:$0xf]
        %v2778 = vld [vmem:[#allocation10 + $0x24] sm:$0xf]
        %v2779 = vld [vmem:[#allocation10 + $0x28] sm:$0xf]
        %v2780 = vld [vmem:[#allocation10 + $0x2c] sm:$0xf]
        %v2781 = vld [vmem:[#allocation10 + $0x30] sm:$0xf]
        %v2782 = vld [vmem:[#allocation10 + $0x34] sm:$0xf]
        %v2783 = vld [vmem:[#allocation10 + $0x38] sm:$0xf]
        %v2784 = vld [vmem:[#allocation10 + $0x3c] sm:$0xf]
        %v2785 = vld [vmem:[#allocation10 + $0x40] sm:$0xf]
        %v2786 = vld [vmem:[#allocation10 + $0x44] sm:$0xf]
        %v2787 = vld [vmem:[#allocation10 + $0x48] sm:$0xf]
        %v2788 = vld [vmem:[#allocation10 + $0x4c] sm:$0xf]
        %v2789 = vld [vmem:[#allocation10 + $0x50] sm:$0xf]
        %v2790 = vld [vmem:[#allocation10 + $0x54] sm:$0xf]
        %v2791 = vld [vmem:[#allocation10 + $0x58] sm:$0xf]
        %v2792 = vld [vmem:[#allocation10 + $0x5c] sm:$0xf]
        %v2793 = vld [vmem:[#allocation10 + $0x60] sm:$0xf]
        %v2794 = vld [vmem:[#allocation10 + $0x64] sm:$0xf]
        %v2795 = vld [vmem:[#allocation10 + $0x68] sm:$0xf]
        %v2796 = vld [vmem:[#allocation10 + $0x6c] sm:$0xf]
        %v2797 = vld [vmem:[#allocation10 + $0x70] sm:$0xf]
        %v2798 = vld [vmem:[#allocation10 + $0x74] sm:$0xf]
        %v2799 = vld [vmem:[#allocation10 + $0x78] sm:$0xf]
        %v2800 = vld [vmem:[#allocation10 + $0x7c] sm:$0xf]
        %v2801 = vld [vmem:[#allocation11] sm:$0x1]
        %v2803 = vlaneseq
        %v2804 = vshrl.u32 %v2803, 7
        %v2805 = vsub.s32 0, %v2804
        %v2806 = vrot.slane %v2801, %v2805
        %v2840 = vunpack.c.l.b16 %v2769
        %v2841 = vunpack.c.l.b16 %v2770
        %v2842 = vunpack.c.l.b16 %v2771
        %v2843 = vunpack.c.l.b16 %v2772
        %v2844 = vunpack.c.l.b16 %v2773
        %v2845 = vunpack.c.l.b16 %v2774
        %v2846 = vunpack.c.l.b16 %v2775
        %v2847 = vunpack.c.l.b16 %v2776
        %v2848 = vunpack.c.l.b16 %v2777
        %v2849 = vunpack.c.l.b16 %v2778
        %v2850 = vunpack.c.l.b16 %v2779
        %v2851 = vunpack.c.l.b16 %v2780
        %v2852 = vunpack.c.l.b16 %v2781
        %v2853 = vunpack.c.l.b16 %v2782
        %v2854 = vunpack.c.l.b16 %v2783
        %v2855 = vunpack.c.l.b16 %v2784
        %v2856 = vunpack.c.l.b16 %v2785
        %v2857 = vunpack.c.l.b16 %v2786
        %v2858 = vunpack.c.l.b16 %v2787
        %v2859 = vunpack.c.l.b16 %v2788
        %v2860 = vunpack.c.l.b16 %v2789
        %v2861 = vunpack.c.l.b16 %v2790
        %v2862 = vunpack.c.l.b16 %v2791
        %v2863 = vunpack.c.l.b16 %v2792
        %v2864 = vunpack.c.l.b16 %v2793
        %v2865 = vunpack.c.l.b16 %v2794
        %v2866 = vunpack.c.l.b16 %v2795
        %v2867 = vunpack.c.l.b16 %v2796
        %v2868 = vunpack.c.l.b16 %v2797
        %v2869 = vunpack.c.l.b16 %v2798
        %v2870 = vunpack.c.l.b16 %v2799
        %v2871 = vunpack.c.l.b16 %v2800
        %v2872 = vpack.c.b16 %v2841, %v2840
        %v2873 = vpack.c.b16 %v2843, %v2842
        %v2874 = vpack.c.b16 %v2845, %v2844
        %v2875 = vpack.c.b16 %v2847, %v2846
        %v2876 = vpack.c.b16 %v2849, %v2848
        %v2877 = vpack.c.b16 %v2851, %v2850
        %v2878 = vpack.c.b16 %v2853, %v2852
        %v2879 = vpack.c.b16 %v2855, %v2854
        %v2880 = vpack.c.b16 %v2857, %v2856
        %v2881 = vpack.c.b16 %v2859, %v2858
        %v2882 = vpack.c.b16 %v2861, %v2860
        %v2883 = vpack.c.b16 %v2863, %v2862
        %v2884 = vpack.c.b16 %v2865, %v2864
        %v2885 = vpack.c.b16 %v2867, %v2866
        %v2886 = vpack.c.b16 %v2869, %v2868
        %v2887 = vpack.c.b16 %v2871, %v2870
        %2904 = vmatprep.subr.bf16.mxu0 0
        %2905 = vmatpush1.bf16.msra.mxu0 %v2879
        %2906 = vmatprep.subr.bf16.mxu0 0
        %2907 = vmatpush1.bf16.msra.mxu0 %v2878
        %2908 = vmatprep.subr.bf16.mxu0 0
        %2909 = vmatpush1.bf16.msra.mxu0 %v2877
        %2910 = vmatprep.subr.bf16.mxu0 0
        %2911 = vmatpush1.bf16.msra.mxu0 %v2876
        %2912 = vmatprep.subr.bf16.mxu0 0
        %2913 = vmatpush1.bf16.msra.mxu0 %v2875
        %2914 = vmatprep.subr.bf16.mxu0 0
        %2915 = vmatpush1.bf16.msra.mxu0 %v2874
        %2916 = vmatprep.subr.bf16.mxu0 0
        %2917 = vmatpush1.bf16.msra.mxu0 %v2873
        %2918 = vmatprep.subr.bf16.mxu0 0
        %2919 = vmatpush1.bf16.msra.mxu0 %v2872
        %2920 = vmatprep.subr.bf16.mxu0 0
        %2921 = vmatpush2.bf16.msra.mxu0 %v2887
        %2922 = vmatprep.subr.bf16.mxu0 0
        %2923 = vmatpush2.bf16.msra.mxu0 %v2886
        %2924 = vmatprep.subr.bf16.mxu0 0
        %2925 = vmatpush2.bf16.msra.mxu0 %v2885
        %2926 = vmatprep.subr.bf16.mxu0 0
        %2927 = vmatpush2.bf16.msra.mxu0 %v2884
        %2928 = vmatprep.subr.bf16.mxu0 0
        %2929 = vmatpush2.bf16.msra.mxu0 %v2883
        %2930 = vmatprep.subr.bf16.mxu0 0
        %2931 = vmatpush2.bf16.msra.mxu0 %v2882
        %2932 = vmatprep.subr.bf16.mxu0 0
        %2933 = vmatpush2.bf16.msra.mxu0 %v2881
        %2934 = vmatprep.subr.bf16.mxu0 0
        %2935 = vmatpush2.bf16.msra.mxu0 %v2880
        %2936 = vmatprep.mubr.bf16.mxu0 %v2768
        %2937 = vmatmul.mubr.bf16.gmra.mxu0 %v2767
        %v2938 = vpop.f32.mrf.mxu0
        %v2939 = vadd.f32 %v2806, %v2938
        %v2940 = vpop.f32.mrf.mxu0
        %v2941 = vpop.f32.mrf.mxu0
        %v2942 = vpop.f32.mrf.mxu0
        %2943 = vdwg.mxu0
        %v2944 = vmax.f32 %v2939, 0.0
        %v2945 = vpack.c.bf16 %v2944, %v2944
        %v2946 = vld [vmem:[%s7] sm:$0xf]
        %v2947 = vld [vmem:[%s7 + $0x4] sm:$0xf]
        %v2948 = vld [vmem:[%s7 + $0x8] sm:$0xf]
        %v2949 = vld [vmem:[%s7 + $0xc] sm:$0xf]
        %v2950 = vld [vmem:[%s7 + $0x10] sm:$0xf]
        %v2951 = vld [vmem:[%s7 + $0x14] sm:$0xf]
        %v2952 = vld [vmem:[%s7 + $0x18] sm:$0xf]
        %v2953 = vld [vmem:[%s7 + $0x1c] sm:$0xf]
        %v2954 = vld [vmem:[%s7 + $0x20] sm:$0xf]
        %v2955 = vld [vmem:[%s7 + $0x24] sm:$0xf]
        %v2956 = vld [vmem:[%s7 + $0x28] sm:$0xf]
        %v2957 = vld [vmem:[%s7 + $0x2c] sm:$0xf]
        %v2958 = vld [vmem:[%s7 + $0x30] sm:$0xf]
        %v2959 = vld [vmem:[%s7 + $0x34] sm:$0xf]
        %v2960 = vld [vmem:[%s7 + $0x38] sm:$0xf]
        %v2961 = vld [vmem:[%s7 + $0x3c] sm:$0xf]
        %v2962 = vld [vmem:[#allocation13] sm:$0x1]
        %v2964 = vlaneseq
        %v2965 = vshrl.u32 %v2964, 7
        %v2966 = vsub.s32 0, %v2965
        %v2967 = vrot.slane %v2962, %v2966
        %v2985 = vunpack.c.l.b16 %v2946
        %v2986 = vunpack.c.l.b16 %v2947
        %v2987 = vunpack.c.l.b16 %v2948
        %v2988 = vunpack.c.l.b16 %v2949
        %v2989 = vunpack.c.l.b16 %v2950
        %v2990 = vunpack.c.l.b16 %v2951
        %v2991 = vunpack.c.l.b16 %v2952
        %v2992 = vunpack.c.l.b16 %v2953
        %v2993 = vunpack.c.l.b16 %v2954
        %v2994 = vunpack.c.l.b16 %v2955
        %v2995 = vunpack.c.l.b16 %v2956
        %v2996 = vunpack.c.l.b16 %v2957
        %v2997 = vunpack.c.l.b16 %v2958
        %v2998 = vunpack.c.l.b16 %v2959
        %v2999 = vunpack.c.l.b16 %v2960
        %v3000 = vunpack.c.l.b16 %v2961
        %v3001 = vpack.c.b16 %v2986, %v2985
        %v3002 = vpack.c.b16 %v2988, %v2987
        %v3003 = vpack.c.b16 %v2990, %v2989
        %v3004 = vpack.c.b16 %v2992, %v2991
        %v3005 = vpack.c.b16 %v2994, %v2993
        %v3006 = vpack.c.b16 %v2996, %v2995
        %v3007 = vpack.c.b16 %v2998, %v2997
        %v3008 = vpack.c.b16 %v3000, %v2999
        %3017 = vmatprep.subr.bf16.mxu0 0
        %3018 = vmatpush1.bf16.msra.mxu0 %v3008
        %3019 = vmatprep.subr.bf16.mxu0 0
        %3020 = vmatpush1.bf16.msra.mxu0 %v3007
        %3021 = vmatprep.subr.bf16.mxu0 0
        %3022 = vmatpush1.bf16.msra.mxu0 %v3006
        %3023 = vmatprep.subr.bf16.mxu0 0
        %3024 = vmatpush1.bf16.msra.mxu0 %v3005
        %3025 = vmatprep.subr.bf16.mxu0 0
        %3026 = vmatpush1.bf16.msra.mxu0 %v3004
        %3027 = vmatprep.subr.bf16.mxu0 0
        %3028 = vmatpush1.bf16.msra.mxu0 %v3003
        %3029 = vmatprep.subr.bf16.mxu0 0
        %3030 = vmatpush1.bf16.msra.mxu0 %v3002
        %3031 = vmatprep.subr.bf16.mxu0 0
        %3032 = vmatpush1.bf16.msra.mxu0 %v3001
        %3033 = vmatprep.subr.bf16.mxu0 0
        %3034 = vmatpush2.bf16.msra.mxu0 0
        %3035 = vmatprep.subr.bf16.mxu0 0
        %3036 = vmatpush2.bf16.msra.mxu0 0
        %3037 = vmatprep.subr.bf16.mxu0 0
        %3038 = vmatpush2.bf16.msra.mxu0 0
        %3039 = vmatprep.subr.bf16.mxu0 0
        %3040 = vmatpush2.bf16.msra.mxu0 0
        %3041 = vmatprep.subr.bf16.mxu0 0
        %3042 = vmatpush2.bf16.msra.mxu0 0
        %3043 = vmatprep.subr.bf16.mxu0 0
        %3044 = vmatpush2.bf16.msra.mxu0 0
        %3045 = vmatprep.subr.bf16.mxu0 0
        %3046 = vmatpush2.bf16.msra.mxu0 0
        %3047 = vmatprep.subr.bf16.mxu0 0
        %3048 = vmatpush2.bf16.msra.mxu0 0
        %3049 = vmatprep.mubr.bf16.mxu0 0
        %3050 = vmatmul.mubr.bf16.gmra.mxu0 %v2945
        %v3051 = vpop.f32.mrf.mxu0
        %v3052 = vadd.f32 %v2967, %v3051
        %v3053 = vpop.f32.mrf.mxu0
        %v3054 = vpop.f32.mrf.mxu0
        %v3055 = vpop.f32.mrf.mxu0
        %3056 = vdwg.mxu0
        %v3057 = vld [vmem:[%s17] sm:$0xf]
        %v3058 = vld [vmem:[%s17 + $0x4] sm:$0xf]
        %v3059 = vld [vmem:[%s17 + $0x8] sm:$0xf]
        %v3060 = vld [vmem:[%s17 + $0xc] sm:$0xf]
        %v3061 = vld [vmem:[%s17 + $0x10] sm:$0xf]
        %v3062 = vld [vmem:[%s17 + $0x14] sm:$0xf]
        %v3063 = vld [vmem:[%s17 + $0x18] sm:$0xf]
        %v3064 = vld [vmem:[%s17 + $0x1c] sm:$0xf]
        %v3065 = vld [vmem:[%s17 + $0x20] sm:$0xf]
        %v3066 = vld [vmem:[%s17 + $0x24] sm:$0xf]
        %v3067 = vld [vmem:[%s17 + $0x28] sm:$0xf]
        %v3068 = vld [vmem:[%s17 + $0x2c] sm:$0xf]
        %v3069 = vld [vmem:[%s17 + $0x30] sm:$0xf]
        %v3070 = vld [vmem:[%s17 + $0x34] sm:$0xf]
        %v3071 = vld [vmem:[%s17 + $0x38] sm:$0xf]
        %v3072 = vld [vmem:[%s17 + $0x3c] sm:$0xf]
        %v3073 = vld [vmem:[%s17 + $0x40] sm:$0xf]
        %v3074 = vld [vmem:[%s17 + $0x44] sm:$0xf]
        %v3075 = vld [vmem:[%s17 + $0x48] sm:$0xf]
        %v3076 = vld [vmem:[%s17 + $0x4c] sm:$0xf]
        %v3077 = vld [vmem:[%s17 + $0x50] sm:$0xf]
        %v3078 = vld [vmem:[%s17 + $0x54] sm:$0xf]
        %v3079 = vld [vmem:[%s17 + $0x58] sm:$0xf]
        %v3080 = vld [vmem:[%s17 + $0x5c] sm:$0xf]
        %v3081 = vld [vmem:[%s17 + $0x60] sm:$0xf]
        %v3082 = vld [vmem:[%s17 + $0x64] sm:$0xf]
        %v3083 = vld [vmem:[%s17 + $0x68] sm:$0xf]
        %v3084 = vld [vmem:[%s17 + $0x6c] sm:$0xf]
        %v3085 = vld [vmem:[%s17 + $0x70] sm:$0xf]
        %v3086 = vld [vmem:[%s17 + $0x74] sm:$0xf]
        %v3087 = vld [vmem:[%s17 + $0x78] sm:$0xf]
        %v3088 = vld [vmem:[%s17 + $0x7c] sm:$0xf]
        %v3089 = vld [vmem:[%s18] sm:$0xf]
        %v3090 = vld [vmem:[%s18 + $0x4] sm:$0xf]
        %v3091 = vld [vmem:[%s18 + $0x8] sm:$0xf]
        %v3092 = vld [vmem:[%s18 + $0xc] sm:$0xf]
        %v3093 = vld [vmem:[%s18 + $0x10] sm:$0xf]
        %v3094 = vld [vmem:[%s18 + $0x14] sm:$0xf]
        %v3095 = vld [vmem:[%s18 + $0x18] sm:$0xf]
        %v3096 = vld [vmem:[%s18 + $0x1c] sm:$0xf]
        %v3097 = vld [vmem:[%s18 + $0x20] sm:$0xf]
        %v3098 = vld [vmem:[%s18 + $0x24] sm:$0xf]
        %v3099 = vld [vmem:[%s18 + $0x28] sm:$0xf]
        %v3100 = vld [vmem:[%s18 + $0x2c] sm:$0xf]
        %v3101 = vld [vmem:[%s18 + $0x30] sm:$0xf]
        %v3102 = vld [vmem:[%s18 + $0x34] sm:$0xf]
        %v3103 = vld [vmem:[%s18 + $0x38] sm:$0xf]
        %v3104 = vld [vmem:[%s18 + $0x3c] sm:$0xf]
        %v3105 = vld [vmem:[%s18 + $0x40] sm:$0xf]
        %v3106 = vld [vmem:[%s18 + $0x44] sm:$0xf]
        %v3107 = vld [vmem:[%s18 + $0x48] sm:$0xf]
        %v3108 = vld [vmem:[%s18 + $0x4c] sm:$0xf]
        %v3109 = vld [vmem:[%s18 + $0x50] sm:$0xf]
        %v3110 = vld [vmem:[%s18 + $0x54] sm:$0xf]
        %v3111 = vld [vmem:[%s18 + $0x58] sm:$0xf]
        %v3112 = vld [vmem:[%s18 + $0x5c] sm:$0xf]
        %v3113 = vld [vmem:[%s18 + $0x60] sm:$0xf]
        %v3114 = vld [vmem:[%s18 + $0x64] sm:$0xf]
        %v3115 = vld [vmem:[%s18 + $0x68] sm:$0xf]
        %v3116 = vld [vmem:[%s18 + $0x6c] sm:$0xf]
        %v3117 = vld [vmem:[%s18 + $0x70] sm:$0xf]
        %v3118 = vld [vmem:[%s18 + $0x74] sm:$0xf]
        %v3119 = vld [vmem:[%s18 + $0x78] sm:$0xf]
        %v3120 = vld [vmem:[%s18 + $0x7c] sm:$0xf]
        %v3121 = vld [vmem:[#allocation19] sm:$0xff]
        %v3122 = vld [vmem:[#allocation19 + $0x8] sm:$0xff]
        %v3123 = vld [vmem:[#allocation19 + $0x10] sm:$0xff]
        %v3124 = vld [vmem:[#allocation19 + $0x18] sm:$0xff]
        %v3125 = vld [vmem:[%s20] sm:$0x3]
        %v3126 = vpack.c.bf16 %v3052, %v3052
        %v3131 = vunpack.c.l.b16 %v3121
        %v3132 = vunpack.c.h.b16 %v3121
        %v3133 = vunpack.c.l.b16 %v3122
        %v3134 = vunpack.c.h.b16 %v3122
        %v3135 = vunpack.c.l.b16 %v3123
        %v3136 = vunpack.c.h.b16 %v3123
        %v3137 = vunpack.c.l.b16 %v3124
        %v3138 = vunpack.c.h.b16 %v3124
        %v3139 = vpack.c.b16 %v3133, %v3131
        %v3140 = vpack.c.b16 %v3134, %v3132
        %v3141 = vpack.c.b16 %v3137, %v3135
        %v3142 = vpack.c.b16 %v3138, %v3136
        %vm3147 = vcmask 261120
        %v3149 = vsel %vm3147, %v3126, 0
        %3151 = vmatprep.subr.bf16.mxu0 0
        %3152 = vmatpush1.bf16.msra.mxu0 0
        %3153 = vmatprep.subr.bf16.mxu0 0
        %3154 = vmatpush1.bf16.msra.mxu0 0
        %3155 = vmatprep.subr.bf16.mxu0 0
        %3156 = vmatpush1.bf16.msra.mxu0 0
        %3157 = vmatprep.subr.bf16.mxu0 0
        %3158 = vmatpush1.bf16.msra.mxu0 0
        %3159 = vmatprep.subr.bf16.mxu0 0
        %3160 = vmatpush1.bf16.msra.mxu0 0
        %3161 = vmatprep.subr.bf16.mxu0 0
        %3162 = vmatpush1.bf16.msra.mxu0 0
        %3163 = vmatprep.subr.bf16.mxu0 %v3142
        %3164 = vmatpush1.bf16.msra.mxu0 %v3141
        %3165 = vmatprep.subr.bf16.mxu0 %v3140
        %3166 = vmatpush1.bf16.msra.mxu0 %v3139
        %3167 = vmatprep.subr.bf16.mxu0 0
        %3168 = vmatpush2.bf16.msra.mxu0 0
        %3169 = vmatprep.subr.bf16.mxu0 0
        %3170 = vmatpush2.bf16.msra.mxu0 0
        %3171 = vmatprep.subr.bf16.mxu0 0
        %3172 = vmatpush2.bf16.msra.mxu0 0
        %3173 = vmatprep.subr.bf16.mxu0 0
        %3174 = vmatpush2.bf16.msra.mxu0 0
        %3175 = vmatprep.subr.bf16.mxu0 0
        %3176 = vmatpush2.bf16.msra.mxu0 0
        %3177 = vmatprep.subr.bf16.mxu0 0
        %3178 = vmatpush2.bf16.msra.mxu0 0
        %3179 = vmatprep.subr.bf16.mxu0 0
        %3180 = vmatpush2.bf16.msra.mxu0 0
        %3181 = vmatprep.subr.bf16.mxu0 0
        %3182 = vmatpush2.bf16.msra.mxu0 0
        %3183 = vmatprep.mubr.bf16.mxu0 0
        %3184 = vmatmul.mubr.bf16.gmra.mxu0 %v3149
        %v3185 = vpop.f32.mrf.mxu0
        %v3186 = vadd.f32 0.0, %v3185
        %v3187 = vpop.f32.mrf.mxu0
        %v3188 = vadd.f32 0.0, %v3187
        %v3189 = vpop.f32.mrf.mxu0
        %v3190 = vpop.f32.mrf.mxu0
        %3191 = vdwg.mxu0
        %v3192 = vmul.f32 %v3186, 2.0
        %v3193 = vmul.f32 %v3188, 2.0
        %v3195 = vlaneseq
        %v3196 = vshrl.u32 %v3195, 7
        %v3197 = vsub.s32 0, %v3196
        %v3198 = vrot.slane %v3125, %v3197
        %v3199 = vlaneseq
        %v3200 = vshrl.u32 %v3199, 7
        %v3201 = vsub.s32 1, %v3200
        %v3202 = vrot.slane %v3125, %v3201
        %v3205 = vsub.f32 %v3198, %v3192
        %v3206 = vsub.f32 %v3202, %v3193
        %v3207 = vmin.f32 %v3205, %v3206
        %3208 = vmin.xlane.f32.xlu0 %v3207
        %v3209 = vpop.xlane.xlu0 %3208
        %v3210 = vlaneseq
        %v3211 = vand.u32 %v3210, 127
        %v3212 = vadd.s32 %v3211, 128
        %vm3213 = vcmp.le.f32.partialorder %v3205, %v3209
        %vm3214 = vcmp.le.f32.partialorder %v3206, %v3209
        %v3215 = vsel %vm3213, %v3211, 256
        %v3216 = vsel %vm3214, %v3212, 256
        %vm3217 = vcmp.lt.s32.totalorder %v3215, %v3216
        %v3218 = vsel %vm3217, %v3215, %v3216
        %v3219 = vand.u32 %v3218, 65535
        %v3220 = vshra.s32 %v3218, 16
        %v3221 = vcvt.s32.f32 %v3219
        %v3222 = vcvt.s32.f32 %v3220
        %3223 = vmin.xlane.f32.xlu0 %v3222
        %v3224 = vpop.xlane.xlu0 %3223
        %vm3225 = vcmp.eq.f32.partialorder %v3222, %v3224
        %v3226 = vsel %vm3225, %v3221, inf
        %3227 = vmin.xlane.f32.xlu0 %v3226
        %v3228 = vpop.xlane.xlu0 %3227
        %v3229 = vcvt.f32.s32 %v3228
        %v3230 = vcvt.f32.s32 %v3224
        %v3231 = vshll.u32 %v3230, 16
        %v3232 = vadd.s32 %v3231, %v3229
        %vm3233 = vcmp.eq.s32.totalorder %v3211, %v3232
        %vm3234 = vcmp.eq.s32.totalorder %v3212, %v3232
        %v3235 = vsel %vm3233, 1, 0
        %v3236 = vsel %vm3234, 1, 0
        %v3237 = vcvt.s32.f32 %v3235
        %v3238 = vcvt.s32.f32 %v3236
        %v3239 = vpack.c.bf16 %v3237, %v3237
        %v3240 = vpack.c.bf16 %v3238, %v3238
        %v3273 = vunpack.c.l.b16 %v3089
        %v3274 = vunpack.c.l.b16 %v3090
        %v3275 = vunpack.c.l.b16 %v3091
        %v3276 = vunpack.c.l.b16 %v3092
        %v3277 = vunpack.c.l.b16 %v3093
        %v3278 = vunpack.c.l.b16 %v3094
        %v3279 = vunpack.c.l.b16 %v3095
        %v3280 = vunpack.c.l.b16 %v3096
        %v3281 = vunpack.c.l.b16 %v3097
        %v3282 = vunpack.c.l.b16 %v3098
        %v3283 = vunpack.c.l.b16 %v3099
        %v3284 = vunpack.c.l.b16 %v3100
        %v3285 = vunpack.c.l.b16 %v3101
        %v3286 = vunpack.c.l.b16 %v3102
        %v3287 = vunpack.c.l.b16 %v3103
        %v3288 = vunpack.c.l.b16 %v3104
        %v3289 = vunpack.c.l.b16 %v3105
        %v3290 = vunpack.c.l.b16 %v3106
        %v3291 = vunpack.c.l.b16 %v3107
        %v3292 = vunpack.c.l.b16 %v3108
        %v3293 = vunpack.c.l.b16 %v3109
        %v3294 = vunpack.c.l.b16 %v3110
        %v3295 = vunpack.c.l.b16 %v3111
        %v3296 = vunpack.c.l.b16 %v3112
        %v3297 = vunpack.c.l.b16 %v3113
        %v3298 = vunpack.c.l.b16 %v3114
        %v3299 = vunpack.c.l.b16 %v3115
        %v3300 = vunpack.c.l.b16 %v3116
        %v3301 = vunpack.c.l.b16 %v3117
        %v3302 = vunpack.c.l.b16 %v3118
        %v3303 = vunpack.c.l.b16 %v3119
        %v3304 = vunpack.c.l.b16 %v3120
        %v3305 = vpack.c.b16 %v3274, %v3273
        %v3306 = vpack.c.b16 %v3276, %v3275
        %v3307 = vpack.c.b16 %v3278, %v3277
        %v3308 = vpack.c.b16 %v3280, %v3279
        %v3309 = vpack.c.b16 %v3282, %v3281
        %v3310 = vpack.c.b16 %v3284, %v3283
        %v3311 = vpack.c.b16 %v3286, %v3285
        %v3312 = vpack.c.b16 %v3288, %v3287
        %v3313 = vpack.c.b16 %v3290, %v3289
        %v3314 = vpack.c.b16 %v3292, %v3291
        %v3315 = vpack.c.b16 %v3294, %v3293
        %v3316 = vpack.c.b16 %v3296, %v3295
        %v3317 = vpack.c.b16 %v3298, %v3297
        %v3318 = vpack.c.b16 %v3300, %v3299
        %v3319 = vpack.c.b16 %v3302, %v3301
        %v3320 = vpack.c.b16 %v3304, %v3303
        %3337 = vmatprep.subr.bf16.mxu0 0
        %3338 = vmatpush1.bf16.msra.mxu0 %v3312
        %3339 = vmatprep.subr.bf16.mxu0 0
        %3340 = vmatpush1.bf16.msra.mxu0 %v3311
        %3341 = vmatprep.subr.bf16.mxu0 0
        %3342 = vmatpush1.bf16.msra.mxu0 %v3310
        %3343 = vmatprep.subr.bf16.mxu0 0
        %3344 = vmatpush1.bf16.msra.mxu0 %v3309
        %3345 = vmatprep.subr.bf16.mxu0 0
        %3346 = vmatpush1.bf16.msra.mxu0 %v3308
        %3347 = vmatprep.subr.bf16.mxu0 0
        %3348 = vmatpush1.bf16.msra.mxu0 %v3307
        %3349 = vmatprep.subr.bf16.mxu0 0
        %3350 = vmatpush1.bf16.msra.mxu0 %v3306
        %3351 = vmatprep.subr.bf16.mxu0 0
        %3352 = vmatpush1.bf16.msra.mxu0 %v3305
        %3353 = vmatprep.subr.bf16.mxu0 0
        %3354 = vmatpush2.bf16.msra.mxu0 %v3320
        %3355 = vmatprep.subr.bf16.mxu0 0
        %3356 = vmatpush2.bf16.msra.mxu0 %v3319
        %3357 = vmatprep.subr.bf16.mxu0 0
        %3358 = vmatpush2.bf16.msra.mxu0 %v3318
        %3359 = vmatprep.subr.bf16.mxu0 0
        %3360 = vmatpush2.bf16.msra.mxu0 %v3317
        %3361 = vmatprep.subr.bf16.mxu0 0
        %3362 = vmatpush2.bf16.msra.mxu0 %v3316
        %3363 = vmatprep.subr.bf16.mxu0 0
        %3364 = vmatpush2.bf16.msra.mxu0 %v3315
        %3365 = vmatprep.subr.bf16.mxu0 0
        %3366 = vmatpush2.bf16.msra.mxu0 %v3314
        %3367 = vmatprep.subr.bf16.mxu0 0
        %3368 = vmatpush2.bf16.msra.mxu0 %v3313
        %3369 = vmatprep.mubr.bf16.mxu0 %v3240
        %3370 = vmatmul.mubr.bf16.gmra.mxu0 %v3239
        %v3371 = vpop.f32.mrf.mxu0
        %v3372 = vadd.f32 0.0, %v3371
        %v3373 = vpop.f32.mrf.mxu0
        %v3374 = vpop.f32.mrf.mxu0
        %v3375 = vpop.f32.mrf.mxu0
        %3376 = vdwg.mxu0
        %v3409 = vunpack.c.l.b16 %v3057
        %v3410 = vunpack.c.l.b16 %v3058
        %v3411 = vunpack.c.l.b16 %v3059
        %v3412 = vunpack.c.l.b16 %v3060
        %v3413 = vunpack.c.l.b16 %v3061
        %v3414 = vunpack.c.l.b16 %v3062
        %v3415 = vunpack.c.l.b16 %v3063
        %v3416 = vunpack.c.l.b16 %v3064
        %v3417 = vunpack.c.l.b16 %v3065
        %v3418 = vunpack.c.l.b16 %v3066
        %v3419 = vunpack.c.l.b16 %v3067
        %v3420 = vunpack.c.l.b16 %v3068
        %v3421 = vunpack.c.l.b16 %v3069
        %v3422 = vunpack.c.l.b16 %v3070
        %v3423 = vunpack.c.l.b16 %v3071
        %v3424 = vunpack.c.l.b16 %v3072
        %v3425 = vunpack.c.l.b16 %v3073
        %v3426 = vunpack.c.l.b16 %v3074
        %v3427 = vunpack.c.l.b16 %v3075
        %v3428 = vunpack.c.l.b16 %v3076
        %v3429 = vunpack.c.l.b16 %v3077
        %v3430 = vunpack.c.l.b16 %v3078
        %v3431 = vunpack.c.l.b16 %v3079
        %v3432 = vunpack.c.l.b16 %v3080
        %v3433 = vunpack.c.l.b16 %v3081
        %v3434 = vunpack.c.l.b16 %v3082
        %v3435 = vunpack.c.l.b16 %v3083
        %v3436 = vunpack.c.l.b16 %v3084
        %v3437 = vunpack.c.l.b16 %v3085
        %v3438 = vunpack.c.l.b16 %v3086
        %v3439 = vunpack.c.l.b16 %v3087
        %v3440 = vunpack.c.l.b16 %v3088
        %v3441 = vpack.c.b16 %v3410, %v3409
        %v3442 = vpack.c.b16 %v3412, %v3411
        %v3443 = vpack.c.b16 %v3414, %v3413
        %v3444 = vpack.c.b16 %v3416, %v3415
        %v3445 = vpack.c.b16 %v3418, %v3417
        %v3446 = vpack.c.b16 %v3420, %v3419
        %v3447 = vpack.c.b16 %v3422, %v3421
        %v3448 = vpack.c.b16 %v3424, %v3423
        %v3449 = vpack.c.b16 %v3426, %v3425
        %v3450 = vpack.c.b16 %v3428, %v3427
        %v3451 = vpack.c.b16 %v3430, %v3429
        %v3452 = vpack.c.b16 %v3432, %v3431
        %v3453 = vpack.c.b16 %v3434, %v3433
        %v3454 = vpack.c.b16 %v3436, %v3435
        %v3455 = vpack.c.b16 %v3438, %v3437
        %v3456 = vpack.c.b16 %v3440, %v3439
        %3473 = vmatprep.subr.bf16.mxu0 0
        %3474 = vmatpush1.bf16.msra.mxu0 %v3448
        %3475 = vmatprep.subr.bf16.mxu0 0
        %3476 = vmatpush1.bf16.msra.mxu0 %v3447
        %3477 = vmatprep.subr.bf16.mxu0 0
        %3478 = vmatpush1.bf16.msra.mxu0 %v3446
        %3479 = vmatprep.subr.bf16.mxu0 0
        %3480 = vmatpush1.bf16.msra.mxu0 %v3445
        %3481 = vmatprep.subr.bf16.mxu0 0
        %3482 = vmatpush1.bf16.msra.mxu0 %v3444
        %3483 = vmatprep.subr.bf16.mxu0 0
        %3484 = vmatpush1.bf16.msra.mxu0 %v3443
        %3485 = vmatprep.subr.bf16.mxu0 0
        %3486 = vmatpush1.bf16.msra.mxu0 %v3442
        %3487 = vmatprep.subr.bf16.mxu0 0
        %3488 = vmatpush1.bf16.msra.mxu0 %v3441
        %3489 = vmatprep.subr.bf16.mxu0 0
        %3490 = vmatpush2.bf16.msra.mxu0 %v3456
        %3491 = vmatprep.subr.bf16.mxu0 0
        %3492 = vmatpush2.bf16.msra.mxu0 %v3455
        %3493 = vmatprep.subr.bf16.mxu0 0
        %3494 = vmatpush2.bf16.msra.mxu0 %v3454
        %3495 = vmatprep.subr.bf16.mxu0 0
        %3496 = vmatpush2.bf16.msra.mxu0 %v3453
        %3497 = vmatprep.subr.bf16.mxu0 0
        %3498 = vmatpush2.bf16.msra.mxu0 %v3452
        %3499 = vmatprep.subr.bf16.mxu0 0
        %3500 = vmatpush2.bf16.msra.mxu0 %v3451
        %3501 = vmatprep.subr.bf16.mxu0 0
        %3502 = vmatpush2.bf16.msra.mxu0 %v3450
        %3503 = vmatprep.subr.bf16.mxu0 0
        %3504 = vmatpush2.bf16.msra.mxu0 %v3449
        %3505 = vmatprep.mubr.bf16.mxu0 %v3240
        %3506 = vmatmul.mubr.bf16.gmra.mxu0 %v3239
        %v3507 = vpop.f32.mrf.mxu0
        %v3508 = vadd.f32 %v3372, %v3507
        %v3509 = vpop.f32.mrf.mxu0
        %v3510 = vpop.f32.mrf.mxu0
        %v3511 = vpop.f32.mrf.mxu0
        %3512 = vdwg.mxu0
        %v3513 = vsub.f32 %v3052, %v3508
        %s3514 = scalar_lea.vmem %s17, 128
        %v3515 = vld [vmem:[%s3514] sm:$0xf]
        %v3516 = vld [vmem:[%s3514 + $0x4] sm:$0xf]
        %v3517 = vld [vmem:[%s3514 + $0x8] sm:$0xf]
        %v3518 = vld [vmem:[%s3514 + $0xc] sm:$0xf]
        %v3519 = vld [vmem:[%s3514 + $0x10] sm:$0xf]
        %v3520 = vld [vmem:[%s3514 + $0x14] sm:$0xf]
        %v3521 = vld [vmem:[%s3514 + $0x18] sm:$0xf]
        %v3522 = vld [vmem:[%s3514 + $0x1c] sm:$0xf]
        %v3523 = vld [vmem:[%s3514 + $0x20] sm:$0xf]
        %v3524 = vld [vmem:[%s3514 + $0x24] sm:$0xf]
        %v3525 = vld [vmem:[%s3514 + $0x28] sm:$0xf]
        %v3526 = vld [vmem:[%s3514 + $0x2c] sm:$0xf]
        %v3527 = vld [vmem:[%s3514 + $0x30] sm:$0xf]
        %v3528 = vld [vmem:[%s3514 + $0x34] sm:$0xf]
        %v3529 = vld [vmem:[%s3514 + $0x38] sm:$0xf]
        %v3530 = vld [vmem:[%s3514 + $0x3c] sm:$0xf]
        %v3531 = vld [vmem:[%s3514 + $0x40] sm:$0xf]
        %v3532 = vld [vmem:[%s3514 + $0x44] sm:$0xf]
        %v3533 = vld [vmem:[%s3514 + $0x48] sm:$0xf]
        %v3534 = vld [vmem:[%s3514 + $0x4c] sm:$0xf]
        %v3535 = vld [vmem:[%s3514 + $0x50] sm:$0xf]
        %v3536 = vld [vmem:[%s3514 + $0x54] sm:$0xf]
        %v3537 = vld [vmem:[%s3514 + $0x58] sm:$0xf]
        %v3538 = vld [vmem:[%s3514 + $0x5c] sm:$0xf]
        %v3539 = vld [vmem:[%s3514 + $0x60] sm:$0xf]
        %v3540 = vld [vmem:[%s3514 + $0x64] sm:$0xf]
        %v3541 = vld [vmem:[%s3514 + $0x68] sm:$0xf]
        %v3542 = vld [vmem:[%s3514 + $0x6c] sm:$0xf]
        %v3543 = vld [vmem:[%s3514 + $0x70] sm:$0xf]
        %v3544 = vld [vmem:[%s3514 + $0x74] sm:$0xf]
        %v3545 = vld [vmem:[%s3514 + $0x78] sm:$0xf]
        %v3546 = vld [vmem:[%s3514 + $0x7c] sm:$0xf]
        %s3547 = scalar_lea.vmem %s18, 128
        %v3548 = vld [vmem:[%s3547] sm:$0xf]
        %v3549 = vld [vmem:[%s3547 + $0x4] sm:$0xf]
        %v3550 = vld [vmem:[%s3547 + $0x8] sm:$0xf]
        %v3551 = vld [vmem:[%s3547 + $0xc] sm:$0xf]
        %v3552 = vld [vmem:[%s3547 + $0x10] sm:$0xf]
        %v3553 = vld [vmem:[%s3547 + $0x14] sm:$0xf]
        %v3554 = vld [vmem:[%s3547 + $0x18] sm:$0xf]
        %v3555 = vld [vmem:[%s3547 + $0x1c] sm:$0xf]
        %v3556 = vld [vmem:[%s3547 + $0x20] sm:$0xf]
        %v3557 = vld [vmem:[%s3547 + $0x24] sm:$0xf]
        %v3558 = vld [vmem:[%s3547 + $0x28] sm:$0xf]
        %v3559 = vld [vmem:[%s3547 + $0x2c] sm:$0xf]
        %v3560 = vld [vmem:[%s3547 + $0x30] sm:$0xf]
        %v3561 = vld [vmem:[%s3547 + $0x34] sm:$0xf]
        %v3562 = vld [vmem:[%s3547 + $0x38] sm:$0xf]
        %v3563 = vld [vmem:[%s3547 + $0x3c] sm:$0xf]
        %v3564 = vld [vmem:[%s3547 + $0x40] sm:$0xf]
        %v3565 = vld [vmem:[%s3547 + $0x44] sm:$0xf]
        %v3566 = vld [vmem:[%s3547 + $0x48] sm:$0xf]
        %v3567 = vld [vmem:[%s3547 + $0x4c] sm:$0xf]
        %v3568 = vld [vmem:[%s3547 + $0x50] sm:$0xf]
        %v3569 = vld [vmem:[%s3547 + $0x54] sm:$0xf]
        %v3570 = vld [vmem:[%s3547 + $0x58] sm:$0xf]
        %v3571 = vld [vmem:[%s3547 + $0x5c] sm:$0xf]
        %v3572 = vld [vmem:[%s3547 + $0x60] sm:$0xf]
        %v3573 = vld [vmem:[%s3547 + $0x64] sm:$0xf]
        %v3574 = vld [vmem:[%s3547 + $0x68] sm:$0xf]
        %v3575 = vld [vmem:[%s3547 + $0x6c] sm:$0xf]
        %v3576 = vld [vmem:[%s3547 + $0x70] sm:$0xf]
        %v3577 = vld [vmem:[%s3547 + $0x74] sm:$0xf]
        %v3578 = vld [vmem:[%s3547 + $0x78] sm:$0xf]
        %v3579 = vld [vmem:[%s3547 + $0x7c] sm:$0xf]
        %s3580 = scalar_lea.vmem [#allocation19], 32
        %v3581 = vld [vmem:[%s3580] sm:$0xff]
        %v3582 = vld [vmem:[%s3580 + $0x8] sm:$0xff]
        %v3583 = vld [vmem:[%s3580 + $0x10] sm:$0xff]
        %v3584 = vld [vmem:[%s3580 + $0x18] sm:$0xff]
        %s3585 = scalar_lea.vmem %s20, 2
        %v3586 = vld [vmem:[%s3585] sm:$0x3]
        %v3587 = vpack.c.bf16 %v3513, %v3513
        %v3592 = vunpack.c.l.b16 %v3581
        %v3593 = vunpack.c.h.b16 %v3581
        %v3594 = vunpack.c.l.b16 %v3582
        %v3595 = vunpack.c.h.b16 %v3582
        %v3596 = vunpack.c.l.b16 %v3583
        %v3597 = vunpack.c.h.b16 %v3583
        %v3598 = vunpack.c.l.b16 %v3584
        %v3599 = vunpack.c.h.b16 %v3584
        %v3600 = vpack.c.b16 %v3594, %v3592
        %v3601 = vpack.c.b16 %v3595, %v3593
        %v3602 = vpack.c.b16 %v3598, %v3596
        %v3603 = vpack.c.b16 %v3599, %v3597
        %v3609 = vsel %vm3147, %v3587, 0
        %3611 = vmatprep.subr.bf16.mxu0 0
        %3612 = vmatpush1.bf16.msra.mxu0 0
        %3613 = vmatprep.subr.bf16.mxu0 0
        %3614 = vmatpush1.bf16.msra.mxu0 0
        %3615 = vmatprep.subr.bf16.mxu0 0
        %3616 = vmatpush1.bf16.msra.mxu0 0
        %3617 = vmatprep.subr.bf16.mxu0 0
        %3618 = vmatpush1.bf16.msra.mxu0 0
        %3619 = vmatprep.subr.bf16.mxu0 0
        %3620 = vmatpush1.bf16.msra.mxu0 0
        %3621 = vmatprep.subr.bf16.mxu0 0
        %3622 = vmatpush1.bf16.msra.mxu0 0
        %3623 = vmatprep.subr.bf16.mxu0 %v3603
        %3624 = vmatpush1.bf16.msra.mxu0 %v3602
        %3625 = vmatprep.subr.bf16.mxu0 %v3601
        %3626 = vmatpush1.bf16.msra.mxu0 %v3600
        %3627 = vmatprep.subr.bf16.mxu0 0
        %3628 = vmatpush2.bf16.msra.mxu0 0
        %3629 = vmatprep.subr.bf16.mxu0 0
        %3630 = vmatpush2.bf16.msra.mxu0 0
        %3631 = vmatprep.subr.bf16.mxu0 0
        %3632 = vmatpush2.bf16.msra.mxu0 0
        %3633 = vmatprep.subr.bf16.mxu0 0
        %3634 = vmatpush2.bf16.msra.mxu0 0
        %3635 = vmatprep.subr.bf16.mxu0 0
        %3636 = vmatpush2.bf16.msra.mxu0 0
        %3637 = vmatprep.subr.bf16.mxu0 0
        %3638 = vmatpush2.bf16.msra.mxu0 0
        %3639 = vmatprep.subr.bf16.mxu0 0
        %3640 = vmatpush2.bf16.msra.mxu0 0
        %3641 = vmatprep.subr.bf16.mxu0 0
        %3642 = vmatpush2.bf16.msra.mxu0 0
        %3643 = vmatprep.mubr.bf16.mxu0 0
        %3644 = vmatmul.mubr.bf16.gmra.mxu0 %v3609
        %v3645 = vpop.f32.mrf.mxu0
        %v3646 = vadd.f32 0.0, %v3645
        %v3647 = vpop.f32.mrf.mxu0
        %v3648 = vadd.f32 0.0, %v3647
        %v3649 = vpop.f32.mrf.mxu0
        %v3650 = vpop.f32.mrf.mxu0
        %3651 = vdwg.mxu0
        %v3652 = vmul.f32 %v3646, 2.0
        %v3653 = vmul.f32 %v3648, 2.0
        %v3655 = vlaneseq
        %v3656 = vshrl.u32 %v3655, 7
        %v3657 = vsub.s32 0, %v3656
        %v3658 = vrot.slane %v3586, %v3657
        %v3659 = vlaneseq
        %v3660 = vshrl.u32 %v3659, 7
        %v3661 = vsub.s32 1, %v3660
        %v3662 = vrot.slane %v3586, %v3661
        %v3665 = vsub.f32 %v3658, %v3652
        %v3666 = vsub.f32 %v3662, %v3653
        %v3667 = vmin.f32 %v3665, %v3666
        %3668 = vmin.xlane.f32.xlu0 %v3667
        %v3669 = vpop.xlane.xlu0 %3668
        %vm3670 = vcmp.le.f32.partialorder %v3665, %v3669
        %vm3671 = vcmp.le.f32.partialorder %v3666, %v3669
        %v3672 = vsel %vm3670, %v3211, 256
        %v3673 = vsel %vm3671, %v3212, 256
        %vm3674 = vcmp.lt.s32.totalorder %v3672, %v3673
        %v3675 = vsel %vm3674, %v3672, %v3673
        %v3676 = vand.u32 %v3675, 65535
        %v3677 = vshra.s32 %v3675, 16
        %v3678 = vcvt.s32.f32 %v3676
        %v3679 = vcvt.s32.f32 %v3677
        %3680 = vmin.xlane.f32.xlu0 %v3679
        %v3681 = vpop.xlane.xlu0 %3680
        %vm3682 = vcmp.eq.f32.partialorder %v3679, %v3681
        %v3683 = vsel %vm3682, %v3678, inf
        %3684 = vmin.xlane.f32.xlu0 %v3683
        %v3685 = vpop.xlane.xlu0 %3684
        %v3686 = vcvt.f32.s32 %v3685
        %v3687 = vcvt.f32.s32 %v3681
        %v3688 = vshll.u32 %v3687, 16
        %v3689 = vadd.s32 %v3688, %v3686
        %vm3690 = vcmp.eq.s32.totalorder %v3211, %v3689
        %vm3691 = vcmp.eq.s32.totalorder %v3212, %v3689
        %v3692 = vsel %vm3690, 1, 0
        %v3693 = vsel %vm3691, 1, 0
        %v3694 = vcvt.s32.f32 %v3692
        %v3695 = vcvt.s32.f32 %v3693
        %v3696 = vpack.c.bf16 %v3694, %v3694
        %v3697 = vpack.c.bf16 %v3695, %v3695
        %v3730 = vunpack.c.l.b16 %v3548
        %v3731 = vunpack.c.l.b16 %v3549
        %v3732 = vunpack.c.l.b16 %v3550
        %v3733 = vunpack.c.l.b16 %v3551
        %v3734 = vunpack.c.l.b16 %v3552
        %v3735 = vunpack.c.l.b16 %v3553
        %v3736 = vunpack.c.l.b16 %v3554
        %v3737 = vunpack.c.l.b16 %v3555
        %v3738 = vunpack.c.l.b16 %v3556
        %v3739 = vunpack.c.l.b16 %v3557
        %v3740 = vunpack.c.l.b16 %v3558
        %v3741 = vunpack.c.l.b16 %v3559
        %v3742 = vunpack.c.l.b16 %v3560
        %v3743 = vunpack.c.l.b16 %v3561
        %v3744 = vunpack.c.l.b16 %v3562
        %v3745 = vunpack.c.l.b16 %v3563
        %v3746 = vunpack.c.l.b16 %v3564
        %v3747 = vunpack.c.l.b16 %v3565
        %v3748 = vunpack.c.l.b16 %v3566
        %v3749 = vunpack.c.l.b16 %v3567
        %v3750 = vunpack.c.l.b16 %v3568
        %v3751 = vunpack.c.l.b16 %v3569
        %v3752 = vunpack.c.l.b16 %v3570
        %v3753 = vunpack.c.l.b16 %v3571
        %v3754 = vunpack.c.l.b16 %v3572
        %v3755 = vunpack.c.l.b16 %v3573
        %v3756 = vunpack.c.l.b16 %v3574
        %v3757 = vunpack.c.l.b16 %v3575
        %v3758 = vunpack.c.l.b16 %v3576
        %v3759 = vunpack.c.l.b16 %v3577
        %v3760 = vunpack.c.l.b16 %v3578
        %v3761 = vunpack.c.l.b16 %v3579
        %v3762 = vpack.c.b16 %v3731, %v3730
        %v3763 = vpack.c.b16 %v3733, %v3732
        %v3764 = vpack.c.b16 %v3735, %v3734
        %v3765 = vpack.c.b16 %v3737, %v3736
        %v3766 = vpack.c.b16 %v3739, %v3738
        %v3767 = vpack.c.b16 %v3741, %v3740
        %v3768 = vpack.c.b16 %v3743, %v3742
        %v3769 = vpack.c.b16 %v3745, %v3744
        %v3770 = vpack.c.b16 %v3747, %v3746
        %v3771 = vpack.c.b16 %v3749, %v3748
        %v3772 = vpack.c.b16 %v3751, %v3750
        %v3773 = vpack.c.b16 %v3753, %v3752
        %v3774 = vpack.c.b16 %v3755, %v3754
        %v3775 = vpack.c.b16 %v3757, %v3756
        %v3776 = vpack.c.b16 %v3759, %v3758
        %v3777 = vpack.c.b16 %v3761, %v3760
        %3794 = vmatprep.subr.bf16.mxu0 0
        %3795 = vmatpush1.bf16.msra.mxu0 %v3769
        %3796 = vmatprep.subr.bf16.mxu0 0
        %3797 = vmatpush1.bf16.msra.mxu0 %v3768
        %3798 = vmatprep.subr.bf16.mxu0 0
        %3799 = vmatpush1.bf16.msra.mxu0 %v3767
        %3800 = vmatprep.subr.bf16.mxu0 0
        %3801 = vmatpush1.bf16.msra.mxu0 %v3766
        %3802 = vmatprep.subr.bf16.mxu0 0
        %3803 = vmatpush1.bf16.msra.mxu0 %v3765
        %3804 = vmatprep.subr.bf16.mxu0 0
        %3805 = vmatpush1.bf16.msra.mxu0 %v3764
        %3806 = vmatprep.subr.bf16.mxu0 0
        %3807 = vmatpush1.bf16.msra.mxu0 %v3763
        %3808 = vmatprep.subr.bf16.mxu0 0
        %3809 = vmatpush1.bf16.msra.mxu0 %v3762
        %3810 = vmatprep.subr.bf16.mxu0 0
        %3811 = vmatpush2.bf16.msra.mxu0 %v3777
        %3812 = vmatprep.subr.bf16.mxu0 0
        %3813 = vmatpush2.bf16.msra.mxu0 %v3776
        %3814 = vmatprep.subr.bf16.mxu0 0
        %3815 = vmatpush2.bf16.msra.mxu0 %v3775
        %3816 = vmatprep.subr.bf16.mxu0 0
        %3817 = vmatpush2.bf16.msra.mxu0 %v3774
        %3818 = vmatprep.subr.bf16.mxu0 0
        %3819 = vmatpush2.bf16.msra.mxu0 %v3773
        %3820 = vmatprep.subr.bf16.mxu0 0
        %3821 = vmatpush2.bf16.msra.mxu0 %v3772
        %3822 = vmatprep.subr.bf16.mxu0 0
        %3823 = vmatpush2.bf16.msra.mxu0 %v3771
        %3824 = vmatprep.subr.bf16.mxu0 0
        %3825 = vmatpush2.bf16.msra.mxu0 %v3770
        %3826 = vmatprep.mubr.bf16.mxu0 %v3697
        %3827 = vmatmul.mubr.bf16.gmra.mxu0 %v3696
        %v3828 = vpop.f32.mrf.mxu0
        %v3829 = vadd.f32 0.0, %v3828
        %v3830 = vpop.f32.mrf.mxu0
        %v3831 = vpop.f32.mrf.mxu0
        %v3832 = vpop.f32.mrf.mxu0
        %3833 = vdwg.mxu0
        %v3866 = vunpack.c.l.b16 %v3515
        %v3867 = vunpack.c.l.b16 %v3516
        %v3868 = vunpack.c.l.b16 %v3517
        %v3869 = vunpack.c.l.b16 %v3518
        %v3870 = vunpack.c.l.b16 %v3519
        %v3871 = vunpack.c.l.b16 %v3520
        %v3872 = vunpack.c.l.b16 %v3521
        %v3873 = vunpack.c.l.b16 %v3522
        %v3874 = vunpack.c.l.b16 %v3523
        %v3875 = vunpack.c.l.b16 %v3524
        %v3876 = vunpack.c.l.b16 %v3525
        %v3877 = vunpack.c.l.b16 %v3526
        %v3878 = vunpack.c.l.b16 %v3527
        %v3879 = vunpack.c.l.b16 %v3528
        %v3880 = vunpack.c.l.b16 %v3529
        %v3881 = vunpack.c.l.b16 %v3530
        %v3882 = vunpack.c.l.b16 %v3531
        %v3883 = vunpack.c.l.b16 %v3532
        %v3884 = vunpack.c.l.b16 %v3533
        %v3885 = vunpack.c.l.b16 %v3534
        %v3886 = vunpack.c.l.b16 %v3535
        %v3887 = vunpack.c.l.b16 %v3536
        %v3888 = vunpack.c.l.b16 %v3537
        %v3889 = vunpack.c.l.b16 %v3538
        %v3890 = vunpack.c.l.b16 %v3539
        %v3891 = vunpack.c.l.b16 %v3540
        %v3892 = vunpack.c.l.b16 %v3541
        %v3893 = vunpack.c.l.b16 %v3542
        %v3894 = vunpack.c.l.b16 %v3543
        %v3895 = vunpack.c.l.b16 %v3544
        %v3896 = vunpack.c.l.b16 %v3545
        %v3897 = vunpack.c.l.b16 %v3546
        %v3898 = vpack.c.b16 %v3867, %v3866
        %v3899 = vpack.c.b16 %v3869, %v3868
        %v3900 = vpack.c.b16 %v3871, %v3870
        %v3901 = vpack.c.b16 %v3873, %v3872
        %v3902 = vpack.c.b16 %v3875, %v3874
        %v3903 = vpack.c.b16 %v3877, %v3876
        %v3904 = vpack.c.b16 %v3879, %v3878
        %v3905 = vpack.c.b16 %v3881, %v3880
        %v3906 = vpack.c.b16 %v3883, %v3882
        %v3907 = vpack.c.b16 %v3885, %v3884
        %v3908 = vpack.c.b16 %v3887, %v3886
        %v3909 = vpack.c.b16 %v3889, %v3888
        %v3910 = vpack.c.b16 %v3891, %v3890
        %v3911 = vpack.c.b16 %v3893, %v3892
        %v3912 = vpack.c.b16 %v3895, %v3894
        %v3913 = vpack.c.b16 %v3897, %v3896
        %3930 = vmatprep.subr.bf16.mxu0 0
        %3931 = vmatpush1.bf16.msra.mxu0 %v3905
        %3932 = vmatprep.subr.bf16.mxu0 0
        %3933 = vmatpush1.bf16.msra.mxu0 %v3904
        %3934 = vmatprep.subr.bf16.mxu0 0
        %3935 = vmatpush1.bf16.msra.mxu0 %v3903
        %3936 = vmatprep.subr.bf16.mxu0 0
        %3937 = vmatpush1.bf16.msra.mxu0 %v3902
        %3938 = vmatprep.subr.bf16.mxu0 0
        %3939 = vmatpush1.bf16.msra.mxu0 %v3901
        %3940 = vmatprep.subr.bf16.mxu0 0
        %3941 = vmatpush1.bf16.msra.mxu0 %v3900
        %3942 = vmatprep.subr.bf16.mxu0 0
        %3943 = vmatpush1.bf16.msra.mxu0 %v3899
        %3944 = vmatprep.subr.bf16.mxu0 0
        %3945 = vmatpush1.bf16.msra.mxu0 %v3898
        %3946 = vmatprep.subr.bf16.mxu0 0
        %3947 = vmatpush2.bf16.msra.mxu0 %v3913
        %3948 = vmatprep.subr.bf16.mxu0 0
        %3949 = vmatpush2.bf16.msra.mxu0 %v3912
        %3950 = vmatprep.subr.bf16.mxu0 0
        %3951 = vmatpush2.bf16.msra.mxu0 %v3911
        %3952 = vmatprep.subr.bf16.mxu0 0
        %3953 = vmatpush2.bf16.msra.mxu0 %v3910
        %3954 = vmatprep.subr.bf16.mxu0 0
        %3955 = vmatpush2.bf16.msra.mxu0 %v3909
        %3956 = vmatprep.subr.bf16.mxu0 0
        %3957 = vmatpush2.bf16.msra.mxu0 %v3908
        %3958 = vmatprep.subr.bf16.mxu0 0
        %3959 = vmatpush2.bf16.msra.mxu0 %v3907
        %3960 = vmatprep.subr.bf16.mxu0 0
        %3961 = vmatpush2.bf16.msra.mxu0 %v3906
        %3962 = vmatprep.mubr.bf16.mxu0 %v3697
        %3963 = vmatmul.mubr.bf16.gmra.mxu0 %v3696
        %v3964 = vpop.f32.mrf.mxu0
        %v3965 = vadd.f32 %v3829, %v3964
        %v3966 = vpop.f32.mrf.mxu0
        %v3967 = vpop.f32.mrf.mxu0
        %v3968 = vpop.f32.mrf.mxu0
        %3969 = vdwg.mxu0
        %v3970 = vsub.f32 %v3513, %v3965
        %s3971 = scalar_lea.vmem %s17, 256
        %v3972 = vld [vmem:[%s3971] sm:$0xf]
        %v3973 = vld [vmem:[%s3971 + $0x4] sm:$0xf]
        %v3974 = vld [vmem:[%s3971 + $0x8] sm:$0xf]
        %v3975 = vld [vmem:[%s3971 + $0xc] sm:$0xf]
        %v3976 = vld [vmem:[%s3971 + $0x10] sm:$0xf]
        %v3977 = vld [vmem:[%s3971 + $0x14] sm:$0xf]
        %v3978 = vld [vmem:[%s3971 + $0x18] sm:$0xf]
        %v3979 = vld [vmem:[%s3971 + $0x1c] sm:$0xf]
        %v3980 = vld [vmem:[%s3971 + $0x20] sm:$0xf]
        %v3981 = vld [vmem:[%s3971 + $0x24] sm:$0xf]
        %v3982 = vld [vmem:[%s3971 + $0x28] sm:$0xf]
        %v3983 = vld [vmem:[%s3971 + $0x2c] sm:$0xf]
        %v3984 = vld [vmem:[%s3971 + $0x30] sm:$0xf]
        %v3985 = vld [vmem:[%s3971 + $0x34] sm:$0xf]
        %v3986 = vld [vmem:[%s3971 + $0x38] sm:$0xf]
        %v3987 = vld [vmem:[%s3971 + $0x3c] sm:$0xf]
        %v3988 = vld [vmem:[%s3971 + $0x40] sm:$0xf]
        %v3989 = vld [vmem:[%s3971 + $0x44] sm:$0xf]
        %v3990 = vld [vmem:[%s3971 + $0x48] sm:$0xf]
        %v3991 = vld [vmem:[%s3971 + $0x4c] sm:$0xf]
        %v3992 = vld [vmem:[%s3971 + $0x50] sm:$0xf]
        %v3993 = vld [vmem:[%s3971 + $0x54] sm:$0xf]
        %v3994 = vld [vmem:[%s3971 + $0x58] sm:$0xf]
        %v3995 = vld [vmem:[%s3971 + $0x5c] sm:$0xf]
        %v3996 = vld [vmem:[%s3971 + $0x60] sm:$0xf]
        %v3997 = vld [vmem:[%s3971 + $0x64] sm:$0xf]
        %v3998 = vld [vmem:[%s3971 + $0x68] sm:$0xf]
        %v3999 = vld [vmem:[%s3971 + $0x6c] sm:$0xf]
        %v4000 = vld [vmem:[%s3971 + $0x70] sm:$0xf]
        %v4001 = vld [vmem:[%s3971 + $0x74] sm:$0xf]
        %v4002 = vld [vmem:[%s3971 + $0x78] sm:$0xf]
        %v4003 = vld [vmem:[%s3971 + $0x7c] sm:$0xf]
        %s4004 = scalar_lea.vmem %s18, 256
        %v4005 = vld [vmem:[%s4004] sm:$0xf]
        %v4006 = vld [vmem:[%s4004 + $0x4] sm:$0xf]
        %v4007 = vld [vmem:[%s4004 + $0x8] sm:$0xf]
        %v4008 = vld [vmem:[%s4004 + $0xc] sm:$0xf]
        %v4009 = vld [vmem:[%s4004 + $0x10] sm:$0xf]
        %v4010 = vld [vmem:[%s4004 + $0x14] sm:$0xf]
        %v4011 = vld [vmem:[%s4004 + $0x18] sm:$0xf]
        %v4012 = vld [vmem:[%s4004 + $0x1c] sm:$0xf]
        %v4013 = vld [vmem:[%s4004 + $0x20] sm:$0xf]
        %v4014 = vld [vmem:[%s4004 + $0x24] sm:$0xf]
        %v4015 = vld [vmem:[%s4004 + $0x28] sm:$0xf]
        %v4016 = vld [vmem:[%s4004 + $0x2c] sm:$0xf]
        %v4017 = vld [vmem:[%s4004 + $0x30] sm:$0xf]
        %v4018 = vld [vmem:[%s4004 + $0x34] sm:$0xf]
        %v4019 = vld [vmem:[%s4004 + $0x38] sm:$0xf]
        %v4020 = vld [vmem:[%s4004 + $0x3c] sm:$0xf]
        %v4021 = vld [vmem:[%s4004 + $0x40] sm:$0xf]
        %v4022 = vld [vmem:[%s4004 + $0x44] sm:$0xf]
        %v4023 = vld [vmem:[%s4004 + $0x48] sm:$0xf]
        %v4024 = vld [vmem:[%s4004 + $0x4c] sm:$0xf]
        %v4025 = vld [vmem:[%s4004 + $0x50] sm:$0xf]
        %v4026 = vld [vmem:[%s4004 + $0x54] sm:$0xf]
        %v4027 = vld [vmem:[%s4004 + $0x58] sm:$0xf]
        %v4028 = vld [vmem:[%s4004 + $0x5c] sm:$0xf]
        %v4029 = vld [vmem:[%s4004 + $0x60] sm:$0xf]
        %v4030 = vld [vmem:[%s4004 + $0x64] sm:$0xf]
        %v4031 = vld [vmem:[%s4004 + $0x68] sm:$0xf]
        %v4032 = vld [vmem:[%s4004 + $0x6c] sm:$0xf]
        %v4033 = vld [vmem:[%s4004 + $0x70] sm:$0xf]
        %v4034 = vld [vmem:[%s4004 + $0x74] sm:$0xf]
        %v4035 = vld [vmem:[%s4004 + $0x78] sm:$0xf]
        %v4036 = vld [vmem:[%s4004 + $0x7c] sm:$0xf]
        %s4037 = scalar_lea.vmem [#allocation19], 64
        %v4038 = vld [vmem:[%s4037] sm:$0xff]
        %v4039 = vld [vmem:[%s4037 + $0x8] sm:$0xff]
        %v4040 = vld [vmem:[%s4037 + $0x10] sm:$0xff]
        %v4041 = vld [vmem:[%s4037 + $0x18] sm:$0xff]
        %s4042 = scalar_lea.vmem %s20, 4
        %v4043 = vld [vmem:[%s4042] sm:$0x3]
        %v4044 = vpack.c.bf16 %v3970, %v3970
        %v4049 = vunpack.c.l.b16 %v4038
        %v4050 = vunpack.c.h.b16 %v4038
        %v4051 = vunpack.c.l.b16 %v4039
        %v4052 = vunpack.c.h.b16 %v4039
        %v4053 = vunpack.c.l.b16 %v4040
        %v4054 = vunpack.c.h.b16 %v4040
        %v4055 = vunpack.c.l.b16 %v4041
        %v4056 = vunpack.c.h.b16 %v4041
        %v4057 = vpack.c.b16 %v4051, %v4049
        %v4058 = vpack.c.b16 %v4052, %v4050
        %v4059 = vpack.c.b16 %v4055, %v4053
        %v4060 = vpack.c.b16 %v4056, %v4054
        %v4066 = vsel %vm3147, %v4044, 0
        %4068 = vmatprep.subr.bf16.mxu0 0
        %4069 = vmatpush1.bf16.msra.mxu0 0
        %4070 = vmatprep.subr.bf16.mxu0 0
        %4071 = vmatpush1.bf16.msra.mxu0 0
        %4072 = vmatprep.subr.bf16.mxu0 0
        %4073 = vmatpush1.bf16.msra.mxu0 0
        %4074 = vmatprep.subr.bf16.mxu0 0
        %4075 = vmatpush1.bf16.msra.mxu0 0
        %4076 = vmatprep.subr.bf16.mxu0 0
        %4077 = vmatpush1.bf16.msra.mxu0 0
        %4078 = vmatprep.subr.bf16.mxu0 0
        %4079 = vmatpush1.bf16.msra.mxu0 0
        %4080 = vmatprep.subr.bf16.mxu0 %v4060
        %4081 = vmatpush1.bf16.msra.mxu0 %v4059
        %4082 = vmatprep.subr.bf16.mxu0 %v4058
        %4083 = vmatpush1.bf16.msra.mxu0 %v4057
        %4084 = vmatprep.subr.bf16.mxu0 0
        %4085 = vmatpush2.bf16.msra.mxu0 0
        %4086 = vmatprep.subr.bf16.mxu0 0
        %4087 = vmatpush2.bf16.msra.mxu0 0
        %4088 = vmatprep.subr.bf16.mxu0 0
        %4089 = vmatpush2.bf16.msra.mxu0 0
        %4090 = vmatprep.subr.bf16.mxu0 0
        %4091 = vmatpush2.bf16.msra.mxu0 0
        %4092 = vmatprep.subr.bf16.mxu0 0
        %4093 = vmatpush2.bf16.msra.mxu0 0
        %4094 = vmatprep.subr.bf16.mxu0 0
        %4095 = vmatpush2.bf16.msra.mxu0 0
        %4096 = vmatprep.subr.bf16.mxu0 0
        %4097 = vmatpush2.bf16.msra.mxu0 0
        %4098 = vmatprep.subr.bf16.mxu0 0
        %4099 = vmatpush2.bf16.msra.mxu0 0
        %4100 = vmatprep.mubr.bf16.mxu0 0
        %4101 = vmatmul.mubr.bf16.gmra.mxu0 %v4066
        %v4102 = vpop.f32.mrf.mxu0
        %v4103 = vadd.f32 0.0, %v4102
        %v4104 = vpop.f32.mrf.mxu0
        %v4105 = vadd.f32 0.0, %v4104
        %v4106 = vpop.f32.mrf.mxu0
        %v4107 = vpop.f32.mrf.mxu0
        %4108 = vdwg.mxu0
        %v4109 = vmul.f32 %v4103, 2.0
        %v4110 = vmul.f32 %v4105, 2.0
        %v4112 = vlaneseq
        %v4113 = vshrl.u32 %v4112, 7
        %v4114 = vsub.s32 0, %v4113
        %v4115 = vrot.slane %v4043, %v4114
        %v4116 = vlaneseq
        %v4117 = vshrl.u32 %v4116, 7
        %v4118 = vsub.s32 1, %v4117
        %v4119 = vrot.slane %v4043, %v4118
        %v4122 = vsub.f32 %v4115, %v4109
        %v4123 = vsub.f32 %v4119, %v4110
        %v4124 = vmin.f32 %v4122, %v4123
        %4125 = vmin.xlane.f32.xlu0 %v4124
        %v4126 = vpop.xlane.xlu0 %4125
        %vm4127 = vcmp.le.f32.partialorder %v4122, %v4126
        %vm4128 = vcmp.le.f32.partialorder %v4123, %v4126
        %v4129 = vsel %vm4127, %v3211, 256
        %v4130 = vsel %vm4128, %v3212, 256
        %vm4131 = vcmp.lt.s32.totalorder %v4129, %v4130
        %v4132 = vsel %vm4131, %v4129, %v4130
        %v4133 = vand.u32 %v4132, 65535
        %v4134 = vshra.s32 %v4132, 16
        %v4135 = vcvt.s32.f32 %v4133
        %v4136 = vcvt.s32.f32 %v4134
        %4137 = vmin.xlane.f32.xlu0 %v4136
        %v4138 = vpop.xlane.xlu0 %4137
        %vm4139 = vcmp.eq.f32.partialorder %v4136, %v4138
        %v4140 = vsel %vm4139, %v4135, inf
        %4141 = vmin.xlane.f32.xlu0 %v4140
        %v4142 = vpop.xlane.xlu0 %4141
        %v4143 = vcvt.f32.s32 %v4142
        %v4144 = vcvt.f32.s32 %v4138
        %v4145 = vshll.u32 %v4144, 16
        %v4146 = vadd.s32 %v4145, %v4143
        %vm4147 = vcmp.eq.s32.totalorder %v3211, %v4146
        %vm4148 = vcmp.eq.s32.totalorder %v3212, %v4146
        %v4149 = vsel %vm4147, 1, 0
        %v4150 = vsel %vm4148, 1, 0
        %v4151 = vcvt.s32.f32 %v4149
        %v4152 = vcvt.s32.f32 %v4150
        %v4153 = vpack.c.bf16 %v4151, %v4151
        %v4154 = vpack.c.bf16 %v4152, %v4152
        %v4187 = vunpack.c.l.b16 %v4005
        %v4188 = vunpack.c.l.b16 %v4006
        %v4189 = vunpack.c.l.b16 %v4007
        %v4190 = vunpack.c.l.b16 %v4008
        %v4191 = vunpack.c.l.b16 %v4009
        %v4192 = vunpack.c.l.b16 %v4010
        %v4193 = vunpack.c.l.b16 %v4011
        %v4194 = vunpack.c.l.b16 %v4012
        %v4195 = vunpack.c.l.b16 %v4013
        %v4196 = vunpack.c.l.b16 %v4014
        %v4197 = vunpack.c.l.b16 %v4015
        %v4198 = vunpack.c.l.b16 %v4016
        %v4199 = vunpack.c.l.b16 %v4017
        %v4200 = vunpack.c.l.b16 %v4018
        %v4201 = vunpack.c.l.b16 %v4019
        %v4202 = vunpack.c.l.b16 %v4020
        %v4203 = vunpack.c.l.b16 %v4021
        %v4204 = vunpack.c.l.b16 %v4022
        %v4205 = vunpack.c.l.b16 %v4023
        %v4206 = vunpack.c.l.b16 %v4024
        %v4207 = vunpack.c.l.b16 %v4025
        %v4208 = vunpack.c.l.b16 %v4026
        %v4209 = vunpack.c.l.b16 %v4027
        %v4210 = vunpack.c.l.b16 %v4028
        %v4211 = vunpack.c.l.b16 %v4029
        %v4212 = vunpack.c.l.b16 %v4030
        %v4213 = vunpack.c.l.b16 %v4031
        %v4214 = vunpack.c.l.b16 %v4032
        %v4215 = vunpack.c.l.b16 %v4033
        %v4216 = vunpack.c.l.b16 %v4034
        %v4217 = vunpack.c.l.b16 %v4035
        %v4218 = vunpack.c.l.b16 %v4036
        %v4219 = vpack.c.b16 %v4188, %v4187
        %v4220 = vpack.c.b16 %v4190, %v4189
        %v4221 = vpack.c.b16 %v4192, %v4191
        %v4222 = vpack.c.b16 %v4194, %v4193
        %v4223 = vpack.c.b16 %v4196, %v4195
        %v4224 = vpack.c.b16 %v4198, %v4197
        %v4225 = vpack.c.b16 %v4200, %v4199
        %v4226 = vpack.c.b16 %v4202, %v4201
        %v4227 = vpack.c.b16 %v4204, %v4203
        %v4228 = vpack.c.b16 %v4206, %v4205
        %v4229 = vpack.c.b16 %v4208, %v4207
        %v4230 = vpack.c.b16 %v4210, %v4209
        %v4231 = vpack.c.b16 %v4212, %v4211
        %v4232 = vpack.c.b16 %v4214, %v4213
        %v4233 = vpack.c.b16 %v4216, %v4215
        %v4234 = vpack.c.b16 %v4218, %v4217
        %4251 = vmatprep.subr.bf16.mxu0 0
        %4252 = vmatpush1.bf16.msra.mxu0 %v4226
        %4253 = vmatprep.subr.bf16.mxu0 0
        %4254 = vmatpush1.bf16.msra.mxu0 %v4225
        %4255 = vmatprep.subr.bf16.mxu0 0
        %4256 = vmatpush1.bf16.msra.mxu0 %v4224
        %4257 = vmatprep.subr.bf16.mxu0 0
        %4258 = vmatpush1.bf16.msra.mxu0 %v4223
        %4259 = vmatprep.subr.bf16.mxu0 0
        %4260 = vmatpush1.bf16.msra.mxu0 %v4222
        %4261 = vmatprep.subr.bf16.mxu0 0
        %4262 = vmatpush1.bf16.msra.mxu0 %v4221
        %4263 = vmatprep.subr.bf16.mxu0 0
        %4264 = vmatpush1.bf16.msra.mxu0 %v4220
        %4265 = vmatprep.subr.bf16.mxu0 0
        %4266 = vmatpush1.bf16.msra.mxu0 %v4219
        %4267 = vmatprep.subr.bf16.mxu0 0
        %4268 = vmatpush2.bf16.msra.mxu0 %v4234
        %4269 = vmatprep.subr.bf16.mxu0 0
        %4270 = vmatpush2.bf16.msra.mxu0 %v4233
        %4271 = vmatprep.subr.bf16.mxu0 0
        %4272 = vmatpush2.bf16.msra.mxu0 %v4232
        %4273 = vmatprep.subr.bf16.mxu0 0
        %4274 = vmatpush2.bf16.msra.mxu0 %v4231
        %4275 = vmatprep.subr.bf16.mxu0 0
        %4276 = vmatpush2.bf16.msra.mxu0 %v4230
        %4277 = vmatprep.subr.bf16.mxu0 0
        %4278 = vmatpush2.bf16.msra.mxu0 %v4229
        %4279 = vmatprep.subr.bf16.mxu0 0
        %4280 = vmatpush2.bf16.msra.mxu0 %v4228
        %4281 = vmatprep.subr.bf16.mxu0 0
        %4282 = vmatpush2.bf16.msra.mxu0 %v4227
        %4283 = vmatprep.mubr.bf16.mxu0 %v4154
        %4284 = vmatmul.mubr.bf16.gmra.mxu0 %v4153
        %v4285 = vpop.f32.mrf.mxu0
        %v4286 = vadd.f32 0.0, %v4285
        %v4287 = vpop.f32.mrf.mxu0
        %v4288 = vpop.f32.mrf.mxu0
        %v4289 = vpop.f32.mrf.mxu0
        %4290 = vdwg.mxu0
        %v4323 = vunpack.c.l.b16 %v3972
        %v4324 = vunpack.c.l.b16 %v3973
        %v4325 = vunpack.c.l.b16 %v3974
        %v4326 = vunpack.c.l.b16 %v3975
        %v4327 = vunpack.c.l.b16 %v3976
        %v4328 = vunpack.c.l.b16 %v3977
        %v4329 = vunpack.c.l.b16 %v3978
        %v4330 = vunpack.c.l.b16 %v3979
        %v4331 = vunpack.c.l.b16 %v3980
        %v4332 = vunpack.c.l.b16 %v3981
        %v4333 = vunpack.c.l.b16 %v3982
        %v4334 = vunpack.c.l.b16 %v3983
        %v4335 = vunpack.c.l.b16 %v3984
        %v4336 = vunpack.c.l.b16 %v3985
        %v4337 = vunpack.c.l.b16 %v3986
        %v4338 = vunpack.c.l.b16 %v3987
        %v4339 = vunpack.c.l.b16 %v3988
        %v4340 = vunpack.c.l.b16 %v3989
        %v4341 = vunpack.c.l.b16 %v3990
        %v4342 = vunpack.c.l.b16 %v3991
        %v4343 = vunpack.c.l.b16 %v3992
        %v4344 = vunpack.c.l.b16 %v3993
        %v4345 = vunpack.c.l.b16 %v3994
        %v4346 = vunpack.c.l.b16 %v3995
        %v4347 = vunpack.c.l.b16 %v3996
        %v4348 = vunpack.c.l.b16 %v3997
        %v4349 = vunpack.c.l.b16 %v3998
        %v4350 = vunpack.c.l.b16 %v3999
        %v4351 = vunpack.c.l.b16 %v4000
        %v4352 = vunpack.c.l.b16 %v4001
        %v4353 = vunpack.c.l.b16 %v4002
        %v4354 = vunpack.c.l.b16 %v4003
        %v4355 = vpack.c.b16 %v4324, %v4323
        %v4356 = vpack.c.b16 %v4326, %v4325
        %v4357 = vpack.c.b16 %v4328, %v4327
        %v4358 = vpack.c.b16 %v4330, %v4329
        %v4359 = vpack.c.b16 %v4332, %v4331
        %v4360 = vpack.c.b16 %v4334, %v4333
        %v4361 = vpack.c.b16 %v4336, %v4335
        %v4362 = vpack.c.b16 %v4338, %v4337
        %v4363 = vpack.c.b16 %v4340, %v4339
        %v4364 = vpack.c.b16 %v4342, %v4341
        %v4365 = vpack.c.b16 %v4344, %v4343
        %v4366 = vpack.c.b16 %v4346, %v4345
        %v4367 = vpack.c.b16 %v4348, %v4347
        %v4368 = vpack.c.b16 %v4350, %v4349
        %v4369 = vpack.c.b16 %v4352, %v4351
        %v4370 = vpack.c.b16 %v4354, %v4353
        %4387 = vmatprep.subr.bf16.mxu0 0
        %4388 = vmatpush1.bf16.msra.mxu0 %v4362
        %4389 = vmatprep.subr.bf16.mxu0 0
        %4390 = vmatpush1.bf16.msra.mxu0 %v4361
        %4391 = vmatprep.subr.bf16.mxu0 0
        %4392 = vmatpush1.bf16.msra.mxu0 %v4360
        %4393 = vmatprep.subr.bf16.mxu0 0
        %4394 = vmatpush1.bf16.msra.mxu0 %v4359
        %4395 = vmatprep.subr.bf16.mxu0 0
        %4396 = vmatpush1.bf16.msra.mxu0 %v4358
        %4397 = vmatprep.subr.bf16.mxu0 0
        %4398 = vmatpush1.bf16.msra.mxu0 %v4357
        %4399 = vmatprep.subr.bf16.mxu0 0
        %4400 = vmatpush1.bf16.msra.mxu0 %v4356
        %4401 = vmatprep.subr.bf16.mxu0 0
        %4402 = vmatpush1.bf16.msra.mxu0 %v4355
        %4403 = vmatprep.subr.bf16.mxu0 0
        %4404 = vmatpush2.bf16.msra.mxu0 %v4370
        %4405 = vmatprep.subr.bf16.mxu0 0
        %4406 = vmatpush2.bf16.msra.mxu0 %v4369
        %4407 = vmatprep.subr.bf16.mxu0 0
        %4408 = vmatpush2.bf16.msra.mxu0 %v4368
        %4409 = vmatprep.subr.bf16.mxu0 0
        %4410 = vmatpush2.bf16.msra.mxu0 %v4367
        %4411 = vmatprep.subr.bf16.mxu0 0
        %4412 = vmatpush2.bf16.msra.mxu0 %v4366
        %4413 = vmatprep.subr.bf16.mxu0 0
        %4414 = vmatpush2.bf16.msra.mxu0 %v4365
        %4415 = vmatprep.subr.bf16.mxu0 0
        %4416 = vmatpush2.bf16.msra.mxu0 %v4364
        %4417 = vmatprep.subr.bf16.mxu0 0
        %4418 = vmatpush2.bf16.msra.mxu0 %v4363
        %4419 = vmatprep.mubr.bf16.mxu0 %v4154
        %4420 = vmatmul.mubr.bf16.gmra.mxu0 %v4153
        %v4421 = vpop.f32.mrf.mxu0
        %v4422 = vadd.f32 %v4286, %v4421
        %v4423 = vpop.f32.mrf.mxu0
        %v4424 = vpop.f32.mrf.mxu0
        %v4425 = vpop.f32.mrf.mxu0
        %4426 = vdwg.mxu0
        %v4427 = vsub.f32 %v3970, %v4422
        %v4428 = vadd.f32 %v3508, %v3965
        %v4429 = vadd.f32 %v4428, %v4422
        %v4430 = vpack.c.bf16 %v4429, %v4429
        %v4431 = vld [vmem:[%s9] sm:$0xf]
        %v4432 = vld [vmem:[%s9 + $0x4] sm:$0xf]
        %v4433 = vld [vmem:[%s9 + $0x8] sm:$0xf]
        %v4434 = vld [vmem:[%s9 + $0xc] sm:$0xf]
        %v4435 = vld [vmem:[#allocation14] sm:$0x1]
        %v4437 = vlaneseq
        %v4438 = vshrl.u32 %v4437, 7
        %v4439 = vsub.s32 0, %v4438
        %v4440 = vrot.slane %v4435, %v4439
        %v4446 = vunpack.c.l.b16 %v4431
        %v4447 = vunpack.c.l.b16 %v4432
        %v4448 = vunpack.c.l.b16 %v4433
        %v4449 = vunpack.c.l.b16 %v4434
        %v4450 = vpack.c.b16 %v4447, %v4446
        %v4451 = vpack.c.b16 %v4449, %v4448
        %v4455 = vsel %vm3147, %v4430, 0
        %4457 = vmatprep.subr.bf16.mxu0 0
        %4458 = vmatpush1.bf16.msra.mxu0 0
        %4459 = vmatprep.subr.bf16.mxu0 0
        %4460 = vmatpush1.bf16.msra.mxu0 0
        %4461 = vmatprep.subr.bf16.mxu0 0
        %4462 = vmatpush1.bf16.msra.mxu0 0
        %4463 = vmatprep.subr.bf16.mxu0 0
        %4464 = vmatpush1.bf16.msra.mxu0 0
        %4465 = vmatprep.subr.bf16.mxu0 0
        %4466 = vmatpush1.bf16.msra.mxu0 0
        %4467 = vmatprep.subr.bf16.mxu0 0
        %4468 = vmatpush1.bf16.msra.mxu0 0
        %4469 = vmatprep.subr.bf16.mxu0 0
        %4470 = vmatpush1.bf16.msra.mxu0 %v4451
        %4471 = vmatprep.subr.bf16.mxu0 0
        %4472 = vmatpush1.bf16.msra.mxu0 %v4450
        %4473 = vmatprep.subr.bf16.mxu0 0
        %4474 = vmatpush2.bf16.msra.mxu0 0
        %4475 = vmatprep.subr.bf16.mxu0 0
        %4476 = vmatpush2.bf16.msra.mxu0 0
        %4477 = vmatprep.subr.bf16.mxu0 0
        %4478 = vmatpush2.bf16.msra.mxu0 0
        %4479 = vmatprep.subr.bf16.mxu0 0
        %4480 = vmatpush2.bf16.msra.mxu0 0
        %4481 = vmatprep.subr.bf16.mxu0 0
        %4482 = vmatpush2.bf16.msra.mxu0 0
        %4483 = vmatprep.subr.bf16.mxu0 0
        %4484 = vmatpush2.bf16.msra.mxu0 0
        %4485 = vmatprep.subr.bf16.mxu0 0
        %4486 = vmatpush2.bf16.msra.mxu0 0
        %4487 = vmatprep.subr.bf16.mxu0 0
        %4488 = vmatpush2.bf16.msra.mxu0 0
        %4489 = vmatprep.mubr.bf16.mxu0 0
        %4490 = vmatmul.mubr.bf16.gmra.mxu0 %v4455
        %v4491 = vpop.f32.mrf.mxu0
        %v4492 = vadd.f32 %v4440, %v4491
        %v4493 = vpop.f32.mrf.mxu0
        %v4494 = vpop.f32.mrf.mxu0
        %v4495 = vpop.f32.mrf.mxu0
        %4496 = vdwg.mxu0
        %v4497 = vmax.f32 %v4492, 0.0
        %v4498 = vpack.c.bf16 %v4497, %v4497
        %v4499 = vld [vmem:[#allocation16] sm:$0xff]
        %v4500 = vld [vmem:[#allocation16 + $0x8] sm:$0xff]
        %v4501 = vld [vmem:[#allocation16 + $0x10] sm:$0xff]
        %v4502 = vld [vmem:[#allocation16 + $0x18] sm:$0xff]
        %v4503 = vld [vmem:[#allocation16 + $0x20] sm:$0xff]
        %v4504 = vld [vmem:[#allocation16 + $0x28] sm:$0xff]
        %v4505 = vld [vmem:[#allocation16 + $0x30] sm:$0xff]
        %v4506 = vld [vmem:[#allocation16 + $0x38] sm:$0xff]
        %v4507 = vld [vmem:[#allocation16 + $0x40] sm:$0xff]
        %v4508 = vld [vmem:[#allocation16 + $0x48] sm:$0xff]
        %v4509 = vld [vmem:[#allocation16 + $0x50] sm:$0xff]
        %v4510 = vld [vmem:[#allocation16 + $0x58] sm:$0xff]
        %v4511 = vld [vmem:[#allocation16 + $0x60] sm:$0xff]
        %v4512 = vld [vmem:[#allocation16 + $0x68] sm:$0xff]
        %v4513 = vld [vmem:[#allocation16 + $0x70] sm:$0xff]
        %v4514 = vld [vmem:[#allocation16 + $0x78] sm:$0xff]
        %v4515 = vld [vmem:[%s12] sm:$0x3]
        %v4517 = vlaneseq
        %v4518 = vshrl.u32 %v4517, 7
        %v4519 = vsub.s32 0, %v4518
        %v4520 = vrot.slane %v4515, %v4519
        %v4521 = vlaneseq
        %v4522 = vshrl.u32 %v4521, 7
        %v4523 = vsub.s32 1, %v4522
        %v4524 = vrot.slane %v4515, %v4523
        %v4543 = vunpack.c.l.b16 %v4499
        %v4544 = vunpack.c.h.b16 %v4499
        %v4545 = vunpack.c.l.b16 %v4500
        %v4546 = vunpack.c.h.b16 %v4500
        %v4547 = vunpack.c.l.b16 %v4501
        %v4548 = vunpack.c.h.b16 %v4501
        %v4549 = vunpack.c.l.b16 %v4502
        %v4550 = vunpack.c.h.b16 %v4502
        %v4551 = vunpack.c.l.b16 %v4503
        %v4552 = vunpack.c.h.b16 %v4503
        %v4553 = vunpack.c.l.b16 %v4504
        %v4554 = vunpack.c.h.b16 %v4504
        %v4555 = vunpack.c.l.b16 %v4505
        %v4556 = vunpack.c.h.b16 %v4505
        %v4557 = vunpack.c.l.b16 %v4506
        %v4558 = vunpack.c.h.b16 %v4506
        %v4559 = vunpack.c.l.b16 %v4507
        %v4560 = vunpack.c.h.b16 %v4507
        %v4561 = vunpack.c.l.b16 %v4508
        %v4562 = vunpack.c.h.b16 %v4508
        %v4563 = vunpack.c.l.b16 %v4509
        %v4564 = vunpack.c.h.b16 %v4509
        %v4565 = vunpack.c.l.b16 %v4510
        %v4566 = vunpack.c.h.b16 %v4510
        %v4567 = vunpack.c.l.b16 %v4511
        %v4568 = vunpack.c.h.b16 %v4511
        %v4569 = vunpack.c.l.b16 %v4512
        %v4570 = vunpack.c.h.b16 %v4512
        %v4571 = vunpack.c.l.b16 %v4513
        %v4572 = vunpack.c.h.b16 %v4513
        %v4573 = vunpack.c.l.b16 %v4514
        %v4574 = vunpack.c.h.b16 %v4514
        %v4575 = vpack.c.b16 %v4545, %v4543
        %v4576 = vpack.c.b16 %v4546, %v4544
        %v4577 = vpack.c.b16 %v4549, %v4547
        %v4578 = vpack.c.b16 %v4550, %v4548
        %v4579 = vpack.c.b16 %v4553, %v4551
        %v4580 = vpack.c.b16 %v4554, %v4552
        %v4581 = vpack.c.b16 %v4557, %v4555
        %v4582 = vpack.c.b16 %v4558, %v4556
        %v4583 = vpack.c.b16 %v4561, %v4559
        %v4584 = vpack.c.b16 %v4562, %v4560
        %v4585 = vpack.c.b16 %v4565, %v4563
        %v4586 = vpack.c.b16 %v4566, %v4564
        %v4587 = vpack.c.b16 %v4569, %v4567
        %v4588 = vpack.c.b16 %v4570, %v4568
        %v4589 = vpack.c.b16 %v4573, %v4571
        %v4590 = vpack.c.b16 %v4574, %v4572
        %4607 = vmatprep.subr.bf16.mxu0 %v4590
        %4608 = vmatpush1.bf16.msra.mxu0 %v4589
        %4609 = vmatprep.subr.bf16.mxu0 %v4588
        %4610 = vmatpush1.bf16.msra.mxu0 %v4587
        %4611 = vmatprep.subr.bf16.mxu0 %v4586
        %4612 = vmatpush1.bf16.msra.mxu0 %v4585
        %4613 = vmatprep.subr.bf16.mxu0 %v4584
        %4614 = vmatpush1.bf16.msra.mxu0 %v4583
        %4615 = vmatprep.subr.bf16.mxu0 %v4582
        %4616 = vmatpush1.bf16.msra.mxu0 %v4581
        %4617 = vmatprep.subr.bf16.mxu0 %v4580
        %4618 = vmatpush1.bf16.msra.mxu0 %v4579
        %4619 = vmatprep.subr.bf16.mxu0 %v4578
        %4620 = vmatpush1.bf16.msra.mxu0 %v4577
        %4621 = vmatprep.subr.bf16.mxu0 %v4576
        %4622 = vmatpush1.bf16.msra.mxu0 %v4575
        %4623 = vmatprep.subr.bf16.mxu0 0
        %4624 = vmatpush2.bf16.msra.mxu0 0
        %4625 = vmatprep.subr.bf16.mxu0 0
        %4626 = vmatpush2.bf16.msra.mxu0 0
        %4627 = vmatprep.subr.bf16.mxu0 0
        %4628 = vmatpush2.bf16.msra.mxu0 0
        %4629 = vmatprep.subr.bf16.mxu0 0
        %4630 = vmatpush2.bf16.msra.mxu0 0
        %4631 = vmatprep.subr.bf16.mxu0 0
        %4632 = vmatpush2.bf16.msra.mxu0 0
        %4633 = vmatprep.subr.bf16.mxu0 0
        %4634 = vmatpush2.bf16.msra.mxu0 0
        %4635 = vmatprep.subr.bf16.mxu0 0
        %4636 = vmatpush2.bf16.msra.mxu0 0
        %4637 = vmatprep.subr.bf16.mxu0 0
        %4638 = vmatpush2.bf16.msra.mxu0 0
        %4639 = vmatprep.mubr.bf16.mxu0 0
        %4640 = vmatmul.mubr.bf16.gmra.mxu0 %v4498
        %v4641 = vpop.f32.mrf.mxu0
        %v4642 = vadd.f32 %v4520, %v4641
        %v4643 = vpop.f32.mrf.mxu0
        %v4644 = vadd.f32 %v4524, %v4643
        %v4645 = vpop.f32.mrf.mxu0
        %v4646 = vpop.f32.mrf.mxu0
        %4647 = vdwg.mxu0
        %v4648 = vmax.f32 %v4642, 0.0
        %v4649 = vmax.f32 %v4644, 0.0
        %v4650 = vpack.c.bf16 %v4648, %v4648
        %v4651 = vpack.c.bf16 %v4649, %v4649
        %v4652 = vld [vmem:[%s13] sm:$0xff]
        %v4653 = vld [vmem:[%s13 + $0x8] sm:$0xff]
        %v4654 = vld [vmem:[%s13 + $0x10] sm:$0xff]
        %v4655 = vld [vmem:[%s13 + $0x18] sm:$0xff]
        %v4656 = vld [vmem:[%s13 + $0x20] sm:$0xff]
        %v4657 = vld [vmem:[%s13 + $0x28] sm:$0xff]
        %v4658 = vld [vmem:[%s13 + $0x30] sm:$0xff]
        %v4659 = vld [vmem:[%s13 + $0x38] sm:$0xff]
        %v4660 = vld [vmem:[%s13 + $0x40] sm:$0xff]
        %v4661 = vld [vmem:[%s13 + $0x48] sm:$0xff]
        %v4662 = vld [vmem:[%s13 + $0x50] sm:$0xff]
        %v4663 = vld [vmem:[%s13 + $0x58] sm:$0xff]
        %v4664 = vld [vmem:[%s13 + $0x60] sm:$0xff]
        %v4665 = vld [vmem:[%s13 + $0x68] sm:$0xff]
        %v4666 = vld [vmem:[%s13 + $0x70] sm:$0xff]
        %v4667 = vld [vmem:[%s13 + $0x78] sm:$0xff]
        %v4668 = vld [vmem:[%s13 + $0x80] sm:$0xff]
        %v4669 = vld [vmem:[%s13 + $0x88] sm:$0xff]
        %v4670 = vld [vmem:[%s13 + $0x90] sm:$0xff]
        %v4671 = vld [vmem:[%s13 + $0x98] sm:$0xff]
        %v4672 = vld [vmem:[%s13 + $0xa0] sm:$0xff]
        %v4673 = vld [vmem:[%s13 + $0xa8] sm:$0xff]
        %v4674 = vld [vmem:[%s13 + $0xb0] sm:$0xff]
        %v4675 = vld [vmem:[%s13 + $0xb8] sm:$0xff]
        %v4676 = vld [vmem:[%s13 + $0xc0] sm:$0xff]
        %v4677 = vld [vmem:[%s13 + $0xc8] sm:$0xff]
        %v4678 = vld [vmem:[%s13 + $0xd0] sm:$0xff]
        %v4679 = vld [vmem:[%s13 + $0xd8] sm:$0xff]
        %v4680 = vld [vmem:[%s13 + $0xe0] sm:$0xff]
        %v4681 = vld [vmem:[%s13 + $0xe8] sm:$0xff]
        %v4682 = vld [vmem:[%s13 + $0xf0] sm:$0xff]
        %v4683 = vld [vmem:[%s13 + $0xf8] sm:$0xff]
        %v4684 = vld [vmem:[%s13 + $0x100] sm:$0xff]
        %v4685 = vld [vmem:[%s13 + $0x108] sm:$0xff]
        %v4686 = vld [vmem:[%s13 + $0x110] sm:$0xff]
        %v4687 = vld [vmem:[%s13 + $0x118] sm:$0xff]
        %v4688 = vld [vmem:[%s13 + $0x120] sm:$0xff]
        %v4689 = vld [vmem:[%s13 + $0x128] sm:$0xff]
        %v4690 = vld [vmem:[%s13 + $0x130] sm:$0xff]
        %v4691 = vld [vmem:[%s13 + $0x138] sm:$0xff]
        %v4692 = vld [vmem:[%s13 + $0x140] sm:$0xff]
        %v4693 = vld [vmem:[%s13 + $0x148] sm:$0xff]
        %v4694 = vld [vmem:[%s13 + $0x150] sm:$0xff]
        %v4695 = vld [vmem:[%s13 + $0x158] sm:$0xff]
        %v4696 = vld [vmem:[%s13 + $0x160] sm:$0xff]
        %v4697 = vld [vmem:[%s13 + $0x168] sm:$0xff]
        %v4698 = vld [vmem:[%s13 + $0x170] sm:$0xff]
        %v4699 = vld [vmem:[%s13 + $0x178] sm:$0xff]
        %v4700 = vld [vmem:[%s13 + $0x180] sm:$0xff]
        %v4701 = vld [vmem:[%s13 + $0x188] sm:$0xff]
        %v4702 = vld [vmem:[%s13 + $0x190] sm:$0xff]
        %v4703 = vld [vmem:[%s13 + $0x198] sm:$0xff]
        %v4704 = vld [vmem:[%s13 + $0x1a0] sm:$0xff]
        %v4705 = vld [vmem:[%s13 + $0x1a8] sm:$0xff]
        %v4706 = vld [vmem:[%s13 + $0x1b0] sm:$0xff]
        %v4707 = vld [vmem:[%s13 + $0x1b8] sm:$0xff]
        %v4708 = vld [vmem:[%s13 + $0x1c0] sm:$0xff]
        %v4709 = vld [vmem:[%s13 + $0x1c8] sm:$0xff]
        %v4710 = vld [vmem:[%s13 + $0x1d0] sm:$0xff]
        %v4711 = vld [vmem:[%s13 + $0x1d8] sm:$0xff]
        %v4712 = vld [vmem:[%s13 + $0x1e0] sm:$0xff]
        %v4713 = vld [vmem:[%s13 + $0x1e8] sm:$0xff]
        %v4714 = vld [vmem:[%s13 + $0x1f0] sm:$0xff]
        %v4715 = vld [vmem:[%s13 + $0x1f8] sm:$0xff]
        %v4716 = vld [vmem:[%s14] sm:$0xf]
        %v4718 = vlaneseq
        %v4719 = vshrl.u32 %v4718, 7
        %v4720 = vsub.s32 0, %v4719
        %v4721 = vrot.slane %v4716, %v4720
        %v4722 = vlaneseq
        %v4723 = vshrl.u32 %v4722, 7
        %v4724 = vsub.s32 1, %v4723
        %v4725 = vrot.slane %v4716, %v4724
        %v4726 = vlaneseq
        %v4727 = vshrl.u32 %v4726, 7
        %v4728 = vsub.s32 2, %v4727
        %v4729 = vrot.slane %v4716, %v4728
        %v4730 = vlaneseq
        %v4731 = vshrl.u32 %v4730, 7
        %v4732 = vsub.s32 3, %v4731
        %v4733 = vrot.slane %v4716, %v4732
        %v4802 = vunpack.c.l.b16 %v4652
        %v4803 = vunpack.c.h.b16 %v4652
        %v4804 = vunpack.c.l.b16 %v4653
        %v4805 = vunpack.c.h.b16 %v4653
        %v4806 = vunpack.c.l.b16 %v4654
        %v4807 = vunpack.c.h.b16 %v4654
        %v4808 = vunpack.c.l.b16 %v4655
        %v4809 = vunpack.c.h.b16 %v4655
        %v4810 = vunpack.c.l.b16 %v4656
        %v4811 = vunpack.c.h.b16 %v4656
        %v4812 = vunpack.c.l.b16 %v4657
        %v4813 = vunpack.c.h.b16 %v4657
        %v4814 = vunpack.c.l.b16 %v4658
        %v4815 = vunpack.c.h.b16 %v4658
        %v4816 = vunpack.c.l.b16 %v4659
        %v4817 = vunpack.c.h.b16 %v4659
        %v4818 = vunpack.c.l.b16 %v4660
        %v4819 = vunpack.c.h.b16 %v4660
        %v4820 = vunpack.c.l.b16 %v4661
        %v4821 = vunpack.c.h.b16 %v4661
        %v4822 = vunpack.c.l.b16 %v4662
        %v4823 = vunpack.c.h.b16 %v4662
        %v4824 = vunpack.c.l.b16 %v4663
        %v4825 = vunpack.c.h.b16 %v4663
        %v4826 = vunpack.c.l.b16 %v4664
        %v4827 = vunpack.c.h.b16 %v4664
        %v4828 = vunpack.c.l.b16 %v4665
        %v4829 = vunpack.c.h.b16 %v4665
        %v4830 = vunpack.c.l.b16 %v4666
        %v4831 = vunpack.c.h.b16 %v4666
        %v4832 = vunpack.c.l.b16 %v4667
        %v4833 = vunpack.c.h.b16 %v4667
        %v4834 = vunpack.c.l.b16 %v4668
        %v4835 = vunpack.c.h.b16 %v4668
        %v4836 = vunpack.c.l.b16 %v4669
        %v4837 = vunpack.c.h.b16 %v4669
        %v4838 = vunpack.c.l.b16 %v4670
        %v4839 = vunpack.c.h.b16 %v4670
        %v4840 = vunpack.c.l.b16 %v4671
        %v4841 = vunpack.c.h.b16 %v4671
        %v4842 = vunpack.c.l.b16 %v4672
        %v4843 = vunpack.c.h.b16 %v4672
        %v4844 = vunpack.c.l.b16 %v4673
        %v4845 = vunpack.c.h.b16 %v4673
        %v4846 = vunpack.c.l.b16 %v4674
        %v4847 = vunpack.c.h.b16 %v4674
        %v4848 = vunpack.c.l.b16 %v4675
        %v4849 = vunpack.c.h.b16 %v4675
        %v4850 = vunpack.c.l.b16 %v4676
        %v4851 = vunpack.c.h.b16 %v4676
        %v4852 = vunpack.c.l.b16 %v4677
        %v4853 = vunpack.c.h.b16 %v4677
        %v4854 = vunpack.c.l.b16 %v4678
        %v4855 = vunpack.c.h.b16 %v4678
        %v4856 = vunpack.c.l.b16 %v4679
        %v4857 = vunpack.c.h.b16 %v4679
        %v4858 = vunpack.c.l.b16 %v4680
        %v4859 = vunpack.c.h.b16 %v4680
        %v4860 = vunpack.c.l.b16 %v4681
        %v4861 = vunpack.c.h.b16 %v4681
        %v4862 = vunpack.c.l.b16 %v4682
        %v4863 = vunpack.c.h.b16 %v4682
        %v4864 = vunpack.c.l.b16 %v4683
        %v4865 = vunpack.c.h.b16 %v4683
        %v4866 = vunpack.c.l.b16 %v4684
        %v4867 = vunpack.c.h.b16 %v4684
        %v4868 = vunpack.c.l.b16 %v4685
        %v4869 = vunpack.c.h.b16 %v4685
        %v4870 = vunpack.c.l.b16 %v4686
        %v4871 = vunpack.c.h.b16 %v4686
        %v4872 = vunpack.c.l.b16 %v4687
        %v4873 = vunpack.c.h.b16 %v4687
        %v4874 = vunpack.c.l.b16 %v4688
        %v4875 = vunpack.c.h.b16 %v4688
        %v4876 = vunpack.c.l.b16 %v4689
        %v4877 = vunpack.c.h.b16 %v4689
        %v4878 = vunpack.c.l.b16 %v4690
        %v4879 = vunpack.c.h.b16 %v4690
        %v4880 = vunpack.c.l.b16 %v4691
        %v4881 = vunpack.c.h.b16 %v4691
        %v4882 = vunpack.c.l.b16 %v4692
        %v4883 = vunpack.c.h.b16 %v4692
        %v4884 = vunpack.c.l.b16 %v4693
        %v4885 = vunpack.c.h.b16 %v4693
        %v4886 = vunpack.c.l.b16 %v4694
        %v4887 = vunpack.c.h.b16 %v4694
        %v4888 = vunpack.c.l.b16 %v4695
        %v4889 = vunpack.c.h.b16 %v4695
        %v4890 = vunpack.c.l.b16 %v4696
        %v4891 = vunpack.c.h.b16 %v4696
        %v4892 = vunpack.c.l.b16 %v4697
        %v4893 = vunpack.c.h.b16 %v4697
        %v4894 = vunpack.c.l.b16 %v4698
        %v4895 = vunpack.c.h.b16 %v4698
        %v4896 = vunpack.c.l.b16 %v4699
        %v4897 = vunpack.c.h.b16 %v4699
        %v4898 = vunpack.c.l.b16 %v4700
        %v4899 = vunpack.c.h.b16 %v4700
        %v4900 = vunpack.c.l.b16 %v4701
        %v4901 = vunpack.c.h.b16 %v4701
        %v4902 = vunpack.c.l.b16 %v4702
        %v4903 = vunpack.c.h.b16 %v4702
        %v4904 = vunpack.c.l.b16 %v4703
        %v4905 = vunpack.c.h.b16 %v4703
        %v4906 = vunpack.c.l.b16 %v4704
        %v4907 = vunpack.c.h.b16 %v4704
        %v4908 = vunpack.c.l.b16 %v4705
        %v4909 = vunpack.c.h.b16 %v4705
        %v4910 = vunpack.c.l.b16 %v4706
        %v4911 = vunpack.c.h.b16 %v4706
        %v4912 = vunpack.c.l.b16 %v4707
        %v4913 = vunpack.c.h.b16 %v4707
        %v4914 = vunpack.c.l.b16 %v4708
        %v4915 = vunpack.c.h.b16 %v4708
        %v4916 = vunpack.c.l.b16 %v4709
        %v4917 = vunpack.c.h.b16 %v4709
        %v4918 = vunpack.c.l.b16 %v4710
        %v4919 = vunpack.c.h.b16 %v4710
        %v4920 = vunpack.c.l.b16 %v4711
        %v4921 = vunpack.c.h.b16 %v4711
        %v4922 = vunpack.c.l.b16 %v4712
        %v4923 = vunpack.c.h.b16 %v4712
        %v4924 = vunpack.c.l.b16 %v4713
        %v4925 = vunpack.c.h.b16 %v4713
        %v4926 = vunpack.c.l.b16 %v4714
        %v4927 = vunpack.c.h.b16 %v4714
        %v4928 = vunpack.c.l.b16 %v4715
        %v4929 = vunpack.c.h.b16 %v4715
        %v4930 = vpack.c.b16 %v4806, %v4802
        %v4931 = vpack.c.b16 %v4807, %v4803
        %v4932 = vpack.c.b16 %v4808, %v4804
        %v4933 = vpack.c.b16 %v4809, %v4805
        %v4934 = vpack.c.b16 %v4814, %v4810
        %v4935 = vpack.c.b16 %v4815, %v4811
        %v4936 = vpack.c.b16 %v4816, %v4812
        %v4937 = vpack.c.b16 %v4817, %v4813
        %v4938 = vpack.c.b16 %v4822, %v4818
        %v4939 = vpack.c.b16 %v4823, %v4819
        %v4940 = vpack.c.b16 %v4824, %v4820
        %v4941 = vpack.c.b16 %v4825, %v4821
        %v4942 = vpack.c.b16 %v4830, %v4826
        %v4943 = vpack.c.b16 %v4831, %v4827
        %v4944 = vpack.c.b16 %v4832, %v4828
        %v4945 = vpack.c.b16 %v4833, %v4829
        %v4946 = vpack.c.b16 %v4838, %v4834
        %v4947 = vpack.c.b16 %v4839, %v4835
        %v4948 = vpack.c.b16 %v4840, %v4836
        %v4949 = vpack.c.b16 %v4841, %v4837
        %v4950 = vpack.c.b16 %v4846, %v4842
        %v4951 = vpack.c.b16 %v4847, %v4843
        %v4952 = vpack.c.b16 %v4848, %v4844
        %v4953 = vpack.c.b16 %v4849, %v4845
        %v4954 = vpack.c.b16 %v4854, %v4850
        %v4955 = vpack.c.b16 %v4855, %v4851
        %v4956 = vpack.c.b16 %v4856, %v4852
        %v4957 = vpack.c.b16 %v4857, %v4853
        %v4958 = vpack.c.b16 %v4862, %v4858
        %v4959 = vpack.c.b16 %v4863, %v4859
        %v4960 = vpack.c.b16 %v4864, %v4860
        %v4961 = vpack.c.b16 %v4865, %v4861
        %v4962 = vpack.c.b16 %v4870, %v4866
        %v4963 = vpack.c.b16 %v4871, %v4867
        %v4964 = vpack.c.b16 %v4872, %v4868
        %v4965 = vpack.c.b16 %v4873, %v4869
        %v4966 = vpack.c.b16 %v4878, %v4874
        %v4967 = vpack.c.b16 %v4879, %v4875
        %v4968 = vpack.c.b16 %v4880, %v4876
        %v4969 = vpack.c.b16 %v4881, %v4877
        %v4970 = vpack.c.b16 %v4886, %v4882
        %v4971 = vpack.c.b16 %v4887, %v4883
        %v4972 = vpack.c.b16 %v4888, %v4884
        %v4973 = vpack.c.b16 %v4889, %v4885
        %v4974 = vpack.c.b16 %v4894, %v4890
        %v4975 = vpack.c.b16 %v4895, %v4891
        %v4976 = vpack.c.b16 %v4896, %v4892
        %v4977 = vpack.c.b16 %v4897, %v4893
        %v4978 = vpack.c.b16 %v4902, %v4898
        %v4979 = vpack.c.b16 %v4903, %v4899
        %v4980 = vpack.c.b16 %v4904, %v4900
        %v4981 = vpack.c.b16 %v4905, %v4901
        %v4982 = vpack.c.b16 %v4910, %v4906
        %v4983 = vpack.c.b16 %v4911, %v4907
        %v4984 = vpack.c.b16 %v4912, %v4908
        %v4985 = vpack.c.b16 %v4913, %v4909
        %v4986 = vpack.c.b16 %v4918, %v4914
        %v4987 = vpack.c.b16 %v4919, %v4915
        %v4988 = vpack.c.b16 %v4920, %v4916
        %v4989 = vpack.c.b16 %v4921, %v4917
        %v4990 = vpack.c.b16 %v4926, %v4922
        %v4991 = vpack.c.b16 %v4927, %v4923
        %v4992 = vpack.c.b16 %v4928, %v4924
        %v4993 = vpack.c.b16 %v4929, %v4925
        %5058 = vmatprep.subr.bf16.mxu0 %v4959
        %5059 = vmatpush1.bf16.msra.mxu0 %v4958
        %5060 = vmatprep.subr.bf16.mxu0 %v4955
        %5061 = vmatpush1.bf16.msra.mxu0 %v4954
        %5062 = vmatprep.subr.bf16.mxu0 %v4951
        %5063 = vmatpush1.bf16.msra.mxu0 %v4950
        %5064 = vmatprep.subr.bf16.mxu0 %v4947
        %5065 = vmatpush1.bf16.msra.mxu0 %v4946
        %5066 = vmatprep.subr.bf16.mxu0 %v4943
        %5067 = vmatpush1.bf16.msra.mxu0 %v4942
        %5068 = vmatprep.subr.bf16.mxu0 %v4939
        %5069 = vmatpush1.bf16.msra.mxu0 %v4938
        %5070 = vmatprep.subr.bf16.mxu0 %v4935
        %5071 = vmatpush1.bf16.msra.mxu0 %v4934
        %5072 = vmatprep.subr.bf16.mxu0 %v4931
        %5073 = vmatpush1.bf16.msra.mxu0 %v4930
        %5074 = vmatprep.subr.bf16.mxu0 %v4991
        %5075 = vmatpush2.bf16.msra.mxu0 %v4990
        %5076 = vmatprep.subr.bf16.mxu0 %v4987
        %5077 = vmatpush2.bf16.msra.mxu0 %v4986
        %5078 = vmatprep.subr.bf16.mxu0 %v4983
        %5079 = vmatpush2.bf16.msra.mxu0 %v4982
        %5080 = vmatprep.subr.bf16.mxu0 %v4979
        %5081 = vmatpush2.bf16.msra.mxu0 %v4978
        %5082 = vmatprep.subr.bf16.mxu0 %v4975
        %5083 = vmatpush2.bf16.msra.mxu0 %v4974
        %5084 = vmatprep.subr.bf16.mxu0 %v4971
        %5085 = vmatpush2.bf16.msra.mxu0 %v4970
        %5086 = vmatprep.subr.bf16.mxu0 %v4967
        %5087 = vmatpush2.bf16.msra.mxu0 %v4966
        %5088 = vmatprep.subr.bf16.mxu0 %v4963
        %5089 = vmatpush2.bf16.msra.mxu0 %v4962
        %5090 = vmatprep.mubr.bf16.mxu0 %v4651
        %5091 = vmatmul.mubr.bf16.gmra.mxu0 %v4650
        %v5092 = vpop.f32.mrf.mxu0
        %v5093 = vadd.f32 %v4721, %v5092
        %v5094 = vpop.f32.mrf.mxu0
        %v5095 = vadd.f32 %v4725, %v5094
        %v5096 = vpop.f32.mrf.mxu0
        %v5097 = vpop.f32.mrf.mxu0
        %5098 = vdwg.mxu0
        %5099 = vmatprep.subr.bf16.mxu0 %v4961
        %5100 = vmatpush1.bf16.msra.mxu0 %v4960
        %5101 = vmatprep.subr.bf16.mxu0 %v4957
        %5102 = vmatpush1.bf16.msra.mxu0 %v4956
        %5103 = vmatprep.subr.bf16.mxu0 %v4953
        %5104 = vmatpush1.bf16.msra.mxu0 %v4952
        %5105 = vmatprep.subr.bf16.mxu0 %v4949
        %5106 = vmatpush1.bf16.msra.mxu0 %v4948
        %5107 = vmatprep.subr.bf16.mxu0 %v4945
        %5108 = vmatpush1.bf16.msra.mxu0 %v4944
        %5109 = vmatprep.subr.bf16.mxu0 %v4941
        %5110 = vmatpush1.bf16.msra.mxu0 %v4940
        %5111 = vmatprep.subr.bf16.mxu0 %v4937
        %5112 = vmatpush1.bf16.msra.mxu0 %v4936
        %5113 = vmatprep.subr.bf16.mxu0 %v4933
        %5114 = vmatpush1.bf16.msra.mxu0 %v4932
        %5115 = vmatprep.subr.bf16.mxu0 %v4993
        %5116 = vmatpush2.bf16.msra.mxu0 %v4992
        %5117 = vmatprep.subr.bf16.mxu0 %v4989
        %5118 = vmatpush2.bf16.msra.mxu0 %v4988
        %5119 = vmatprep.subr.bf16.mxu0 %v4985
        %5120 = vmatpush2.bf16.msra.mxu0 %v4984
        %5121 = vmatprep.subr.bf16.mxu0 %v4981
        %5122 = vmatpush2.bf16.msra.mxu0 %v4980
        %5123 = vmatprep.subr.bf16.mxu0 %v4977
        %5124 = vmatpush2.bf16.msra.mxu0 %v4976
        %5125 = vmatprep.subr.bf16.mxu0 %v4973
        %5126 = vmatpush2.bf16.msra.mxu0 %v4972
        %5127 = vmatprep.subr.bf16.mxu0 %v4969
        %5128 = vmatpush2.bf16.msra.mxu0 %v4968
        %5129 = vmatprep.subr.bf16.mxu0 %v4965
        %5130 = vmatpush2.bf16.msra.mxu0 %v4964
        %5131 = vmatprep.mubr.bf16.mxu0 %v4651
        %5132 = vmatmul.mubr.bf16.gmra.mxu0 %v4650
        %v5133 = vpop.f32.mrf.mxu0
        %v5134 = vadd.f32 %v4729, %v5133
        %v5135 = vpop.f32.mrf.mxu0
        %v5136 = vadd.f32 %v4733, %v5135
        %v5137 = vpop.f32.mrf.mxu0
        %v5138 = vpop.f32.mrf.mxu0
        %5139 = vdwg.mxu0
        %v5140 = vmax.f32 %v5093, 0.0
        %v5141 = vmax.f32 %v5095, 0.0
        %v5142 = vmax.f32 %v5134, 0.0
        %v5143 = vmax.f32 %v5136, 0.0
        %v5144 = vpack.c.bf16 %v5140, %v5140
        %v5145 = vpack.c.bf16 %v5141, %v5141
        %v5146 = vpack.c.bf16 %v5142, %v5142
        %v5147 = vpack.c.bf16 %v5143, %v5143
        %v5148 = vld [vmem:[#allocation17] sm:$0xff]
        %v5149 = vld [vmem:[#allocation17 + $0x8] sm:$0xff]
        %v5150 = vld [vmem:[#allocation17 + $0x10] sm:$0xff]
        %v5151 = vld [vmem:[#allocation17 + $0x18] sm:$0xff]
        %v5152 = vld [vmem:[#allocation17 + $0x20] sm:$0xff]
        %v5153 = vld [vmem:[#allocation17 + $0x28] sm:$0xff]
        %v5154 = vld [vmem:[#allocation17 + $0x30] sm:$0xff]
        %v5155 = vld [vmem:[#allocation17 + $0x38] sm:$0xff]
        %v5156 = vld [vmem:[#allocation17 + $0x40] sm:$0xff]
        %v5157 = vld [vmem:[#allocation17 + $0x48] sm:$0xff]
        %v5158 = vld [vmem:[#allocation17 + $0x50] sm:$0xff]
        %v5159 = vld [vmem:[#allocation17 + $0x58] sm:$0xff]
        %v5160 = vld [vmem:[#allocation17 + $0x60] sm:$0xff]
        %v5161 = vld [vmem:[#allocation17 + $0x68] sm:$0xff]
        %v5162 = vld [vmem:[#allocation17 + $0x70] sm:$0xff]
        %v5163 = vld [vmem:[#allocation17 + $0x78] sm:$0xff]
        %v5164 = vld [vmem:[#allocation17 + $0x80] sm:$0xff]
        %v5165 = vld [vmem:[#allocation17 + $0x88] sm:$0xff]
        %v5166 = vld [vmem:[#allocation17 + $0x90] sm:$0xff]
        %v5167 = vld [vmem:[#allocation17 + $0x98] sm:$0xff]
        %v5168 = vld [vmem:[#allocation17 + $0xa0] sm:$0xff]
        %v5169 = vld [vmem:[#allocation17 + $0xa8] sm:$0xff]
        %v5170 = vld [vmem:[#allocation17 + $0xb0] sm:$0xff]
        %v5171 = vld [vmem:[#allocation17 + $0xb8] sm:$0xff]
        %v5172 = vld [vmem:[#allocation17 + $0xc0] sm:$0xff]
        %v5173 = vld [vmem:[#allocation17 + $0xc8] sm:$0xff]
        %v5174 = vld [vmem:[#allocation17 + $0xd0] sm:$0xff]
        %v5175 = vld [vmem:[#allocation17 + $0xd8] sm:$0xff]
        %v5176 = vld [vmem:[#allocation17 + $0xe0] sm:$0xff]
        %v5177 = vld [vmem:[#allocation17 + $0xe8] sm:$0xff]
        %v5178 = vld [vmem:[#allocation17 + $0xf0] sm:$0xff]
        %v5179 = vld [vmem:[#allocation17 + $0xf8] sm:$0xff]
        %v5180 = vld [vmem:[#allocation17 + $0x100] sm:$0xff]
        %v5181 = vld [vmem:[#allocation17 + $0x108] sm:$0xff]
        %v5182 = vld [vmem:[#allocation17 + $0x110] sm:$0xff]
        %v5183 = vld [vmem:[#allocation17 + $0x118] sm:$0xff]
        %v5184 = vld [vmem:[#allocation17 + $0x120] sm:$0xff]
        %v5185 = vld [vmem:[#allocation17 + $0x128] sm:$0xff]
        %v5186 = vld [vmem:[#allocation17 + $0x130] sm:$0xff]
        %v5187 = vld [vmem:[#allocation17 + $0x138] sm:$0xff]
        %v5188 = vld [vmem:[#allocation17 + $0x140] sm:$0xff]
        %v5189 = vld [vmem:[#allocation17 + $0x148] sm:$0xff]
        %v5190 = vld [vmem:[#allocation17 + $0x150] sm:$0xff]
        %v5191 = vld [vmem:[#allocation17 + $0x158] sm:$0xff]
        %v5192 = vld [vmem:[#allocation17 + $0x160] sm:$0xff]
        %v5193 = vld [vmem:[#allocation17 + $0x168] sm:$0xff]
        %v5194 = vld [vmem:[#allocation17 + $0x170] sm:$0xff]
        %v5195 = vld [vmem:[#allocation17 + $0x178] sm:$0xff]
        %v5196 = vld [vmem:[#allocation17 + $0x180] sm:$0xff]
        %v5197 = vld [vmem:[#allocation17 + $0x188] sm:$0xff]
        %v5198 = vld [vmem:[#allocation17 + $0x190] sm:$0xff]
        %v5199 = vld [vmem:[#allocation17 + $0x198] sm:$0xff]
        %v5200 = vld [vmem:[#allocation17 + $0x1a0] sm:$0xff]
        %v5201 = vld [vmem:[#allocation17 + $0x1a8] sm:$0xff]
        %v5202 = vld [vmem:[#allocation17 + $0x1b0] sm:$0xff]
        %v5203 = vld [vmem:[#allocation17 + $0x1b8] sm:$0xff]
        %v5204 = vld [vmem:[#allocation17 + $0x1c0] sm:$0xff]
        %v5205 = vld [vmem:[#allocation17 + $0x1c8] sm:$0xff]
        %v5206 = vld [vmem:[#allocation17 + $0x1d0] sm:$0xff]
        %v5207 = vld [vmem:[#allocation17 + $0x1d8] sm:$0xff]
        %v5208 = vld [vmem:[#allocation17 + $0x1e0] sm:$0xff]
        %v5209 = vld [vmem:[#allocation17 + $0x1e8] sm:$0xff]
        %v5210 = vld [vmem:[#allocation17 + $0x1f0] sm:$0xff]
        %v5211 = vld [vmem:[#allocation17 + $0x1f8] sm:$0xff]
        %v5212 = vld [vmem:[#allocation17 + $0x200] sm:$0xff]
        %v5213 = vld [vmem:[#allocation17 + $0x208] sm:$0xff]
        %v5214 = vld [vmem:[#allocation17 + $0x210] sm:$0xff]
        %v5215 = vld [vmem:[#allocation17 + $0x218] sm:$0xff]
        %v5216 = vld [vmem:[#allocation17 + $0x220] sm:$0xff]
        %v5217 = vld [vmem:[#allocation17 + $0x228] sm:$0xff]
        %v5218 = vld [vmem:[#allocation17 + $0x230] sm:$0xff]
        %v5219 = vld [vmem:[#allocation17 + $0x238] sm:$0xff]
        %v5220 = vld [vmem:[#allocation17 + $0x240] sm:$0xff]
        %v5221 = vld [vmem:[#allocation17 + $0x248] sm:$0xff]
        %v5222 = vld [vmem:[#allocation17 + $0x250] sm:$0xff]
        %v5223 = vld [vmem:[#allocation17 + $0x258] sm:$0xff]
        %v5224 = vld [vmem:[#allocation17 + $0x260] sm:$0xff]
        %v5225 = vld [vmem:[#allocation17 + $0x268] sm:$0xff]
        %v5226 = vld [vmem:[#allocation17 + $0x270] sm:$0xff]
        %v5227 = vld [vmem:[#allocation17 + $0x278] sm:$0xff]
        %v5228 = vld [vmem:[#allocation17 + $0x280] sm:$0xff]
        %v5229 = vld [vmem:[#allocation17 + $0x288] sm:$0xff]
        %v5230 = vld [vmem:[#allocation17 + $0x290] sm:$0xff]
        %v5231 = vld [vmem:[#allocation17 + $0x298] sm:$0xff]
        %v5232 = vld [vmem:[#allocation17 + $0x2a0] sm:$0xff]
        %v5233 = vld [vmem:[#allocation17 + $0x2a8] sm:$0xff]
        %v5234 = vld [vmem:[#allocation17 + $0x2b0] sm:$0xff]
        %v5235 = vld [vmem:[#allocation17 + $0x2b8] sm:$0xff]
        %v5236 = vld [vmem:[#allocation17 + $0x2c0] sm:$0xff]
        %v5237 = vld [vmem:[#allocation17 + $0x2c8] sm:$0xff]
        %v5238 = vld [vmem:[#allocation17 + $0x2d0] sm:$0xff]
        %v5239 = vld [vmem:[#allocation17 + $0x2d8] sm:$0xff]
        %v5240 = vld [vmem:[#allocation17 + $0x2e0] sm:$0xff]
        %v5241 = vld [vmem:[#allocation17 + $0x2e8] sm:$0xff]
        %v5242 = vld [vmem:[#allocation17 + $0x2f0] sm:$0xff]
        %v5243 = vld [vmem:[#allocation17 + $0x2f8] sm:$0xff]
        %v5244 = vld [vmem:[#allocation17 + $0x300] sm:$0xff]
        %v5245 = vld [vmem:[#allocation17 + $0x308] sm:$0xff]
        %v5246 = vld [vmem:[#allocation17 + $0x310] sm:$0xff]
        %v5247 = vld [vmem:[#allocation17 + $0x318] sm:$0xff]
        %v5248 = vld [vmem:[#allocation17 + $0x320] sm:$0xff]
        %v5249 = vld [vmem:[#allocation17 + $0x328] sm:$0xff]
        %v5250 = vld [vmem:[#allocation17 + $0x330] sm:$0xff]
        %v5251 = vld [vmem:[#allocation17 + $0x338] sm:$0xff]
        %v5252 = vld [vmem:[#allocation17 + $0x340] sm:$0xff]
        %v5253 = vld [vmem:[#allocation17 + $0x348] sm:$0xff]
        %v5254 = vld [vmem:[#allocation17 + $0x350] sm:$0xff]
        %v5255 = vld [vmem:[#allocation17 + $0x358] sm:$0xff]
        %v5256 = vld [vmem:[#allocation17 + $0x360] sm:$0xff]
        %v5257 = vld [vmem:[#allocation17 + $0x368] sm:$0xff]
        %v5258 = vld [vmem:[#allocation17 + $0x370] sm:$0xff]
        %v5259 = vld [vmem:[#allocation17 + $0x378] sm:$0xff]
        %v5260 = vld [vmem:[#allocation17 + $0x380] sm:$0xff]
        %v5261 = vld [vmem:[#allocation17 + $0x388] sm:$0xff]
        %v5262 = vld [vmem:[#allocation17 + $0x390] sm:$0xff]
        %v5263 = vld [vmem:[#allocation17 + $0x398] sm:$0xff]
        %v5264 = vld [vmem:[#allocation17 + $0x3a0] sm:$0xff]
        %v5265 = vld [vmem:[#allocation17 + $0x3a8] sm:$0xff]
        %v5266 = vld [vmem:[#allocation17 + $0x3b0] sm:$0xff]
        %v5267 = vld [vmem:[#allocation17 + $0x3b8] sm:$0xff]
        %v5268 = vld [vmem:[#allocation17 + $0x3c0] sm:$0xff]
        %v5269 = vld [vmem:[#allocation17 + $0x3c8] sm:$0xff]
        %v5270 = vld [vmem:[#allocation17 + $0x3d0] sm:$0xff]
        %v5271 = vld [vmem:[#allocation17 + $0x3d8] sm:$0xff]
        %v5272 = vld [vmem:[#allocation17 + $0x3e0] sm:$0xff]
        %v5273 = vld [vmem:[#allocation17 + $0x3e8] sm:$0xff]
        %v5274 = vld [vmem:[#allocation17 + $0x3f0] sm:$0xff]
        %v5275 = vld [vmem:[#allocation17 + $0x3f8] sm:$0xff]
        %v5276 = vld [vmem:[#allocation17 + $0x400] sm:$0xff]
        %v5277 = vld [vmem:[#allocation17 + $0x408] sm:$0xff]
        %v5278 = vld [vmem:[#allocation17 + $0x410] sm:$0xff]
        %v5279 = vld [vmem:[#allocation17 + $0x418] sm:$0xff]
        %v5280 = vld [vmem:[#allocation17 + $0x420] sm:$0xff]
        %v5281 = vld [vmem:[#allocation17 + $0x428] sm:$0xff]
        %v5282 = vld [vmem:[#allocation17 + $0x430] sm:$0xff]
        %v5283 = vld [vmem:[#allocation17 + $0x438] sm:$0xff]
        %v5284 = vld [vmem:[#allocation17 + $0x440] sm:$0xff]
        %v5285 = vld [vmem:[#allocation17 + $0x448] sm:$0xff]
        %v5286 = vld [vmem:[#allocation17 + $0x450] sm:$0xff]
        %v5287 = vld [vmem:[#allocation17 + $0x458] sm:$0xff]
        %v5288 = vld [vmem:[#allocation17 + $0x460] sm:$0xff]
        %v5289 = vld [vmem:[#allocation17 + $0x468] sm:$0xff]
        %v5290 = vld [vmem:[#allocation17 + $0x470] sm:$0xff]
        %v5291 = vld [vmem:[#allocation17 + $0x478] sm:$0xff]
        %v5292 = vld [vmem:[#allocation17 + $0x480] sm:$0xff]
        %v5293 = vld [vmem:[#allocation17 + $0x488] sm:$0xff]
        %v5294 = vld [vmem:[#allocation17 + $0x490] sm:$0xff]
        %v5295 = vld [vmem:[#allocation17 + $0x498] sm:$0xff]
        %v5296 = vld [vmem:[#allocation17 + $0x4a0] sm:$0xff]
        %v5297 = vld [vmem:[#allocation17 + $0x4a8] sm:$0xff]
        %v5298 = vld [vmem:[#allocation17 + $0x4b0] sm:$0xff]
        %v5299 = vld [vmem:[#allocation17 + $0x4b8] sm:$0xff]
        %v5300 = vld [vmem:[#allocation17 + $0x4c0] sm:$0xff]
        %v5301 = vld [vmem:[#allocation17 + $0x4c8] sm:$0xff]
        %v5302 = vld [vmem:[#allocation17 + $0x4d0] sm:$0xff]
        %v5303 = vld [vmem:[#allocation17 + $0x4d8] sm:$0xff]
        %v5304 = vld [vmem:[#allocation17 + $0x4e0] sm:$0xff]
        %v5305 = vld [vmem:[#allocation17 + $0x4e8] sm:$0xff]
        %v5306 = vld [vmem:[#allocation17 + $0x4f0] sm:$0xff]
        %v5307 = vld [vmem:[#allocation17 + $0x4f8] sm:$0xff]
        %v5308 = vld [vmem:[#allocation17 + $0x500] sm:$0xff]
        %v5309 = vld [vmem:[#allocation17 + $0x508] sm:$0xff]
        %v5310 = vld [vmem:[#allocation17 + $0x510] sm:$0xff]
        %v5311 = vld [vmem:[#allocation17 + $0x518] sm:$0xff]
        %v5312 = vld [vmem:[#allocation17 + $0x520] sm:$0xff]
        %v5313 = vld [vmem:[#allocation17 + $0x528] sm:$0xff]
        %v5314 = vld [vmem:[#allocation17 + $0x530] sm:$0xff]
        %v5315 = vld [vmem:[#allocation17 + $0x538] sm:$0xff]
        %v5316 = vld [vmem:[#allocation17 + $0x540] sm:$0xff]
        %v5317 = vld [vmem:[#allocation17 + $0x548] sm:$0xff]
        %v5318 = vld [vmem:[#allocation17 + $0x550] sm:$0xff]
        %v5319 = vld [vmem:[#allocation17 + $0x558] sm:$0xff]
        %v5320 = vld [vmem:[#allocation17 + $0x560] sm:$0xff]
        %v5321 = vld [vmem:[#allocation17 + $0x568] sm:$0xff]
        %v5322 = vld [vmem:[#allocation17 + $0x570] sm:$0xff]
        %v5323 = vld [vmem:[#allocation17 + $0x578] sm:$0xff]
        %v5324 = vld [vmem:[#allocation17 + $0x580] sm:$0xff]
        %v5325 = vld [vmem:[#allocation17 + $0x588] sm:$0xff]
        %v5326 = vld [vmem:[#allocation17 + $0x590] sm:$0xff]
        %v5327 = vld [vmem:[#allocation17 + $0x598] sm:$0xff]
        %v5328 = vld [vmem:[#allocation17 + $0x5a0] sm:$0xff]
        %v5329 = vld [vmem:[#allocation17 + $0x5a8] sm:$0xff]
        %v5330 = vld [vmem:[#allocation17 + $0x5b0] sm:$0xff]
        %v5331 = vld [vmem:[#allocation17 + $0x5b8] sm:$0xff]
        %v5332 = vld [vmem:[#allocation17 + $0x5c0] sm:$0xff]
        %v5333 = vld [vmem:[#allocation17 + $0x5c8] sm:$0xff]
        %v5334 = vld [vmem:[#allocation17 + $0x5d0] sm:$0xff]
        %v5335 = vld [vmem:[#allocation17 + $0x5d8] sm:$0xff]
        %v5336 = vld [vmem:[#allocation17 + $0x5e0] sm:$0xff]
        %v5337 = vld [vmem:[#allocation17 + $0x5e8] sm:$0xff]
        %v5338 = vld [vmem:[#allocation17 + $0x5f0] sm:$0xff]
        %v5339 = vld [vmem:[#allocation17 + $0x5f8] sm:$0xff]
        %v5340 = vld [vmem:[%s16] sm:$0x3f]
        %v5342 = vlaneseq
        %v5343 = vshrl.u32 %v5342, 7
        %v5344 = vsub.s32 0, %v5343
        %v5345 = vrot.slane %v5340, %v5344
        %v5346 = vlaneseq
        %v5347 = vshrl.u32 %v5346, 7
        %v5348 = vsub.s32 1, %v5347
        %v5349 = vrot.slane %v5340, %v5348
        %v5350 = vlaneseq
        %v5351 = vshrl.u32 %v5350, 7
        %v5352 = vsub.s32 2, %v5351
        %v5353 = vrot.slane %v5340, %v5352
        %v5354 = vlaneseq
        %v5355 = vshrl.u32 %v5354, 7
        %v5356 = vsub.s32 3, %v5355
        %v5357 = vrot.slane %v5340, %v5356
        %v5358 = vlaneseq
        %v5359 = vshrl.u32 %v5358, 7
        %v5360 = vsub.s32 4, %v5359
        %v5361 = vrot.slane %v5340, %v5360
        %v5362 = vlaneseq
        %v5363 = vshrl.u32 %v5362, 7
        %v5364 = vsub.s32 5, %v5363
        %v5365 = vrot.slane %v5340, %v5364
        %v5564 = vunpack.c.l.b16 %v5148
        %v5565 = vunpack.c.h.b16 %v5148
        %v5566 = vunpack.c.l.b16 %v5149
        %v5567 = vunpack.c.h.b16 %v5149
        %v5568 = vunpack.c.l.b16 %v5150
        %v5569 = vunpack.c.h.b16 %v5150
        %v5570 = vunpack.c.l.b16 %v5151
        %v5571 = vunpack.c.h.b16 %v5151
        %v5572 = vunpack.c.l.b16 %v5152
        %v5573 = vunpack.c.h.b16 %v5152
        %v5574 = vunpack.c.l.b16 %v5153
        %v5575 = vunpack.c.h.b16 %v5153
        %v5576 = vunpack.c.l.b16 %v5154
        %v5577 = vunpack.c.h.b16 %v5154
        %v5578 = vunpack.c.l.b16 %v5155
        %v5579 = vunpack.c.h.b16 %v5155
        %v5580 = vunpack.c.l.b16 %v5156
        %v5581 = vunpack.c.h.b16 %v5156
        %v5582 = vunpack.c.l.b16 %v5157
        %v5583 = vunpack.c.h.b16 %v5157
        %v5584 = vunpack.c.l.b16 %v5158
        %v5585 = vunpack.c.h.b16 %v5158
        %v5586 = vunpack.c.l.b16 %v5159
        %v5587 = vunpack.c.h.b16 %v5159
        %v5588 = vunpack.c.l.b16 %v5160
        %v5589 = vunpack.c.h.b16 %v5160
        %v5590 = vunpack.c.l.b16 %v5161
        %v5591 = vunpack.c.h.b16 %v5161
        %v5592 = vunpack.c.l.b16 %v5162
        %v5593 = vunpack.c.h.b16 %v5162
        %v5594 = vunpack.c.l.b16 %v5163
        %v5595 = vunpack.c.h.b16 %v5163
        %v5596 = vunpack.c.l.b16 %v5164
        %v5597 = vunpack.c.h.b16 %v5164
        %v5598 = vunpack.c.l.b16 %v5165
        %v5599 = vunpack.c.h.b16 %v5165
        %v5600 = vunpack.c.l.b16 %v5166
        %v5601 = vunpack.c.h.b16 %v5166
        %v5602 = vunpack.c.l.b16 %v5167
        %v5603 = vunpack.c.h.b16 %v5167
        %v5604 = vunpack.c.l.b16 %v5168
        %v5605 = vunpack.c.h.b16 %v5168
        %v5606 = vunpack.c.l.b16 %v5169
        %v5607 = vunpack.c.h.b16 %v5169
        %v5608 = vunpack.c.l.b16 %v5170
        %v5609 = vunpack.c.h.b16 %v5170
        %v5610 = vunpack.c.l.b16 %v5171
        %v5611 = vunpack.c.h.b16 %v5171
        %v5612 = vunpack.c.l.b16 %v5172
        %v5613 = vunpack.c.h.b16 %v5172
        %v5614 = vunpack.c.l.b16 %v5173
        %v5615 = vunpack.c.h.b16 %v5173
        %v5616 = vunpack.c.l.b16 %v5174
        %v5617 = vunpack.c.h.b16 %v5174
        %v5618 = vunpack.c.l.b16 %v5175
        %v5619 = vunpack.c.h.b16 %v5175
        %v5620 = vunpack.c.l.b16 %v5176
        %v5621 = vunpack.c.h.b16 %v5176
        %v5622 = vunpack.c.l.b16 %v5177
        %v5623 = vunpack.c.h.b16 %v5177
        %v5624 = vunpack.c.l.b16 %v5178
        %v5625 = vunpack.c.h.b16 %v5178
        %v5626 = vunpack.c.l.b16 %v5179
        %v5627 = vunpack.c.h.b16 %v5179
        %v5628 = vunpack.c.l.b16 %v5180
        %v5629 = vunpack.c.h.b16 %v5180
        %v5630 = vunpack.c.l.b16 %v5181
        %v5631 = vunpack.c.h.b16 %v5181
        %v5632 = vunpack.c.l.b16 %v5182
        %v5633 = vunpack.c.h.b16 %v5182
        %v5634 = vunpack.c.l.b16 %v5183
        %v5635 = vunpack.c.h.b16 %v5183
        %v5636 = vunpack.c.l.b16 %v5184
        %v5637 = vunpack.c.h.b16 %v5184
        %v5638 = vunpack.c.l.b16 %v5185
        %v5639 = vunpack.c.h.b16 %v5185
        %v5640 = vunpack.c.l.b16 %v5186
        %v5641 = vunpack.c.h.b16 %v5186
        %v5642 = vunpack.c.l.b16 %v5187
        %v5643 = vunpack.c.h.b16 %v5187
        %v5644 = vunpack.c.l.b16 %v5188
        %v5645 = vunpack.c.h.b16 %v5188
        %v5646 = vunpack.c.l.b16 %v5189
        %v5647 = vunpack.c.h.b16 %v5189
        %v5648 = vunpack.c.l.b16 %v5190
        %v5649 = vunpack.c.h.b16 %v5190
        %v5650 = vunpack.c.l.b16 %v5191
        %v5651 = vunpack.c.h.b16 %v5191
        %v5652 = vunpack.c.l.b16 %v5192
        %v5653 = vunpack.c.h.b16 %v5192
        %v5654 = vunpack.c.l.b16 %v5193
        %v5655 = vunpack.c.h.b16 %v5193
        %v5656 = vunpack.c.l.b16 %v5194
        %v5657 = vunpack.c.h.b16 %v5194
        %v5658 = vunpack.c.l.b16 %v5195
        %v5659 = vunpack.c.h.b16 %v5195
        %v5660 = vunpack.c.l.b16 %v5196
        %v5661 = vunpack.c.h.b16 %v5196
        %v5662 = vunpack.c.l.b16 %v5197
        %v5663 = vunpack.c.h.b16 %v5197
        %v5664 = vunpack.c.l.b16 %v5198
        %v5665 = vunpack.c.h.b16 %v5198
        %v5666 = vunpack.c.l.b16 %v5199
        %v5667 = vunpack.c.h.b16 %v5199
        %v5668 = vunpack.c.l.b16 %v5200
        %v5669 = vunpack.c.h.b16 %v5200
        %v5670 = vunpack.c.l.b16 %v5201
        %v5671 = vunpack.c.h.b16 %v5201
        %v5672 = vunpack.c.l.b16 %v5202
        %v5673 = vunpack.c.h.b16 %v5202
        %v5674 = vunpack.c.l.b16 %v5203
        %v5675 = vunpack.c.h.b16 %v5203
        %v5676 = vunpack.c.l.b16 %v5204
        %v5677 = vunpack.c.h.b16 %v5204
        %v5678 = vunpack.c.l.b16 %v5205
        %v5679 = vunpack.c.h.b16 %v5205
        %v5680 = vunpack.c.l.b16 %v5206
        %v5681 = vunpack.c.h.b16 %v5206
        %v5682 = vunpack.c.l.b16 %v5207
        %v5683 = vunpack.c.h.b16 %v5207
        %v5684 = vunpack.c.l.b16 %v5208
        %v5685 = vunpack.c.h.b16 %v5208
        %v5686 = vunpack.c.l.b16 %v5209
        %v5687 = vunpack.c.h.b16 %v5209
        %v5688 = vunpack.c.l.b16 %v5210
        %v5689 = vunpack.c.h.b16 %v5210
        %v5690 = vunpack.c.l.b16 %v5211
        %v5691 = vunpack.c.h.b16 %v5211
        %v5692 = vunpack.c.l.b16 %v5212
        %v5693 = vunpack.c.h.b16 %v5212
        %v5694 = vunpack.c.l.b16 %v5213
        %v5695 = vunpack.c.h.b16 %v5213
        %v5696 = vunpack.c.l.b16 %v5214
        %v5697 = vunpack.c.h.b16 %v5214
        %v5698 = vunpack.c.l.b16 %v5215
        %v5699 = vunpack.c.h.b16 %v5215
        %v5700 = vunpack.c.l.b16 %v5216
        %v5701 = vunpack.c.h.b16 %v5216
        %v5702 = vunpack.c.l.b16 %v5217
        %v5703 = vunpack.c.h.b16 %v5217
        %v5704 = vunpack.c.l.b16 %v5218
        %v5705 = vunpack.c.h.b16 %v5218
        %v5706 = vunpack.c.l.b16 %v5219
        %v5707 = vunpack.c.h.b16 %v5219
        %v5708 = vunpack.c.l.b16 %v5220
        %v5709 = vunpack.c.h.b16 %v5220
        %v5710 = vunpack.c.l.b16 %v5221
        %v5711 = vunpack.c.h.b16 %v5221
        %v5712 = vunpack.c.l.b16 %v5222
        %v5713 = vunpack.c.h.b16 %v5222
        %v5714 = vunpack.c.l.b16 %v5223
        %v5715 = vunpack.c.h.b16 %v5223
        %v5716 = vunpack.c.l.b16 %v5224
        %v5717 = vunpack.c.h.b16 %v5224
        %v5718 = vunpack.c.l.b16 %v5225
        %v5719 = vunpack.c.h.b16 %v5225
        %v5720 = vunpack.c.l.b16 %v5226
        %v5721 = vunpack.c.h.b16 %v5226
        %v5722 = vunpack.c.l.b16 %v5227
        %v5723 = vunpack.c.h.b16 %v5227
        %v5724 = vunpack.c.l.b16 %v5228
        %v5725 = vunpack.c.h.b16 %v5228
        %v5726 = vunpack.c.l.b16 %v5229
        %v5727 = vunpack.c.h.b16 %v5229
        %v5728 = vunpack.c.l.b16 %v5230
        %v5729 = vunpack.c.h.b16 %v5230
        %v5730 = vunpack.c.l.b16 %v5231
        %v5731 = vunpack.c.h.b16 %v5231
        %v5732 = vunpack.c.l.b16 %v5232
        %v5733 = vunpack.c.h.b16 %v5232
        %v5734 = vunpack.c.l.b16 %v5233
        %v5735 = vunpack.c.h.b16 %v5233
        %v5736 = vunpack.c.l.b16 %v5234
        %v5737 = vunpack.c.h.b16 %v5234
        %v5738 = vunpack.c.l.b16 %v5235
        %v5739 = vunpack.c.h.b16 %v5235
        %v5740 = vunpack.c.l.b16 %v5236
        %v5741 = vunpack.c.h.b16 %v5236
        %v5742 = vunpack.c.l.b16 %v5237
        %v5743 = vunpack.c.h.b16 %v5237
        %v5744 = vunpack.c.l.b16 %v5238
        %v5745 = vunpack.c.h.b16 %v5238
        %v5746 = vunpack.c.l.b16 %v5239
        %v5747 = vunpack.c.h.b16 %v5239
        %v5748 = vunpack.c.l.b16 %v5240
        %v5749 = vunpack.c.h.b16 %v5240
        %v5750 = vunpack.c.l.b16 %v5241
        %v5751 = vunpack.c.h.b16 %v5241
        %v5752 = vunpack.c.l.b16 %v5242
        %v5753 = vunpack.c.h.b16 %v5242
        %v5754 = vunpack.c.l.b16 %v5243
        %v5755 = vunpack.c.h.b16 %v5243
        %v5756 = vunpack.c.l.b16 %v5244
        %v5757 = vunpack.c.h.b16 %v5244
        %v5758 = vunpack.c.l.b16 %v5245
        %v5759 = vunpack.c.h.b16 %v5245
        %v5760 = vunpack.c.l.b16 %v5246
        %v5761 = vunpack.c.h.b16 %v5246
        %v5762 = vunpack.c.l.b16 %v5247
        %v5763 = vunpack.c.h.b16 %v5247
        %v5764 = vunpack.c.l.b16 %v5248
        %v5765 = vunpack.c.h.b16 %v5248
        %v5766 = vunpack.c.l.b16 %v5249
        %v5767 = vunpack.c.h.b16 %v5249
        %v5768 = vunpack.c.l.b16 %v5250
        %v5769 = vunpack.c.h.b16 %v5250
        %v5770 = vunpack.c.l.b16 %v5251
        %v5771 = vunpack.c.h.b16 %v5251
        %v5772 = vunpack.c.l.b16 %v5252
        %v5773 = vunpack.c.h.b16 %v5252
        %v5774 = vunpack.c.l.b16 %v5253
        %v5775 = vunpack.c.h.b16 %v5253
        %v5776 = vunpack.c.l.b16 %v5254
        %v5777 = vunpack.c.h.b16 %v5254
        %v5778 = vunpack.c.l.b16 %v5255
        %v5779 = vunpack.c.h.b16 %v5255
        %v5780 = vunpack.c.l.b16 %v5256
        %v5781 = vunpack.c.h.b16 %v5256
        %v5782 = vunpack.c.l.b16 %v5257
        %v5783 = vunpack.c.h.b16 %v5257
        %v5784 = vunpack.c.l.b16 %v5258
        %v5785 = vunpack.c.h.b16 %v5258
        %v5786 = vunpack.c.l.b16 %v5259
        %v5787 = vunpack.c.h.b16 %v5259
        %v5788 = vunpack.c.l.b16 %v5260
        %v5789 = vunpack.c.h.b16 %v5260
        %v5790 = vunpack.c.l.b16 %v5261
        %v5791 = vunpack.c.h.b16 %v5261
        %v5792 = vunpack.c.l.b16 %v5262
        %v5793 = vunpack.c.h.b16 %v5262
        %v5794 = vunpack.c.l.b16 %v5263
        %v5795 = vunpack.c.h.b16 %v5263
        %v5796 = vunpack.c.l.b16 %v5264
        %v5797 = vunpack.c.h.b16 %v5264
        %v5798 = vunpack.c.l.b16 %v5265
        %v5799 = vunpack.c.h.b16 %v5265
        %v5800 = vunpack.c.l.b16 %v5266
        %v5801 = vunpack.c.h.b16 %v5266
        %v5802 = vunpack.c.l.b16 %v5267
        %v5803 = vunpack.c.h.b16 %v5267
        %v5804 = vunpack.c.l.b16 %v5268
        %v5805 = vunpack.c.h.b16 %v5268
        %v5806 = vunpack.c.l.b16 %v5269
        %v5807 = vunpack.c.h.b16 %v5269
        %v5808 = vunpack.c.l.b16 %v5270
        %v5809 = vunpack.c.h.b16 %v5270
        %v5810 = vunpack.c.l.b16 %v5271
        %v5811 = vunpack.c.h.b16 %v5271
        %v5812 = vunpack.c.l.b16 %v5272
        %v5813 = vunpack.c.h.b16 %v5272
        %v5814 = vunpack.c.l.b16 %v5273
        %v5815 = vunpack.c.h.b16 %v5273
        %v5816 = vunpack.c.l.b16 %v5274
        %v5817 = vunpack.c.h.b16 %v5274
        %v5818 = vunpack.c.l.b16 %v5275
        %v5819 = vunpack.c.h.b16 %v5275
        %v5820 = vunpack.c.l.b16 %v5276
        %v5821 = vunpack.c.h.b16 %v5276
        %v5822 = vunpack.c.l.b16 %v5277
        %v5823 = vunpack.c.h.b16 %v5277
        %v5824 = vunpack.c.l.b16 %v5278
        %v5825 = vunpack.c.h.b16 %v5278
        %v5826 = vunpack.c.l.b16 %v5279
        %v5827 = vunpack.c.h.b16 %v5279
        %v5828 = vunpack.c.l.b16 %v5280
        %v5829 = vunpack.c.h.b16 %v5280
        %v5830 = vunpack.c.l.b16 %v5281
        %v5831 = vunpack.c.h.b16 %v5281
        %v5832 = vunpack.c.l.b16 %v5282
        %v5833 = vunpack.c.h.b16 %v5282
        %v5834 = vunpack.c.l.b16 %v5283
        %v5835 = vunpack.c.h.b16 %v5283
        %v5836 = vunpack.c.l.b16 %v5284
        %v5837 = vunpack.c.h.b16 %v5284
        %v5838 = vunpack.c.l.b16 %v5285
        %v5839 = vunpack.c.h.b16 %v5285
        %v5840 = vunpack.c.l.b16 %v5286
        %v5841 = vunpack.c.h.b16 %v5286
        %v5842 = vunpack.c.l.b16 %v5287
        %v5843 = vunpack.c.h.b16 %v5287
        %v5844 = vunpack.c.l.b16 %v5288
        %v5845 = vunpack.c.h.b16 %v5288
        %v5846 = vunpack.c.l.b16 %v5289
        %v5847 = vunpack.c.h.b16 %v5289
        %v5848 = vunpack.c.l.b16 %v5290
        %v5849 = vunpack.c.h.b16 %v5290
        %v5850 = vunpack.c.l.b16 %v5291
        %v5851 = vunpack.c.h.b16 %v5291
        %v5852 = vunpack.c.l.b16 %v5292
        %v5853 = vunpack.c.h.b16 %v5292
        %v5854 = vunpack.c.l.b16 %v5293
        %v5855 = vunpack.c.h.b16 %v5293
        %v5856 = vunpack.c.l.b16 %v5294
        %v5857 = vunpack.c.h.b16 %v5294
        %v5858 = vunpack.c.l.b16 %v5295
        %v5859 = vunpack.c.h.b16 %v5295
        %v5860 = vunpack.c.l.b16 %v5296
        %v5861 = vunpack.c.h.b16 %v5296
        %v5862 = vunpack.c.l.b16 %v5297
        %v5863 = vunpack.c.h.b16 %v5297
        %v5864 = vunpack.c.l.b16 %v5298
        %v5865 = vunpack.c.h.b16 %v5298
        %v5866 = vunpack.c.l.b16 %v5299
        %v5867 = vunpack.c.h.b16 %v5299
        %v5868 = vunpack.c.l.b16 %v5300
        %v5869 = vunpack.c.h.b16 %v5300
        %v5870 = vunpack.c.l.b16 %v5301
        %v5871 = vunpack.c.h.b16 %v5301
        %v5872 = vunpack.c.l.b16 %v5302
        %v5873 = vunpack.c.h.b16 %v5302
        %v5874 = vunpack.c.l.b16 %v5303
        %v5875 = vunpack.c.h.b16 %v5303
        %v5876 = vunpack.c.l.b16 %v5304
        %v5877 = vunpack.c.h.b16 %v5304
        %v5878 = vunpack.c.l.b16 %v5305
        %v5879 = vunpack.c.h.b16 %v5305
        %v5880 = vunpack.c.l.b16 %v5306
        %v5881 = vunpack.c.h.b16 %v5306
        %v5882 = vunpack.c.l.b16 %v5307
        %v5883 = vunpack.c.h.b16 %v5307
        %v5884 = vunpack.c.l.b16 %v5308
        %v5885 = vunpack.c.h.b16 %v5308
        %v5886 = vunpack.c.l.b16 %v5309
        %v5887 = vunpack.c.h.b16 %v5309
        %v5888 = vunpack.c.l.b16 %v5310
        %v5889 = vunpack.c.h.b16 %v5310
        %v5890 = vunpack.c.l.b16 %v5311
        %v5891 = vunpack.c.h.b16 %v5311
        %v5892 = vunpack.c.l.b16 %v5312
        %v5893 = vunpack.c.h.b16 %v5312
        %v5894 = vunpack.c.l.b16 %v5313
        %v5895 = vunpack.c.h.b16 %v5313
        %v5896 = vunpack.c.l.b16 %v5314
        %v5897 = vunpack.c.h.b16 %v5314
        %v5898 = vunpack.c.l.b16 %v5315
        %v5899 = vunpack.c.h.b16 %v5315
        %v5900 = vunpack.c.l.b16 %v5316
        %v5901 = vunpack.c.h.b16 %v5316
        %v5902 = vunpack.c.l.b16 %v5317
        %v5903 = vunpack.c.h.b16 %v5317
        %v5904 = vunpack.c.l.b16 %v5318
        %v5905 = vunpack.c.h.b16 %v5318
        %v5906 = vunpack.c.l.b16 %v5319
        %v5907 = vunpack.c.h.b16 %v5319
        %v5908 = vunpack.c.l.b16 %v5320
        %v5909 = vunpack.c.h.b16 %v5320
        %v5910 = vunpack.c.l.b16 %v5321
        %v5911 = vunpack.c.h.b16 %v5321
        %v5912 = vunpack.c.l.b16 %v5322
        %v5913 = vunpack.c.h.b16 %v5322
        %v5914 = vunpack.c.l.b16 %v5323
        %v5915 = vunpack.c.h.b16 %v5323
        %v5916 = vunpack.c.l.b16 %v5324
        %v5917 = vunpack.c.h.b16 %v5324
        %v5918 = vunpack.c.l.b16 %v5325
        %v5919 = vunpack.c.h.b16 %v5325
        %v5920 = vunpack.c.l.b16 %v5326
        %v5921 = vunpack.c.h.b16 %v5326
        %v5922 = vunpack.c.l.b16 %v5327
        %v5923 = vunpack.c.h.b16 %v5327
        %v5924 = vunpack.c.l.b16 %v5328
        %v5925 = vunpack.c.h.b16 %v5328
        %v5926 = vunpack.c.l.b16 %v5329
        %v5927 = vunpack.c.h.b16 %v5329
        %v5928 = vunpack.c.l.b16 %v5330
        %v5929 = vunpack.c.h.b16 %v5330
        %v5930 = vunpack.c.l.b16 %v5331
        %v5931 = vunpack.c.h.b16 %v5331
        %v5932 = vunpack.c.l.b16 %v5332
        %v5933 = vunpack.c.h.b16 %v5332
        %v5934 = vunpack.c.l.b16 %v5333
        %v5935 = vunpack.c.h.b16 %v5333
        %v5936 = vunpack.c.l.b16 %v5334
        %v5937 = vunpack.c.h.b16 %v5334
        %v5938 = vunpack.c.l.b16 %v5335
        %v5939 = vunpack.c.h.b16 %v5335
        %v5940 = vunpack.c.l.b16 %v5336
        %v5941 = vunpack.c.h.b16 %v5336
        %v5942 = vunpack.c.l.b16 %v5337
        %v5943 = vunpack.c.h.b16 %v5337
        %v5944 = vunpack.c.l.b16 %v5338
        %v5945 = vunpack.c.h.b16 %v5338
        %v5946 = vunpack.c.l.b16 %v5339
        %v5947 = vunpack.c.h.b16 %v5339
        %v5948 = vpack.c.b16 %v5570, %v5564
        %v5949 = vpack.c.b16 %v5571, %v5565
        %v5950 = vpack.c.b16 %v5572, %v5566
        %v5951 = vpack.c.b16 %v5573, %v5567
        %v5952 = vpack.c.b16 %v5574, %v5568
        %v5953 = vpack.c.b16 %v5575, %v5569
        %v5954 = vpack.c.b16 %v5582, %v5576
        %v5955 = vpack.c.b16 %v5583, %v5577
        %v5956 = vpack.c.b16 %v5584, %v5578
        %v5957 = vpack.c.b16 %v5585, %v5579
        %v5958 = vpack.c.b16 %v5586, %v5580
        %v5959 = vpack.c.b16 %v5587, %v5581
        %v5960 = vpack.c.b16 %v5594, %v5588
        %v5961 = vpack.c.b16 %v5595, %v5589
        %v5962 = vpack.c.b16 %v5596, %v5590
        %v5963 = vpack.c.b16 %v5597, %v5591
        %v5964 = vpack.c.b16 %v5598, %v5592
        %v5965 = vpack.c.b16 %v5599, %v5593
        %v5966 = vpack.c.b16 %v5606, %v5600
        %v5967 = vpack.c.b16 %v5607, %v5601
        %v5968 = vpack.c.b16 %v5608, %v5602
        %v5969 = vpack.c.b16 %v5609, %v5603
        %v5970 = vpack.c.b16 %v5610, %v5604
        %v5971 = vpack.c.b16 %v5611, %v5605
        %v5972 = vpack.c.b16 %v5618, %v5612
        %v5973 = vpack.c.b16 %v5619, %v5613
        %v5974 = vpack.c.b16 %v5620, %v5614
        %v5975 = vpack.c.b16 %v5621, %v5615
        %v5976 = vpack.c.b16 %v5622, %v5616
        %v5977 = vpack.c.b16 %v5623, %v5617
        %v5978 = vpack.c.b16 %v5630, %v5624
        %v5979 = vpack.c.b16 %v5631, %v5625
        %v5980 = vpack.c.b16 %v5632, %v5626
        %v5981 = vpack.c.b16 %v5633, %v5627
        %v5982 = vpack.c.b16 %v5634, %v5628
        %v5983 = vpack.c.b16 %v5635, %v5629
        %v5984 = vpack.c.b16 %v5642, %v5636
        %v5985 = vpack.c.b16 %v5643, %v5637
        %v5986 = vpack.c.b16 %v5644, %v5638
        %v5987 = vpack.c.b16 %v5645, %v5639
        %v5988 = vpack.c.b16 %v5646, %v5640
        %v5989 = vpack.c.b16 %v5647, %v5641
        %v5990 = vpack.c.b16 %v5654, %v5648
        %v5991 = vpack.c.b16 %v5655, %v5649
        %v5992 = vpack.c.b16 %v5656, %v5650
        %v5993 = vpack.c.b16 %v5657, %v5651
        %v5994 = vpack.c.b16 %v5658, %v5652
        %v5995 = vpack.c.b16 %v5659, %v5653
        %v5996 = vpack.c.b16 %v5666, %v5660
        %v5997 = vpack.c.b16 %v5667, %v5661
        %v5998 = vpack.c.b16 %v5668, %v5662
        %v5999 = vpack.c.b16 %v5669, %v5663
        %v6000 = vpack.c.b16 %v5670, %v5664
        %v6001 = vpack.c.b16 %v5671, %v5665
        %v6002 = vpack.c.b16 %v5678, %v5672
        %v6003 = vpack.c.b16 %v5679, %v5673
        %v6004 = vpack.c.b16 %v5680, %v5674
        %v6005 = vpack.c.b16 %v5681, %v5675
        %v6006 = vpack.c.b16 %v5682, %v5676
        %v6007 = vpack.c.b16 %v5683, %v5677
        %v6008 = vpack.c.b16 %v5690, %v5684
        %v6009 = vpack.c.b16 %v5691, %v5685
        %v6010 = vpack.c.b16 %v5692, %v5686
        %v6011 = vpack.c.b16 %v5693, %v5687
        %v6012 = vpack.c.b16 %v5694, %v5688
        %v6013 = vpack.c.b16 %v5695, %v5689
        %v6014 = vpack.c.b16 %v5702, %v5696
        %v6015 = vpack.c.b16 %v5703, %v5697
        %v6016 = vpack.c.b16 %v5704, %v5698
        %v6017 = vpack.c.b16 %v5705, %v5699
        %v6018 = vpack.c.b16 %v5706, %v5700
        %v6019 = vpack.c.b16 %v5707, %v5701
        %v6020 = vpack.c.b16 %v5714, %v5708
        %v6021 = vpack.c.b16 %v5715, %v5709
        %v6022 = vpack.c.b16 %v5716, %v5710
        %v6023 = vpack.c.b16 %v5717, %v5711
        %v6024 = vpack.c.b16 %v5718, %v5712
        %v6025 = vpack.c.b16 %v5719, %v5713
        %v6026 = vpack.c.b16 %v5726, %v5720
        %v6027 = vpack.c.b16 %v5727, %v5721
        %v6028 = vpack.c.b16 %v5728, %v5722
        %v6029 = vpack.c.b16 %v5729, %v5723
        %v6030 = vpack.c.b16 %v5730, %v5724
        %v6031 = vpack.c.b16 %v5731, %v5725
        %v6032 = vpack.c.b16 %v5738, %v5732
        %v6033 = vpack.c.b16 %v5739, %v5733
        %v6034 = vpack.c.b16 %v5740, %v5734
        %v6035 = vpack.c.b16 %v5741, %v5735
        %v6036 = vpack.c.b16 %v5742, %v5736
        %v6037 = vpack.c.b16 %v5743, %v5737
        %v6038 = vpack.c.b16 %v5750, %v5744
        %v6039 = vpack.c.b16 %v5751, %v5745
        %v6040 = vpack.c.b16 %v5752, %v5746
        %v6041 = vpack.c.b16 %v5753, %v5747
        %v6042 = vpack.c.b16 %v5754, %v5748
        %v6043 = vpack.c.b16 %v5755, %v5749
        %v6044 = vpack.c.b16 %v5762, %v5756
        %v6045 = vpack.c.b16 %v5763, %v5757
        %v6046 = vpack.c.b16 %v5764, %v5758
        %v6047 = vpack.c.b16 %v5765, %v5759
        %v6048 = vpack.c.b16 %v5766, %v5760
        %v6049 = vpack.c.b16 %v5767, %v5761
        %v6050 = vpack.c.b16 %v5774, %v5768
        %v6051 = vpack.c.b16 %v5775, %v5769
        %v6052 = vpack.c.b16 %v5776, %v5770
        %v6053 = vpack.c.b16 %v5777, %v5771
        %v6054 = vpack.c.b16 %v5778, %v5772
        %v6055 = vpack.c.b16 %v5779, %v5773
        %v6056 = vpack.c.b16 %v5786, %v5780
        %v6057 = vpack.c.b16 %v5787, %v5781
        %v6058 = vpack.c.b16 %v5788, %v5782
        %v6059 = vpack.c.b16 %v5789, %v5783
        %v6060 = vpack.c.b16 %v5790, %v5784
        %v6061 = vpack.c.b16 %v5791, %v5785
        %v6062 = vpack.c.b16 %v5798, %v5792
        %v6063 = vpack.c.b16 %v5799, %v5793
        %v6064 = vpack.c.b16 %v5800, %v5794
        %v6065 = vpack.c.b16 %v5801, %v5795
        %v6066 = vpack.c.b16 %v5802, %v5796
        %v6067 = vpack.c.b16 %v5803, %v5797
        %v6068 = vpack.c.b16 %v5810, %v5804
        %v6069 = vpack.c.b16 %v5811, %v5805
        %v6070 = vpack.c.b16 %v5812, %v5806
        %v6071 = vpack.c.b16 %v5813, %v5807
        %v6072 = vpack.c.b16 %v5814, %v5808
        %v6073 = vpack.c.b16 %v5815, %v5809
        %v6074 = vpack.c.b16 %v5822, %v5816
        %v6075 = vpack.c.b16 %v5823, %v5817
        %v6076 = vpack.c.b16 %v5824, %v5818
        %v6077 = vpack.c.b16 %v5825, %v5819
        %v6078 = vpack.c.b16 %v5826, %v5820
        %v6079 = vpack.c.b16 %v5827, %v5821
        %v6080 = vpack.c.b16 %v5834, %v5828
        %v6081 = vpack.c.b16 %v5835, %v5829
        %v6082 = vpack.c.b16 %v5836, %v5830
        %v6083 = vpack.c.b16 %v5837, %v5831
        %v6084 = vpack.c.b16 %v5838, %v5832
        %v6085 = vpack.c.b16 %v5839, %v5833
        %v6086 = vpack.c.b16 %v5846, %v5840
        %v6087 = vpack.c.b16 %v5847, %v5841
        %v6088 = vpack.c.b16 %v5848, %v5842
        %v6089 = vpack.c.b16 %v5849, %v5843
        %v6090 = vpack.c.b16 %v5850, %v5844
        %v6091 = vpack.c.b16 %v5851, %v5845
        %v6092 = vpack.c.b16 %v5858, %v5852
        %v6093 = vpack.c.b16 %v5859, %v5853
        %v6094 = vpack.c.b16 %v5860, %v5854
        %v6095 = vpack.c.b16 %v5861, %v5855
        %v6096 = vpack.c.b16 %v5862, %v5856
        %v6097 = vpack.c.b16 %v5863, %v5857
        %v6098 = vpack.c.b16 %v5870, %v5864
        %v6099 = vpack.c.b16 %v5871, %v5865
        %v6100 = vpack.c.b16 %v5872, %v5866
        %v6101 = vpack.c.b16 %v5873, %v5867
        %v6102 = vpack.c.b16 %v5874, %v5868
        %v6103 = vpack.c.b16 %v5875, %v5869
        %v6104 = vpack.c.b16 %v5882, %v5876
        %v6105 = vpack.c.b16 %v5883, %v5877
        %v6106 = vpack.c.b16 %v5884, %v5878
        %v6107 = vpack.c.b16 %v5885, %v5879
        %v6108 = vpack.c.b16 %v5886, %v5880
        %v6109 = vpack.c.b16 %v5887, %v5881
        %v6110 = vpack.c.b16 %v5894, %v5888
        %v6111 = vpack.c.b16 %v5895, %v5889
        %v6112 = vpack.c.b16 %v5896, %v5890
        %v6113 = vpack.c.b16 %v5897, %v5891
        %v6114 = vpack.c.b16 %v5898, %v5892
        %v6115 = vpack.c.b16 %v5899, %v5893
        %v6116 = vpack.c.b16 %v5906, %v5900
        %v6117 = vpack.c.b16 %v5907, %v5901
        %v6118 = vpack.c.b16 %v5908, %v5902
        %v6119 = vpack.c.b16 %v5909, %v5903
        %v6120 = vpack.c.b16 %v5910, %v5904
        %v6121 = vpack.c.b16 %v5911, %v5905
        %v6122 = vpack.c.b16 %v5918, %v5912
        %v6123 = vpack.c.b16 %v5919, %v5913
        %v6124 = vpack.c.b16 %v5920, %v5914
        %v6125 = vpack.c.b16 %v5921, %v5915
        %v6126 = vpack.c.b16 %v5922, %v5916
        %v6127 = vpack.c.b16 %v5923, %v5917
        %v6128 = vpack.c.b16 %v5930, %v5924
        %v6129 = vpack.c.b16 %v5931, %v5925
        %v6130 = vpack.c.b16 %v5932, %v5926
        %v6131 = vpack.c.b16 %v5933, %v5927
        %v6132 = vpack.c.b16 %v5934, %v5928
        %v6133 = vpack.c.b16 %v5935, %v5929
        %v6134 = vpack.c.b16 %v5942, %v5936
        %v6135 = vpack.c.b16 %v5943, %v5937
        %v6136 = vpack.c.b16 %v5944, %v5938
        %v6137 = vpack.c.b16 %v5945, %v5939
        %v6138 = vpack.c.b16 %v5946, %v5940
        %v6139 = vpack.c.b16 %v5947, %v5941
        %6332 = vmatprep.subr.bf16.mxu0 %v5991
        %6333 = vmatpush1.bf16.msra.mxu0 %v5990
        %6334 = vmatprep.subr.bf16.mxu0 %v5985
        %6335 = vmatpush1.bf16.msra.mxu0 %v5984
        %6336 = vmatprep.subr.bf16.mxu0 %v5979
        %6337 = vmatpush1.bf16.msra.mxu0 %v5978
        %6338 = vmatprep.subr.bf16.mxu0 %v5973
        %6339 = vmatpush1.bf16.msra.mxu0 %v5972
        %6340 = vmatprep.subr.bf16.mxu0 %v5967
        %6341 = vmatpush1.bf16.msra.mxu0 %v5966
        %6342 = vmatprep.subr.bf16.mxu0 %v5961
        %6343 = vmatpush1.bf16.msra.mxu0 %v5960
        %6344 = vmatprep.subr.bf16.mxu0 %v5955
        %6345 = vmatpush1.bf16.msra.mxu0 %v5954
        %6346 = vmatprep.subr.bf16.mxu0 %v5949
        %6347 = vmatpush1.bf16.msra.mxu0 %v5948
        %6348 = vmatprep.subr.bf16.mxu0 %v6039
        %6349 = vmatpush2.bf16.msra.mxu0 %v6038
        %6350 = vmatprep.subr.bf16.mxu0 %v6033
        %6351 = vmatpush2.bf16.msra.mxu0 %v6032
        %6352 = vmatprep.subr.bf16.mxu0 %v6027
        %6353 = vmatpush2.bf16.msra.mxu0 %v6026
        %6354 = vmatprep.subr.bf16.mxu0 %v6021
        %6355 = vmatpush2.bf16.msra.mxu0 %v6020
        %6356 = vmatprep.subr.bf16.mxu0 %v6015
        %6357 = vmatpush2.bf16.msra.mxu0 %v6014
        %6358 = vmatprep.subr.bf16.mxu0 %v6009
        %6359 = vmatpush2.bf16.msra.mxu0 %v6008
        %6360 = vmatprep.subr.bf16.mxu0 %v6003
        %6361 = vmatpush2.bf16.msra.mxu0 %v6002
        %6362 = vmatprep.subr.bf16.mxu0 %v5997
        %6363 = vmatpush2.bf16.msra.mxu0 %v5996
        %6364 = vmatprep.mubr.bf16.mxu0 %v5145
        %6365 = vmatmul.mubr.bf16.gmra.mxu0 %v5144
        %v6366 = vpop.f32.mrf.mxu0
        %v6367 = vadd.f32 %v5345, %v6366
        %v6368 = vpop.f32.mrf.mxu0
        %v6369 = vadd.f32 %v5349, %v6368
        %v6370 = vpop.f32.mrf.mxu0
        %v6371 = vpop.f32.mrf.mxu0
        %6372 = vdwg.mxu0
        %6373 = vmatprep.subr.bf16.mxu0 %v6087
        %6374 = vmatpush1.bf16.msra.mxu0 %v6086
        %6375 = vmatprep.subr.bf16.mxu0 %v6081
        %6376 = vmatpush1.bf16.msra.mxu0 %v6080
        %6377 = vmatprep.subr.bf16.mxu0 %v6075
        %6378 = vmatpush1.bf16.msra.mxu0 %v6074
        %6379 = vmatprep.subr.bf16.mxu0 %v6069
        %6380 = vmatpush1.bf16.msra.mxu0 %v6068
        %6381 = vmatprep.subr.bf16.mxu0 %v6063
        %6382 = vmatpush1.bf16.msra.mxu0 %v6062
        %6383 = vmatprep.subr.bf16.mxu0 %v6057
        %6384 = vmatpush1.bf16.msra.mxu0 %v6056
        %6385 = vmatprep.subr.bf16.mxu0 %v6051
        %6386 = vmatpush1.bf16.msra.mxu0 %v6050
        %6387 = vmatprep.subr.bf16.mxu0 %v6045
        %6388 = vmatpush1.bf16.msra.mxu0 %v6044
        %6389 = vmatprep.subr.bf16.mxu0 %v6135
        %6390 = vmatpush2.bf16.msra.mxu0 %v6134
        %6391 = vmatprep.subr.bf16.mxu0 %v6129
        %6392 = vmatpush2.bf16.msra.mxu0 %v6128
        %6393 = vmatprep.subr.bf16.mxu0 %v6123
        %6394 = vmatpush2.bf16.msra.mxu0 %v6122
        %6395 = vmatprep.subr.bf16.mxu0 %v6117
        %6396 = vmatpush2.bf16.msra.mxu0 %v6116
        %6397 = vmatprep.subr.bf16.mxu0 %v6111
        %6398 = vmatpush2.bf16.msra.mxu0 %v6110
        %6399 = vmatprep.subr.bf16.mxu0 %v6105
        %6400 = vmatpush2.bf16.msra.mxu0 %v6104
        %6401 = vmatprep.subr.bf16.mxu0 %v6099
        %6402 = vmatpush2.bf16.msra.mxu0 %v6098
        %6403 = vmatprep.subr.bf16.mxu0 %v6093
        %6404 = vmatpush2.bf16.msra.mxu0 %v6092
        %6405 = vmatprep.mubr.bf16.mxu0 %v5147
        %6406 = vmatmul.mubr.bf16.gmra.mxu0 %v5146
        %v6407 = vpop.f32.mrf.mxu0
        %v6408 = vadd.f32 %v6367, %v6407
        %v6409 = vpop.f32.mrf.mxu0
        %v6410 = vadd.f32 %v6369, %v6409
        %v6411 = vpop.f32.mrf.mxu0
        %v6412 = vpop.f32.mrf.mxu0
        %6413 = vdwg.mxu0
        %6414 = vmatprep.subr.bf16.mxu0 %v5993
        %6415 = vmatpush1.bf16.msra.mxu0 %v5992
        %6416 = vmatprep.subr.bf16.mxu0 %v5987
        %6417 = vmatpush1.bf16.msra.mxu0 %v5986
        %6418 = vmatprep.subr.bf16.mxu0 %v5981
        %6419 = vmatpush1.bf16.msra.mxu0 %v5980
        %6420 = vmatprep.subr.bf16.mxu0 %v5975
        %6421 = vmatpush1.bf16.msra.mxu0 %v5974
        %6422 = vmatprep.subr.bf16.mxu0 %v5969
        %6423 = vmatpush1.bf16.msra.mxu0 %v5968
        %6424 = vmatprep.subr.bf16.mxu0 %v5963
        %6425 = vmatpush1.bf16.msra.mxu0 %v5962
        %6426 = vmatprep.subr.bf16.mxu0 %v5957
        %6427 = vmatpush1.bf16.msra.mxu0 %v5956
        %6428 = vmatprep.subr.bf16.mxu0 %v5951
        %6429 = vmatpush1.bf16.msra.mxu0 %v5950
        %6430 = vmatprep.subr.bf16.mxu0 %v6041
        %6431 = vmatpush2.bf16.msra.mxu0 %v6040
        %6432 = vmatprep.subr.bf16.mxu0 %v6035
        %6433 = vmatpush2.bf16.msra.mxu0 %v6034
        %6434 = vmatprep.subr.bf16.mxu0 %v6029
        %6435 = vmatpush2.bf16.msra.mxu0 %v6028
        %6436 = vmatprep.subr.bf16.mxu0 %v6023
        %6437 = vmatpush2.bf16.msra.mxu0 %v6022
        %6438 = vmatprep.subr.bf16.mxu0 %v6017
        %6439 = vmatpush2.bf16.msra.mxu0 %v6016
        %6440 = vmatprep.subr.bf16.mxu0 %v6011
        %6441 = vmatpush2.bf16.msra.mxu0 %v6010
        %6442 = vmatprep.subr.bf16.mxu0 %v6005
        %6443 = vmatpush2.bf16.msra.mxu0 %v6004
        %6444 = vmatprep.subr.bf16.mxu0 %v5999
        %6445 = vmatpush2.bf16.msra.mxu0 %v5998
        %6446 = vmatprep.mubr.bf16.mxu0 %v5145
        %6447 = vmatmul.mubr.bf16.gmra.mxu0 %v5144
        %v6448 = vpop.f32.mrf.mxu0
        %v6449 = vadd.f32 %v5353, %v6448
        %v6450 = vpop.f32.mrf.mxu0
        %v6451 = vadd.f32 %v5357, %v6450
        %v6452 = vpop.f32.mrf.mxu0
        %v6453 = vpop.f32.mrf.mxu0
        %6454 = vdwg.mxu0
        %6455 = vmatprep.subr.bf16.mxu0 %v6089
        %6456 = vmatpush1.bf16.msra.mxu0 %v6088
        %6457 = vmatprep.subr.bf16.mxu0 %v6083
        %6458 = vmatpush1.bf16.msra.mxu0 %v6082
        %6459 = vmatprep.subr.bf16.mxu0 %v6077
        %6460 = vmatpush1.bf16.msra.mxu0 %v6076
        %6461 = vmatprep.subr.bf16.mxu0 %v6071
        %6462 = vmatpush1.bf16.msra.mxu0 %v6070
        %6463 = vmatprep.subr.bf16.mxu0 %v6065
        %6464 = vmatpush1.bf16.msra.mxu0 %v6064
        %6465 = vmatprep.subr.bf16.mxu0 %v6059
        %6466 = vmatpush1.bf16.msra.mxu0 %v6058
        %6467 = vmatprep.subr.bf16.mxu0 %v6053
        %6468 = vmatpush1.bf16.msra.mxu0 %v6052
        %6469 = vmatprep.subr.bf16.mxu0 %v6047
        %6470 = vmatpush1.bf16.msra.mxu0 %v6046
        %6471 = vmatprep.subr.bf16.mxu0 %v6137
        %6472 = vmatpush2.bf16.msra.mxu0 %v6136
        %6473 = vmatprep.subr.bf16.mxu0 %v6131
        %6474 = vmatpush2.bf16.msra.mxu0 %v6130
        %6475 = vmatprep.subr.bf16.mxu0 %v6125
        %6476 = vmatpush2.bf16.msra.mxu0 %v6124
        %6477 = vmatprep.subr.bf16.mxu0 %v6119
        %6478 = vmatpush2.bf16.msra.mxu0 %v6118
        %6479 = vmatprep.subr.bf16.mxu0 %v6113
        %6480 = vmatpush2.bf16.msra.mxu0 %v6112
        %6481 = vmatprep.subr.bf16.mxu0 %v6107
        %6482 = vmatpush2.bf16.msra.mxu0 %v6106
        %6483 = vmatprep.subr.bf16.mxu0 %v6101
        %6484 = vmatpush2.bf16.msra.mxu0 %v6100
        %6485 = vmatprep.subr.bf16.mxu0 %v6095
        %6486 = vmatpush2.bf16.msra.mxu0 %v6094
        %6487 = vmatprep.mubr.bf16.mxu0 %v5147
        %6488 = vmatmul.mubr.bf16.gmra.mxu0 %v5146
        %v6489 = vpop.f32.mrf.mxu0
        %v6490 = vadd.f32 %v6449, %v6489
        %v6491 = vpop.f32.mrf.mxu0
        %v6492 = vadd.f32 %v6451, %v6491
        %v6493 = vpop.f32.mrf.mxu0
        %v6494 = vpop.f32.mrf.mxu0
        %6495 = vdwg.mxu0
        %6496 = vmatprep.subr.bf16.mxu0 %v5995
        %6497 = vmatpush1.bf16.msra.mxu0 %v5994
        %6498 = vmatprep.subr.bf16.mxu0 %v5989
        %6499 = vmatpush1.bf16.msra.mxu0 %v5988
        %6500 = vmatprep.subr.bf16.mxu0 %v5983
        %6501 = vmatpush1.bf16.msra.mxu0 %v5982
        %6502 = vmatprep.subr.bf16.mxu0 %v5977
        %6503 = vmatpush1.bf16.msra.mxu0 %v5976
        %6504 = vmatprep.subr.bf16.mxu0 %v5971
        %6505 = vmatpush1.bf16.msra.mxu0 %v5970
        %6506 = vmatprep.subr.bf16.mxu0 %v5965
        %6507 = vmatpush1.bf16.msra.mxu0 %v5964
        %6508 = vmatprep.subr.bf16.mxu0 %v5959
        %6509 = vmatpush1.bf16.msra.mxu0 %v5958
        %6510 = vmatprep.subr.bf16.mxu0 %v5953
        %6511 = vmatpush1.bf16.msra.mxu0 %v5952
        %6512 = vmatprep.subr.bf16.mxu0 %v6043
        %6513 = vmatpush2.bf16.msra.mxu0 %v6042
        %6514 = vmatprep.subr.bf16.mxu0 %v6037
        %6515 = vmatpush2.bf16.msra.mxu0 %v6036
        %6516 = vmatprep.subr.bf16.mxu0 %v6031
        %6517 = vmatpush2.bf16.msra.mxu0 %v6030
        %6518 = vmatprep.subr.bf16.mxu0 %v6025
        %6519 = vmatpush2.bf16.msra.mxu0 %v6024
        %6520 = vmatprep.subr.bf16.mxu0 %v6019
        %6521 = vmatpush2.bf16.msra.mxu0 %v6018
        %6522 = vmatprep.subr.bf16.mxu0 %v6013
        %6523 = vmatpush2.bf16.msra.mxu0 %v6012
        %6524 = vmatprep.subr.bf16.mxu0 %v6007
        %6525 = vmatpush2.bf16.msra.mxu0 %v6006
        %6526 = vmatprep.subr.bf16.mxu0 %v6001
        %6527 = vmatpush2.bf16.msra.mxu0 %v6000
        %6528 = vmatprep.mubr.bf16.mxu0 %v5145
        %6529 = vmatmul.mubr.bf16.gmra.mxu0 %v5144
        %v6530 = vpop.f32.mrf.mxu0
        %v6531 = vadd.f32 %v5361, %v6530
        %v6532 = vpop.f32.mrf.mxu0
        %v6533 = vadd.f32 %v5365, %v6532
        %v6534 = vpop.f32.mrf.mxu0
        %v6535 = vpop.f32.mrf.mxu0
        %6536 = vdwg.mxu0
        %6537 = vmatprep.subr.bf16.mxu0 %v6091
        %6538 = vmatpush1.bf16.msra.mxu0 %v6090
        %6539 = vmatprep.subr.bf16.mxu0 %v6085
        %6540 = vmatpush1.bf16.msra.mxu0 %v6084
        %6541 = vmatprep.subr.bf16.mxu0 %v6079
        %6542 = vmatpush1.bf16.msra.mxu0 %v6078
        %6543 = vmatprep.subr.bf16.mxu0 %v6073
        %6544 = vmatpush1.bf16.msra.mxu0 %v6072
        %6545 = vmatprep.subr.bf16.mxu0 %v6067
        %6546 = vmatpush1.bf16.msra.mxu0 %v6066
        %6547 = vmatprep.subr.bf16.mxu0 %v6061
        %6548 = vmatpush1.bf16.msra.mxu0 %v6060
        %6549 = vmatprep.subr.bf16.mxu0 %v6055
        %6550 = vmatpush1.bf16.msra.mxu0 %v6054
        %6551 = vmatprep.subr.bf16.mxu0 %v6049
        %6552 = vmatpush1.bf16.msra.mxu0 %v6048
        %6553 = vmatprep.subr.bf16.mxu0 %v6139
        %6554 = vmatpush2.bf16.msra.mxu0 %v6138
        %6555 = vmatprep.subr.bf16.mxu0 %v6133
        %6556 = vmatpush2.bf16.msra.mxu0 %v6132
        %6557 = vmatprep.subr.bf16.mxu0 %v6127
        %6558 = vmatpush2.bf16.msra.mxu0 %v6126
        %6559 = vmatprep.subr.bf16.mxu0 %v6121
        %6560 = vmatpush2.bf16.msra.mxu0 %v6120
        %6561 = vmatprep.subr.bf16.mxu0 %v6115
        %6562 = vmatpush2.bf16.msra.mxu0 %v6114
        %6563 = vmatprep.subr.bf16.mxu0 %v6109
        %6564 = vmatpush2.bf16.msra.mxu0 %v6108
        %6565 = vmatprep.subr.bf16.mxu0 %v6103
        %6566 = vmatpush2.bf16.msra.mxu0 %v6102
        %6567 = vmatprep.subr.bf16.mxu0 %v6097
        %6568 = vmatpush2.bf16.msra.mxu0 %v6096
        %6569 = vmatprep.mubr.bf16.mxu0 %v5147
        %6570 = vmatmul.mubr.bf16.gmra.mxu0 %v5146
        %v6571 = vpop.f32.mrf.mxu0
        %v6572 = vadd.f32 %v6531, %v6571
        %v6573 = vpop.f32.mrf.mxu0
        %v6574 = vadd.f32 %v6533, %v6573
        %v6575 = vpop.f32.mrf.mxu0
        %v6576 = vpop.f32.mrf.mxu0
        %6577 = vdwg.mxu0
        %6578 = vst [vmem:[%s838] sm:$0xff] %v6408
        %6579 = vst [vmem:[%s838 + $0x8] sm:$0xff] %v6410
        %6580 = vst [vmem:[%s838 + $0x10] sm:$0xff] %v6490
        %6581 = vst [vmem:[%s838 + $0x18] sm:$0xff] %v6492
        %6582 = vst [vmem:[%s838 + $0x20] sm:$0xff] %v6572
        %6583 = vst [vmem:[%s838 + $0x28] sm:$0xff] %v6574
        %v6584 = vsub.f32 %v6408, %v847
        %v6585 = vsub.f32 %v6410, %v848
        %v6586 = vsub.f32 %v6490, %v849
        %v6587 = vsub.f32 %v6492, %v850
        %v6588 = vsub.f32 %v6572, %v851
        %v6589 = vsub.f32 %v6574, %v852
        %v6590 = vmul.f32 %v6584, %v6584
        %v6591 = vmul.f32 %v6585, %v6585
        %v6592 = vmul.f32 %v6586, %v6586
        %v6593 = vmul.f32 %v6587, %v6587
        %v6594 = vmul.f32 %v6588, %v6588
        %v6595 = vmul.f32 %v6589, %v6589
        %v6596 = vadd.f32 %v6590, %v6591
        %v6597 = vadd.f32 %v6596, %v6592
        %v6598 = vadd.f32 %v6597, %v6593
        %v6599 = vadd.f32 %v6598, %v6594
        %v6600 = vadd.f32 %v6599, %v6595
        %6601 = vadd.xlane.f32.xlu0 %v6600
        %v6602 = vpop.xlane.xlu0 %6601
        %v6603 = vsub.f32 %v3508, %v4427
        %v6604 = vmul.f32 %v6603, %v6603
        %v6605 = vsel %vm3147, %v6604, 0.0
        %6606 = vadd.xlane.f32.xlu0 %v6605
        %v6607 = vpop.xlane.xlu0 %6606
        %v6608 = vadd.f32 %v6607, 0.0
        %v6609 = vsub.f32 %v3965, %v4427
        %v6610 = vmul.f32 %v6609, %v6609
        %v6611 = vsel %vm3147, %v6610, 0.0
        %6612 = vadd.xlane.f32.xlu0 %v6611
        %v6613 = vpop.xlane.xlu0 %6612
        %v6614 = vadd.f32 %v6608, %v6613
        %v6615 = vsub.f32 %v4422, %v4427
        %v6616 = vmul.f32 %v6615, %v6615
        %v6617 = vsel %vm3147, %v6616, 0.0
        %6618 = vadd.xlane.f32.xlu0 %v6617
        %v6619 = vpop.xlane.xlu0 %6618
        %v6620 = vadd.f32 %v6614, %v6619
        %v6621 = vmul.f32 %v6620, 1.25
        %v6622 = vadd.f32 %v6602, %v6621
        %s6623 = smul.u32 %s48, 8
        %v6624 = vlaneseq
        %v6625 = vshrl.u32 %v6624, 7
        %v6626 = vstv %s6623
        %v6627 = vadd.s32 %v6626, %v6625
        %vm6628 = vcmp.lt.s32.totalorder %v6627, 20
        %v6629 = vsel %vm6628, %v6622, 0.0
        %v6630 = vrot.slane %v6629, 4
        %v6631 = vadd.f32 %v6629, %v6630
        %v6632 = vrot.slane %v6631, 2
        %v6633 = vadd.f32 %v6631, %v6632
        %v6634 = vrot.slane %v6633, 1
        %v6635 = vadd.f32 %v6633, %v6634
        %6636 = vst [vmem:[%s845] sm:$0xff] %v6635
        %s6637 = sand.u32 %s502, 1
        %s6638 = scalar_lea.sflag [#allocation4], %s6637
        %s6639 = sand.u32 %s502, 1
        %s6640 = smul.addr %s6639, 48
        %s6641 = scalar_lea.vmem [#allocation20], %s6640
        %s6642 = sand.u32 %s528, 1
        %s6643 = scalar_lea.sflag [#allocation22], %s6642
        %s6644 = sand.u32 %s528, 1
        %s6645 = smul.addr %s6644, 8
        %s6646 = scalar_lea.vmem [#allocation21], %s6645
        // Predicated region
        $region149: #{tpu_custom_call.1} parent=103 // pred_check
          %p6647 = pneg %p512
        $region150: #{tpu_custom_call.1} parent=103 // pred_check_branch
          %6649 = sbr.rel (%p6647) target = $region152
        $region151: #{tpu_custom_call.1} parent=103 // pred_region
          %s6651 = ssub.s32 768, 768
          %6652 = vsyncadd %s6638, %s6651
          %s6653 = smul.addr %s48, 6
          %s6654 = smul.addr %s6653, 128
          %s6655 = scalar_lea.hbm %s21, %s6654
          %s6657 = sshll.u32 %s6641, 4
          %s6658 = int_to_ptr.vmem [resolvable:$true] %s6657
          %6660 = dma.vmem_to_hbm [thread:$0]  %s6658, 768, %s6655, %s6638
        $region152: #{tpu_custom_call.1} parent=103 // pred_fallthru
          _
        // Predicated region
        $region153: #{tpu_custom_call.1} parent=103 // pred_check
          %p6661 = pneg %p538
        $region154: #{tpu_custom_call.1} parent=103 // pred_check_branch
          %6663 = sbr.rel (%p6661) target = $region156
        $region155: #{tpu_custom_call.1} parent=103 // pred_region
          %s6665 = ssub.s32 128, 128
          %6666 = vsyncadd %s6643, %s6665
          %s6667 = smul.addr %s48, 128
          %s6668 = scalar_lea.hbm %s22, %s6667
          %s6670 = sshll.u32 %s6646, 4
          %s6671 = int_to_ptr.vmem [resolvable:$true] %s6670
          %6673 = dma.vmem_to_hbm [thread:$0]  %s6671, 128, %s6668, %s6643
        $region156: #{tpu_custom_call.1} parent=103 // pred_fallthru
          _
      $region104: #{tpu_custom_call.1} parent=5 // pred_fallthru
        _
      %p6674 = scmp.le.s32.totalorder 2, %s43
      // Predicated region
      $region157: #{tpu_custom_call.1} parent=5 // pred_check
        %p6675 = pneg %p6674
      $region158: #{tpu_custom_call.1} parent=5 // pred_check_branch
        %6677 = sbr.rel (%p6675) target = $region160
      $region159: #{tpu_custom_call.1} parent=5 // pred_region
        %s6678 = ssub.s32 %s43, 2
        // Predicated region
        $region161: #{tpu_custom_call.1} parent=159 // pred_check
          %p6679 = pneg %p518
        $region162: #{tpu_custom_call.1} parent=159 // pred_check_branch
          %6681 = sbr.rel (%p6679) target = $region164
        $region163: #{tpu_custom_call.1} parent=159 // pred_region
          %s6682 = sand.u32 %s503, 1
          %s6683 = scalar_lea.sflag [#allocation4], %s6682
          %s6684 = sand.u32 %s503, 1
          %s6685 = smul.addr %s6684, 48
          %s6686 = scalar_lea.vmem [#allocation20], %s6685
          %6687 = dma.done %s6683, 768
        $region164: #{tpu_custom_call.1} parent=159 // pred_fallthru
          _
        // Predicated region
        $region165: #{tpu_custom_call.1} parent=159 // pred_check
          %p6688 = pneg %p544
        $region166: #{tpu_custom_call.1} parent=159 // pred_check_branch
          %6690 = sbr.rel (%p6688) target = $region168
        $region167: #{tpu_custom_call.1} parent=159 // pred_region
          %s6691 = sand.u32 %s529, 1
          %s6692 = scalar_lea.sflag [#allocation22], %s6691
          %s6693 = sand.u32 %s529, 1
          %s6694 = smul.addr %s6693, 8
          %s6695 = scalar_lea.vmem [#allocation21], %s6694
          %6696 = dma.done %s6692, 128
        $region168: #{tpu_custom_call.1} parent=159 // pred_fallthru
          _
      $region160: #{tpu_custom_call.1} parent=5 // pred_fallthru
        _
    $region6: #{tpu_custom_call.1} parent=1 // loop_footer
      %s47 = sadd.s32 1, %s43
    $region7: #{tpu_custom_call.1} parent=1 // loop_footer_branch
      %42 = sbr.rel target = $region3
    $region8: #{tpu_custom_call.1} parent=1 // loop_exit
      _
    %6697 = vsyncpa [#allocation3], 1
    %s6698 = scalar_lea.sflag [#allocation3], 1
    %6699 = vsyncpa %s6698, 1
    %6700 = vsyncpa [#allocation6], 1
    %6701 = vsyncpa [#allocation9], 1
    %6702 = vsyncpa [#allocation12], 1
    %6703 = vsyncpa [#allocation15], 1
    %6704 = vsyncpa [#allocation18], 1
    %6705 = vsyncpa [#allocation4], 1
    %s6706 = scalar_lea.sflag [#allocation4], 1
    %6707 = vsyncpa %s6706, 1
    %6708 = vsyncpa [#allocation22], 1
    %s6709 = scalar_lea.sflag [#allocation22], 1
    %6710 = vsyncpa %s6709, 1

</llo_original>
